<compile_context>
chip_gen: v5e
topology: v5e:2x2
jax: 0.10.0
libtpu: 0.0.40
codegen_flags: <defaults>
</compile_context>

<pallas_src>
import numpy as np
import jax
import jax.numpy as jnp
from jax.experimental import pallas as pl
from jax.experimental.pallas import tpu as pltpu


# ----------------------------------------------------------------------------- kernel

def _tvae_fused_kernel(x_ref, eps_ref,
                       wt_ref, bt_ref,
                       whz_ref, bhz_ref, whu_ref, bhu_ref,
                       gmat_ref,
                       wd1_ref, bd1_ref, wd2_ref, bd2_ref,
                       zu_ref, kl_ref, sp_ref, probs_ref, nll_ref):
    f32 = jnp.float32
    bf16 = jnp.bfloat16
    S = gmat_ref.shape[0]            # latent dims per encoder (n_caps * cap_dim)
    H = whz_ref.shape[0]             # encoder hidden width

    x = x_ref[...]                   # (TB, D) f32 (kept f32 for the Bernoulli NLL)
    xb = x.astype(bf16)

    # --- fused z/u encoder trunk:  x @ [W1_z | W1_u] -> (TB, 2H), ReLU ------------------
    h = jnp.dot(xb, wt_ref[...], preferred_element_type=f32) + bt_ref[...]
    h = jnp.maximum(h, 0.0).astype(bf16)

    # --- dense per-encoder heads (no structural zeros); columns ordered [mu | log_var] --
    hz = jnp.dot(h[:, :H], whz_ref[...], preferred_element_type=f32) + bhz_ref[...]
    hu = jnp.dot(h[:, H:], whu_ref[...], preferred_element_type=f32) + bhu_ref[...]

    # repack into lane-dense (TB, 2S) slabs: [z-half | u-half]
    mu = jnp.concatenate([hz[:, :S], hu[:, :S]], axis=1)
    lv = jnp.concatenate([hz[:, S:], hu[:, S:]], axis=1)

    std = jnp.exp(0.5 * lv)
    zu = mu + std * eps_ref[...]                        # [z | u]
    # KL(N(mu, std) || N(0,1)) elementwise; std*std == exp(log_var) (no second exp)
    kl = 0.5 * (mu * mu + std * std - 1.0) - 0.5 * lv   # [kl_z | kl_u]

    # --- grouper: circular capsule-local window sum of u^2 (kept in f32) ----------------
    u = zu[:, S:]
    pooled = jnp.dot(u * u, gmat_ref[...], preferred_element_type=f32)   # (TB, S)
    z = zu[:, :S]
    s = z * jax.lax.rsqrt(pooled + 1e-6)
    # TODO(synk): verify eps placement vs Chi_Squared_Capsules_from_Gaussian_1d
    # (some repo variants use sqrt(sum)+eps instead of rsqrt(sum+eps)).

    # --- Bernoulli decoder MLP -----------------------------------------------------------
    hd = jnp.dot(s.astype(bf16), wd1_ref[...], preferred_element_type=f32) + bd1_ref[...]
    hd = jnp.maximum(hd, 0.0)
    logits = jnp.dot(hd.astype(bf16), wd2_ref[...], preferred_element_type=f32) + bd2_ref[...]

    # single EUP exp pass over the (TB, D) tensor
    e = jnp.exp(-jnp.abs(logits))
    softplus = jnp.maximum(logits, 0.0) + jnp.log1p(e)
    nll = softplus - x * logits                          # BCE-with-logits
    probs = jnp.where(logits >= 0.0, 1.0, e) * pl.reciprocal(1.0 + e, approx=True)
    probs = jnp.minimum(probs, 1.0)                      # guard approx-reciprocal overshoot

    zu_ref[...] = zu
    kl_ref[...] = kl
    sp_ref[...] = jnp.concatenate([s, pooled], axis=1)   # lane-dense (TB, 2S) = [s | pooled]
    probs_ref[...] = probs
    nll_ref[...] = nll


# ----------------------------------------------------------------------------- wrapper

def tvae_forward(x_nchw, packed, eps_z, eps_u, tile_b=128):
    """TVAE.forward(x) -> (z, u, s, probs_x, kl_z, kl_u, neg_logpx_z)."""
    B = x_nchw.shape[0]
    D = int(np.prod(x_nchw.shape[1:]))
    S = eps_z.shape[1]
    x_flat = x_nchw.reshape(B, D)                        # torch.nn.Flatten on NCHW
    eps = jnp.concatenate([eps_z, eps_u], axis=1)        # (B, 2S) lane-dense noise input
    # TODO(synk): torch rsample draws noise internally; here eps is passed in (could be
    # generated in-kernel with pltpu.prng_seed/stateful_normal to drop one input DMA).

    nb = pl.cdiv(B, tile_b)
    Bp = nb * tile_b
    if Bp != B:                                          # pad batch to a tile multiple
        x_flat = jnp.pad(x_flat, ((0, Bp - B), (0, 0)))
        eps = jnp.pad(eps, ((0, Bp - B), (0, 0)))

    def row_spec(w):                                     # batch-tiled operand
        return pl.BlockSpec((tile_b, w), lambda i: (i, 0))

    def full_spec(a):                                    # VMEM-resident weight (DMA'd once)
        return pl.BlockSpec(a.shape, lambda i: (0, 0))

    zu, kl, sp, probs, nll = pl.pallas_call(
        _tvae_fused_kernel,
        grid=(nb,),
        out_shape=[
            jax.ShapeDtypeStruct((Bp, 2 * S), jnp.float32),   # [z | u]
            jax.ShapeDtypeStruct((Bp, 2 * S), jnp.float32),   # [kl_z | kl_u]
            jax.ShapeDtypeStruct((Bp, 2 * S), jnp.float32),   # [s | pooled] (lane-dense)
            jax.ShapeDtypeStruct((Bp, D), jnp.float32),       # probs_x (flat)
            jax.ShapeDtypeStruct((Bp, D), jnp.float32),       # neg_logpx_z (flat)
        ],
        in_specs=[
            row_spec(D), row_spec(2 * S),
            full_spec(packed["w_trunk"]), full_spec(packed["b_trunk"]),
            full_spec(packed["w_heads_z"]), full_spec(packed["b_heads_z"]),
            full_spec(packed["w_heads_u"]), full_spec(packed["b_heads_u"]),
            full_spec(packed["group_mat"]),
            full_spec(packed["wd1"]), full_spec(packed["bd1"]),
            full_spec(packed["wd2"]), full_spec(packed["bd2"]),
        ],
        out_specs=[row_spec(2 * S), row_spec(2 * S), row_spec(2 * S),
                   row_spec(D), row_spec(D)],
        compiler_params=pltpu.CompilerParams(
            dimension_semantics=("parallel",),           # split batch tiles across TCs (v7x)
            vmem_limit_bytes=64 * 1024 * 1024),
    )(x_flat, eps,
      packed["w_trunk"], packed["b_trunk"],
      packed["w_heads_z"], packed["b_heads_z"],
      packed["w_heads_u"], packed["b_heads_u"],
      packed["group_mat"],
      packed["wd1"], packed["bd1"], packed["wd2"], packed["bd2"])

    z, u = zu[:B, :S], zu[:B, S:]
    kl_z, kl_u = kl[:B, :S], kl[:B, S:]
    s = sp[:B, :S]
    probs_x = probs[:B].reshape(x_nchw.shape)
    neg_logpx_z = nll[:B].reshape(x_nchw.shape)
    return z, u, s, probs_x, kl_z, kl_u, neg_logpx_z


# ----------------------------------------------------------------------------- setup glue

def build_group_matrix(n_caps, cap_dim, ksize):
    # block-circulant ones matrix: M[j, i] = 1 iff j is in the circular window of i
    # within the same capsule (symmetric for an odd, centered window).
    half = ksize // 2
    idx = np.arange(cap_dim)
    mc = np.zeros((cap_dim, cap_dim), np.float32)
    for off in range(-half, half + 1):
        mc[idx, (idx + off) % cap_dim] = 1.0
    m = np.kron(np.eye(n_caps, dtype=np.float32), mc)
    return jnp.asarray(m)                                # (S, S) f32


def init_params(key, D, HID, S):
    ks = jax.random.split(key, 8)
    scale = 0.05

    def lin(k, fan_in, fan_out):
        return scale * jax.random.normal(k, (fan_in, fan_out), jnp.float32)

    def enc(k0, k1, k2):
        return dict(
            w1=lin(k0, D, HID), b1=jnp.zeros((1, HID), jnp.float32),
            wmu=lin(k1, HID, S), bmu=jnp.zeros((1, S), jnp.float32),
            wlv=lin(k2, HID, S), blv=jnp.zeros((1, S), jnp.float32),
        )

    return dict(
        z_enc=enc(ks[0], ks[1], ks[2]),
        u_enc=enc(ks[3], ks[4], ks[5]),
        dec=dict(
            w1=lin(ks[6], S, HID), b1=jnp.zeros((1, HID), jnp.float32),
            w2=lin(ks[7], HID, D), b2=jnp.zeros((1, D), jnp.float32),
        ),
    )


def pack_params(raw, group_mat):
    """Pack raw per-module weights into fused, dense, MXU-friendly operands (no zeros)."""
    bf16 = jnp.bfloat16
    ze, ue, de = raw["z_enc"], raw["u_enc"], raw["dec"]
    return dict(
        # trunk: x @ [W1_z | W1_u] -> (B, 2H)
        w_trunk=jnp.concatenate([ze["w1"], ue["w1"]], axis=1).astype(bf16),      # (D, 2H)
        b_trunk=jnp.concatenate([ze["b1"], ue["b1"]], axis=1),                   # (1, 2H)
        # dense per-encoder heads, columns [mu | log_var]
        w_heads_z=jnp.concatenate([ze["wmu"], ze["wlv"]], axis=1).astype(bf16),  # (H, 2S)
        b_heads_z=jnp.concatenate([ze["bmu"], ze["blv"]], axis=1),               # (1, 2S)
        w_heads_u=jnp.concatenate([ue["wmu"], ue["wlv"]], axis=1).astype(bf16),  # (H, 2S)
        b_heads_u=jnp.concatenate([ue["bmu"], ue["blv"]], axis=1),               # (1, 2S)
        # dense grouper matrix, kept f32
        group_mat=group_mat,                                                     # (S, S)
        wd1=de["w1"].astype(bf16), bd1=de["b1"],
        wd2=de["w2"].astype(bf16), bd2=de["b2"],
    )


# ----------------------------------------------------------------------------- reference

def tvae_reference(x_nchw, raw, group_mat, eps_z, eps_u):
    """Pure-JAX f32 reference of the same forward pass (for tolerance checks)."""
    B = x_nchw.shape[0]
    x = x_nchw.reshape(B, -1)

    def enc(p, eps):
        h = jnp.maximum(x @ p["w1"] + p["b1"], 0.0)
        mu = h @ p["wmu"] + p["bmu"]
        lv = h @ p["wlv"] + p["blv"]
        std = jnp.exp(0.5 * lv)
        zz = mu + std * eps
        kl = 0.5 * (mu * mu + std * std - 1.0) - 0.5 * lv
        return zz, kl

    z, kl_z = enc(raw["z_enc"], eps_z)
    u, kl_u = enc(raw["u_enc"], eps_u)
    pooled = (u * u) @ group_mat
    s = z * jax.lax.rsqrt(pooled + 1e-6)
    hd = jnp.maximum(s @ raw["dec"]["w1"] + raw["dec"]["b1"], 0.0)
    logits = hd @ raw["dec"]["w2"] + raw["dec"]["b2"]
    probs = jax.nn.sigmoid(logits)
    nll = jax.nn.softplus(logits) - x * logits
    return (z, u, s, probs.reshape(x_nchw.shape), kl_z, kl_u,
            nll.reshape(x_nchw.shape))


# ----------------------------------------------------------------------------- main

if __name__ == "__main__":
    # Two 128-row batch tiles -> grid=(2,) "parallel" (both v7x TensorCores busy),
    # MXU M-dimension filled instead of starved at M=8.
    B, C, Himg, Wimg = 256, 1, 16, 16
    D = C * Himg * Wimg            # 256
    HID = 128                      # encoder/decoder hidden width
    N_CAPS, CAP_DIM, KSIZE = 8, 8, 3
    S = N_CAPS * CAP_DIM           # 64 latent dims per encoder

    key = jax.random.PRNGKey(0)
    k_x, k_p, k_ez, k_eu = jax.random.split(key, 4)

    # Bernoulli-decoded data -> values in [0, 1]
    x = jax.random.uniform(k_x, (B, C, Himg, Wimg), jnp.float32)
    raw_params = init_params(k_p, D, HID, S)
    group_mat = build_group_matrix(N_CAPS, CAP_DIM, KSIZE)
    packed = pack_params(raw_params, group_mat)          # one-time packing, off the hot path

    # deterministic reparameterization noise (plays the role of q.rsample()'s eps)
    eps_z = jax.random.normal(k_ez, (B, S), jnp.float32)
    eps_u = jax.random.normal(k_eu, (B, S), jnp.float32)

    fwd = jax.jit(tvae_forward)
    out = fwd(x, packed, eps_z, eps_u)
    jax.block_until_ready(out)
    z, u, s, probs_x, kl_z, kl_u, neg_logpx_z = out

    # shape / range sanity
    assert z.shape == (B, S) and u.shape == (B, S) and s.shape == (B, S)
    assert kl_z.shape == (B, S) and kl_u.shape == (B, S)
    assert probs_x.shape == x.shape and neg_logpx_z.shape == x.shape
    assert bool(jnp.all(jnp.isfinite(probs_x))) and bool(jnp.all(jnp.isfinite(neg_logpx_z)))
    assert bool(jnp.all((probs_x >= 0.0) & (probs_x <= 1.0)))

    # loose numerical check vs pure-f32 reference (kernel uses bf16 matmul inputs)
    rz, ru, rs, rprobs, rkl_z, rkl_u, rnll = tvae_reference(
        x, raw_params, group_mat, eps_z, eps_u)
    np.testing.assert_allclose(np.asarray(z), np.asarray(rz), atol=2e-2, rtol=2e-2)
    np.testing.assert_allclose(np.asarray(u), np.asarray(ru), atol=2e-2, rtol=2e-2)
    np.testing.assert_allclose(np.asarray(probs_x), np.asarray(rprobs), atol=2e-2, rtol=2e-2)
    np.testing.assert_allclose(np.asarray(neg_logpx_z), np.asarray(rnll), atol=2e-2, rtol=2e-2)
    np.testing.assert_allclose(np.asarray(s), np.asarray(rs), atol=1e-1, rtol=2e-1)

    print("KERNEL_OK")
</pallas_src>

<mosaic_0001>
module attributes {stable_mosaic.version = 11 : i64} {
  func.func @_tvae_fused_kernel(%arg0: i32, %arg1: memref<128x256xf32, #tpu.memory_space<vmem>>, %arg2: memref<128x128xf32, #tpu.memory_space<vmem>>, %arg3: memref<256x256xbf16, #tpu.memory_space<vmem>>, %arg4: memref<1x256xf32, #tpu.memory_space<vmem>>, %arg5: memref<128x128xbf16, #tpu.memory_space<vmem>>, %arg6: memref<1x128xf32, #tpu.memory_space<vmem>>, %arg7: memref<128x128xbf16, #tpu.memory_space<vmem>>, %arg8: memref<1x128xf32, #tpu.memory_space<vmem>>, %arg9: memref<64x64xf32, #tpu.memory_space<vmem>>, %arg10: memref<64x128xbf16, #tpu.memory_space<vmem>>, %arg11: memref<1x128xf32, #tpu.memory_space<vmem>>, %arg12: memref<128x256xbf16, #tpu.memory_space<vmem>>, %arg13: memref<1x256xf32, #tpu.memory_space<vmem>>, %arg14: memref<128x128xf32, #tpu.memory_space<vmem>>, %arg15: memref<128x128xf32, #tpu.memory_space<vmem>>, %arg16: memref<128x128xf32, #tpu.memory_space<vmem>>, %arg17: memref<128x256xf32, #tpu.memory_space<vmem>>, %arg18: memref<128x256xf32, #tpu.memory_space<vmem>>) attributes {dimension_semantics = [#tpu.dimension_semantics<parallel>], iteration_bounds = array<i64: 2>, scalar_prefetch = 0 : i64, scratch_operands = 0 : i64, tpu.core_type = #tpu.core_type<tc>, window_params = [{transform_indices = @transform_0, window_bounds = array<i64: 128, 256>}, {transform_indices = @transform_1, window_bounds = array<i64: 128, 128>}, {pipeline_mode = #tpu.pipeline_mode<synchronous>, transform_indices = @transform_2, window_bounds = array<i64: 256, 256>}, {pipeline_mode = #tpu.pipeline_mode<synchronous>, transform_indices = @transform_3, window_bounds = array<i64: 1, 256>}, {pipeline_mode = #tpu.pipeline_mode<synchronous>, transform_indices = @transform_4, window_bounds = array<i64: 128, 128>}, {pipeline_mode = #tpu.pipeline_mode<synchronous>, transform_indices = @transform_5, window_bounds = array<i64: 1, 128>}, {pipeline_mode = #tpu.pipeline_mode<synchronous>, transform_indices = @transform_6, window_bounds = array<i64: 128, 128>}, {pipeline_mode = #tpu.pipeline_mode<synchronous>, transform_indices = @transform_7, window_bounds = array<i64: 1, 128>}, {pipeline_mode = #tpu.pipeline_mode<synchronous>, transform_indices = @transform_8, window_bounds = array<i64: 64, 64>}, {pipeline_mode = #tpu.pipeline_mode<synchronous>, transform_indices = @transform_9, window_bounds = array<i64: 64, 128>}, {pipeline_mode = #tpu.pipeline_mode<synchronous>, transform_indices = @transform_10, window_bounds = array<i64: 1, 128>}, {pipeline_mode = #tpu.pipeline_mode<synchronous>, transform_indices = @transform_11, window_bounds = array<i64: 128, 256>}, {pipeline_mode = #tpu.pipeline_mode<synchronous>, transform_indices = @transform_12, window_bounds = array<i64: 1, 256>}, {transform_indices = @transform_13, window_bounds = array<i64: 128, 128>}, {transform_indices = @transform_14, window_bounds = array<i64: 128, 128>}, {transform_indices = @transform_15, window_bounds = array<i64: 128, 128>}, {transform_indices = @transform_16, window_bounds = array<i64: 128, 256>}, {transform_indices = @transform_17, window_bounds = array<i64: 128, 256>}]} {
    %c0 = arith.constant 0 : index
    %c0_0 = arith.constant 0 : index
    %0 = vector.load %arg1[%c0, %c0_0] : memref<128x256xf32, #tpu.memory_space<vmem>>, vector<128x256xf32>
    %1 = arith.truncf %0 : vector<128x256xf32> to vector<128x256xbf16>
    %c0_1 = arith.constant 0 : index
    %c0_2 = arith.constant 0 : index
    %2 = vector.load %arg3[%c0_1, %c0_2] : memref<256x256xbf16, #tpu.memory_space<vmem>>, vector<256x256xbf16>
    %cst = arith.constant dense<0.000000e+00> : vector<128x256xf32>
    %3 = tpu.matmul %1, %2, %cst {dimension_numbers = #tpu.dot_dimension_numbers<[1], [0], [0], [1], [0, 0, 1, 1], [], []>} : vector<128x256xbf16>, vector<256x256xbf16>, vector<128x256xf32> -> vector<128x256xf32>
    %c0_3 = arith.constant 0 : index
    %c0_4 = arith.constant 0 : index
    %4 = vector.load %arg4[%c0_3, %c0_4] : memref<1x256xf32, #tpu.memory_space<vmem>>, vector<1x256xf32>
    %5 = vector.broadcast %4 : vector<1x256xf32> to vector<128x256xf32>
    %6 = arith.addf %3, %5 : vector<128x256xf32>
    %cst_5 = arith.constant 0.000000e+00 : f32
    %7 = vector.broadcast %cst_5 : f32 to vector<128x256xf32>
    %8 = arith.maximumf %6, %7 : vector<128x256xf32>
    %9 = arith.truncf %8 : vector<128x256xf32> to vector<128x256xbf16>
    %10 = vector.extract_strided_slice %9 {offsets = [0, 0], sizes = [128, 128], strides = [1, 1]} : vector<128x256xbf16> to vector<128x128xbf16>
    %c0_6 = arith.constant 0 : index
    %c0_7 = arith.constant 0 : index
    %11 = vector.load %arg5[%c0_6, %c0_7] : memref<128x128xbf16, #tpu.memory_space<vmem>>, vector<128x128xbf16>
    %cst_8 = arith.constant dense<0.000000e+00> : vector<128x128xf32>
    %12 = tpu.matmul %10, %11, %cst_8 {dimension_numbers = #tpu.dot_dimension_numbers<[1], [0], [0], [1], [0, 0, 1, 1], [], []>} : vector<128x128xbf16>, vector<128x128xbf16>, vector<128x128xf32> -> vector<128x128xf32>
    %c0_9 = arith.constant 0 : index
    %c0_10 = arith.constant 0 : index
    %13 = vector.load %arg6[%c0_9, %c0_10] : memref<1x128xf32, #tpu.memory_space<vmem>>, vector<1x128xf32>
    %14 = vector.broadcast %13 : vector<1x128xf32> to vector<128x128xf32>
    %15 = arith.addf %12, %14 : vector<128x128xf32>
    %16 = vector.extract_strided_slice %9 {offsets = [0, 128], sizes = [128, 128], strides = [1, 1]} : vector<128x256xbf16> to vector<128x128xbf16>
    %c0_11 = arith.constant 0 : index
    %c0_12 = arith.constant 0 : index
    %17 = vector.load %arg7[%c0_11, %c0_12] : memref<128x128xbf16, #tpu.memory_space<vmem>>, vector<128x128xbf16>
    %cst_13 = arith.constant dense<0.000000e+00> : vector<128x128xf32>
    %18 = tpu.matmul %16, %17, %cst_13 {dimension_numbers = #tpu.dot_dimension_numbers<[1], [0], [0], [1], [0, 0, 1, 1], [], []>} : vector<128x128xbf16>, vector<128x128xbf16>, vector<128x128xf32> -> vector<128x128xf32>
    %c0_14 = arith.constant 0 : index
    %c0_15 = arith.constant 0 : index
    %19 = vector.load %arg8[%c0_14, %c0_15] : memref<1x128xf32, #tpu.memory_space<vmem>>, vector<1x128xf32>
    %20 = vector.broadcast %19 : vector<1x128xf32> to vector<128x128xf32>
    %21 = arith.addf %18, %20 : vector<128x128xf32>
    %22 = vector.extract_strided_slice %15 {offsets = [0, 0], sizes = [128, 64], strides = [1, 1]} : vector<128x128xf32> to vector<128x64xf32>
    %23 = vector.extract_strided_slice %21 {offsets = [0, 0], sizes = [128, 64], strides = [1, 1]} : vector<128x128xf32> to vector<128x64xf32>
    %24 = tpu.concatenate %22, %23 in 1 : vector<128x64xf32>, vector<128x64xf32> -> vector<128x128xf32>
    %25 = vector.extract_strided_slice %15 {offsets = [0, 64], sizes = [128, 64], strides = [1, 1]} : vector<128x128xf32> to vector<128x64xf32>
    %26 = vector.extract_strided_slice %21 {offsets = [0, 64], sizes = [128, 64], strides = [1, 1]} : vector<128x128xf32> to vector<128x64xf32>
    %27 = tpu.concatenate %25, %26 in 1 : vector<128x64xf32>, vector<128x64xf32> -> vector<128x128xf32>
    %cst_16 = arith.constant 5.000000e-01 : f32
    %28 = vector.broadcast %cst_16 : f32 to vector<128x128xf32>
    %29 = arith.mulf %28, %27 : vector<128x128xf32>
    %30 = math.exp %29 : vector<128x128xf32>
    %c0_17 = arith.constant 0 : index
    %c0_18 = arith.constant 0 : index
    %31 = vector.load %arg2[%c0_17, %c0_18] : memref<128x128xf32, #tpu.memory_space<vmem>>, vector<128x128xf32>
    %32 = arith.mulf %30, %31 : vector<128x128xf32>
    %33 = arith.addf %24, %32 : vector<128x128xf32>
    %34 = arith.mulf %24, %24 : vector<128x128xf32>
    %35 = arith.mulf %30, %30 : vector<128x128xf32>
    %36 = arith.addf %34, %35 : vector<128x128xf32>
    %cst_19 = arith.constant 1.000000e+00 : f32
    %37 = vector.broadcast %cst_19 : f32 to vector<128x128xf32>
    %38 = arith.subf %36, %37 : vector<128x128xf32>
    %cst_20 = arith.constant 5.000000e-01 : f32
    %39 = vector.broadcast %cst_20 : f32 to vector<128x128xf32>
    %40 = arith.mulf %39, %38 : vector<128x128xf32>
    %cst_21 = arith.constant 5.000000e-01 : f32
    %41 = vector.broadcast %cst_21 : f32 to vector<128x128xf32>
    %42 = arith.mulf %41, %27 : vector<128x128xf32>
    %43 = arith.subf %40, %42 : vector<128x128xf32>
    %44 = vector.extract_strided_slice %33 {offsets = [0, 64], sizes = [128, 64], strides = [1, 1]} : vector<128x128xf32> to vector<128x64xf32>
    %45 = arith.mulf %44, %44 : vector<128x64xf32>
    %c0_22 = arith.constant 0 : index
    %c0_23 = arith.constant 0 : index
    %46 = vector.load %arg9[%c0_22, %c0_23] : memref<64x64xf32, #tpu.memory_space<vmem>>, vector<64x64xf32>
    %cst_24 = arith.constant dense<0.000000e+00> : vector<128x64xf32>
    %47 = tpu.matmul %45, %46, %cst_24 {dimension_numbers = #tpu.dot_dimension_numbers<[1], [0], [0], [1], [0, 0, 1, 1], [], []>} : vector<128x64xf32>, vector<64x64xf32>, vector<128x64xf32> -> vector<128x64xf32>
    %48 = vector.extract_strided_slice %33 {offsets = [0, 0], sizes = [128, 64], strides = [1, 1]} : vector<128x128xf32> to vector<128x64xf32>
    %cst_25 = arith.constant 9.99999997E-7 : f32
    %49 = vector.broadcast %cst_25 : f32 to vector<128x64xf32>
    %50 = arith.addf %47, %49 : vector<128x64xf32>
    %51 = math.rsqrt %50 : vector<128x64xf32>
    %52 = arith.mulf %48, %51 : vector<128x64xf32>
    %53 = arith.truncf %52 : vector<128x64xf32> to vector<128x64xbf16>
    %c0_26 = arith.constant 0 : index
    %c0_27 = arith.constant 0 : index
    %54 = vector.load %arg10[%c0_26, %c0_27] : memref<64x128xbf16, #tpu.memory_space<vmem>>, vector<64x128xbf16>
    %cst_28 = arith.constant dense<0.000000e+00> : vector<128x128xf32>
    %55 = tpu.matmul %53, %54, %cst_28 {dimension_numbers = #tpu.dot_dimension_numbers<[1], [0], [0], [1], [0, 0, 1, 1], [], []>} : vector<128x64xbf16>, vector<64x128xbf16>, vector<128x128xf32> -> vector<128x128xf32>
    %c0_29 = arith.constant 0 : index
    %c0_30 = arith.constant 0 : index
    %56 = vector.load %arg11[%c0_29, %c0_30] : memref<1x128xf32, #tpu.memory_space<vmem>>, vector<1x128xf32>
    %57 = vector.broadcast %56 : vector<1x128xf32> to vector<128x128xf32>
    %58 = arith.addf %55, %57 : vector<128x128xf32>
    %cst_31 = arith.constant 0.000000e+00 : f32
    %59 = vector.broadcast %cst_31 : f32 to vector<128x128xf32>
    %60 = arith.maximumf %58, %59 : vector<128x128xf32>
    %61 = arith.truncf %60 : vector<128x128xf32> to vector<128x128xbf16>
    %c0_32 = arith.constant 0 : index
    %c0_33 = arith.constant 0 : index
    %62 = vector.load %arg12[%c0_32, %c0_33] : memref<128x256xbf16, #tpu.memory_space<vmem>>, vector<128x256xbf16>
    %cst_34 = arith.constant dense<0.000000e+00> : vector<128x256xf32>
    %63 = tpu.matmul %61, %62, %cst_34 {dimension_numbers = #tpu.dot_dimension_numbers<[1], [0], [0], [1], [0, 0, 1, 1], [], []>} : vector<128x128xbf16>, vector<128x256xbf16>, vector<128x256xf32> -> vector<128x256xf32>
    %c0_35 = arith.constant 0 : index
    %c0_36 = arith.constant 0 : index
    %64 = vector.load %arg13[%c0_35, %c0_36] : memref<1x256xf32, #tpu.memory_space<vmem>>, vector<1x256xf32>
    %65 = vector.broadcast %64 : vector<1x256xf32> to vector<128x256xf32>
    %66 = arith.addf %63, %65 : vector<128x256xf32>
    %67 = math.absf %66 : vector<128x256xf32>
    %cst_37 = arith.constant 0.000000e+00 : f32
    %68 = vector.broadcast %cst_37 : f32 to vector<128x256xf32>
    %69 = arith.subf %68, %67 : vector<128x256xf32>
    %70 = math.exp %69 : vector<128x256xf32>
    %cst_38 = arith.constant 0.000000e+00 : f32
    %71 = vector.broadcast %cst_38 : f32 to vector<128x256xf32>
    %72 = arith.maximumf %66, %71 : vector<128x256xf32>
    %73 = math.log1p %70 : vector<128x256xf32>
    %74 = arith.addf %72, %73 : vector<128x256xf32>
    %75 = arith.mulf %0, %66 : vector<128x256xf32>
    %76 = arith.subf %74, %75 : vector<128x256xf32>
    %cst_39 = arith.constant 0.000000e+00 : f32
    %77 = vector.broadcast %cst_39 : f32 to vector<128x256xf32>
    %78 = arith.cmpf oge, %66, %77 : vector<128x256xf32>
    %cst_40 = arith.constant 1.000000e+00 : f32
    %79 = vector.broadcast %cst_40 : f32 to vector<128x256xf32>
    %80 = arith.select %78, %79, %70 : vector<128x256xi1>, vector<128x256xf32>
    %cst_41 = arith.constant 1.000000e+00 : f32
    %81 = vector.broadcast %cst_41 : f32 to vector<128x256xf32>
    %82 = arith.addf %81, %70 : vector<128x256xf32>
    %83 = tpu.reciprocal %82 {approx = true} : vector<128x256xf32> -> vector<128x256xf32>
    %84 = arith.mulf %80, %83 : vector<128x256xf32>
    %cst_42 = arith.constant 1.000000e+00 : f32
    %85 = vector.broadcast %cst_42 : f32 to vector<128x256xf32>
    %86 = arith.minimumf %84, %85 : vector<128x256xf32>
    %c0_43 = arith.constant 0 : index
    %c0_44 = arith.constant 0 : index
    %87 = vector.load %arg14[%c0_43, %c0_44] : memref<128x128xf32, #tpu.memory_space<vmem>>, vector<128x128xf32>
    tpu.vector_store %arg14[%c0_43, %c0_44], %33 {strides = array<i32>} : memref<128x128xf32, #tpu.memory_space<vmem>>, vector<128x128xf32>,
    %c0_45 = arith.constant 0 : index
    %c0_46 = arith.constant 0 : index
    %88 = vector.load %arg15[%c0_45, %c0_46] : memref<128x128xf32, #tpu.memory_space<vmem>>, vector<128x128xf32>
    tpu.vector_store %arg15[%c0_45, %c0_46], %43 {strides = array<i32>} : memref<128x128xf32, #tpu.memory_space<vmem>>, vector<128x128xf32>,
    %89 = tpu.concatenate %52, %47 in 1 : vector<128x64xf32>, vector<128x64xf32> -> vector<128x128xf32>
    %c0_47 = arith.constant 0 : index
    %c0_48 = arith.constant 0 : index
    %90 = vector.load %arg16[%c0_47, %c0_48] : memref<128x128xf32, #tpu.memory_space<vmem>>, vector<128x128xf32>
    tpu.vector_store %arg16[%c0_47, %c0_48], %89 {strides = array<i32>} : memref<128x128xf32, #tpu.memory_space<vmem>>, vector<128x128xf32>,
    %c0_49 = arith.constant 0 : index
    %c0_50 = arith.constant 0 : index
    %91 = vector.load %arg17[%c0_49, %c0_50] : memref<128x256xf32, #tpu.memory_space<vmem>>, vector<128x256xf32>
    tpu.vector_store %arg17[%c0_49, %c0_50], %86 {strides = array<i32>} : memref<128x256xf32, #tpu.memory_space<vmem>>, vector<128x256xf32>,
    %c0_51 = arith.constant 0 : index
    %c0_52 = arith.constant 0 : index
    %92 = vector.load %arg18[%c0_51, %c0_52] : memref<128x256xf32, #tpu.memory_space<vmem>>, vector<128x256xf32>
    tpu.vector_store %arg18[%c0_51, %c0_52], %76 {strides = array<i32>} : memref<128x256xf32, #tpu.memory_space<vmem>>, vector<128x256xf32>,
    return
  }
  func.func @transform_0(%arg0: i32) -> (i32, i32) {
    %c0_i32 = arith.constant 0 : i32
    %c0_i32_0 = arith.constant 0 : i32
    return %arg0, %c0_i32 : i32, i32
  }
  func.func @transform_1(%arg0: i32) -> (i32, i32) {
    %c0_i32 = arith.constant 0 : i32
    %c0_i32_0 = arith.constant 0 : i32
    return %arg0, %c0_i32 : i32, i32
  }
  func.func @transform_2(%arg0: i32) -> (i32, i32) {
    %c0_i32 = arith.constant 0 : i32
    %c0_i32_0 = arith.constant 0 : i32
    %c0_i32_1 = arith.constant 0 : i32
    return %c0_i32, %c0_i32_0 : i32, i32
  }
  func.func @transform_3(%arg0: i32) -> (i32, i32) {
    %c0_i32 = arith.constant 0 : i32
    %c0_i32_0 = arith.constant 0 : i32
    %c0_i32_1 = arith.constant 0 : i32
    return %c0_i32, %c0_i32_0 : i32, i32
  }
  func.func @transform_4(%arg0: i32) -> (i32, i32) {
    %c0_i32 = arith.constant 0 : i32
    %c0_i32_0 = arith.constant 0 : i32
    %c0_i32_1 = arith.constant 0 : i32
    return %c0_i32, %c0_i32_0 : i32, i32
  }
  func.func @transform_5(%arg0: i32) -> (i32, i32) {
    %c0_i32 = arith.constant 0 : i32
    %c0_i32_0 = arith.constant 0 : i32
    %c0_i32_1 = arith.constant 0 : i32
    return %c0_i32, %c0_i32_0 : i32, i32
  }
  func.func @transform_6(%arg0: i32) -> (i32, i32) {
    %c0_i32 = arith.constant 0 : i32
    %c0_i32_0 = arith.constant 0 : i32
    %c0_i32_1 = arith.constant 0 : i32
    return %c0_i32, %c0_i32_0 : i32, i32
  }
  func.func @transform_7(%arg0: i32) -> (i32, i32) {
    %c0_i32 = arith.constant 0 : i32
    %c0_i32_0 = arith.constant 0 : i32
    %c0_i32_1 = arith.constant 0 : i32
    return %c0_i32, %c0_i32_0 : i32, i32
  }
  func.func @transform_8(%arg0: i32) -> (i32, i32) {
    %c0_i32 = arith.constant 0 : i32
    %c0_i32_0 = arith.constant 0 : i32
    %c0_i32_1 = arith.constant 0 : i32
    return %c0_i32, %c0_i32_0 : i32, i32
  }
  func.func @transform_9(%arg0: i32) -> (i32, i32) {
    %c0_i32 = arith.constant 0 : i32
    %c0_i32_0 = arith.constant 0 : i32
    %c0_i32_1 = arith.constant 0 : i32
    return %c0_i32, %c0_i32_0 : i32, i32
  }
  func.func @transform_10(%arg0: i32) -> (i32, i32) {
    %c0_i32 = arith.constant 0 : i32
    %c0_i32_0 = arith.constant 0 : i32
    %c0_i32_1 = arith.constant 0 : i32
    return %c0_i32, %c0_i32_0 : i32, i32
  }
  func.func @transform_11(%arg0: i32) -> (i32, i32) {
    %c0_i32 = arith.constant 0 : i32
    %c0_i32_0 = arith.constant 0 : i32
    %c0_i32_1 = arith.constant 0 : i32
    return %c0_i32, %c0_i32_0 : i32, i32
  }
  func.func @transform_12(%arg0: i32) -> (i32, i32) {
    %c0_i32 = arith.constant 0 : i32
    %c0_i32_0 = arith.constant 0 : i32
    %c0_i32_1 = arith.constant 0 : i32
    return %c0_i32, %c0_i32_0 : i32, i32
  }
  func.func @transform_13(%arg0: i32) -> (i32, i32) {
    %c0_i32 = arith.constant 0 : i32
    %c0_i32_0 = arith.constant 0 : i32
    return %arg0, %c0_i32 : i32, i32
  }
  func.func @transform_14(%arg0: i32) -> (i32, i32) {
    %c0_i32 = arith.constant 0 : i32
    %c0_i32_0 = arith.constant 0 : i32
    return %arg0, %c0_i32 : i32, i32
  }
  func.func @transform_15(%arg0: i32) -> (i32, i32) {
    %c0_i32 = arith.constant 0 : i32
    %c0_i32_0 = arith.constant 0 : i32
    return %arg0, %c0_i32 : i32, i32
  }
  func.func @transform_16(%arg0: i32) -> (i32, i32) {
    %c0_i32 = arith.constant 0 : i32
    %c0_i32_0 = arith.constant 0 : i32
    return %arg0, %c0_i32 : i32, i32
  }
  func.func @transform_17(%arg0: i32) -> (i32, i32) {
    %c0_i32 = arith.constant 0 : i32
    %c0_i32_0 = arith.constant 0 : i32
    return %arg0, %c0_i32 : i32, i32
  }
}

</mosaic_0001>

<llo_original>
// kernel: tvae_forward.1
$region0: #{tvae_forward.1}
  #allocation0 [shape = 'u32[]', space=smem, size = 0x4, offset = 0x4, fixed_abs, tag = 'smem constant byte address 0x4 - core index']
  #allocation1 [shape = 'u32[72,128]{1,0:T(1,128)}', space=vmem, size = 0x9000, scoped, tag = 'internal scratch']
  %s0 = inlined_call_operand.vmem [shape: f32[256,256], index: 0, kind: input, shape index: {}]
  %s1 = inlined_call_operand.vmem [shape: f32[256,128], index: 1, kind: input, shape index: {}]
  %s2 = inlined_call_operand.vmem [shape: bf16[256,256], index: 2, kind: input, shape index: {}]
  %s3 = inlined_call_operand.vmem [shape: f32[1,256], index: 3, kind: input, shape index: {}]
  %s4 = inlined_call_operand.vmem [shape: bf16[128,128], index: 4, kind: input, shape index: {}]
  %s5 = inlined_call_operand.vmem [shape: f32[1,128], index: 5, kind: input, shape index: {}]
  %s6 = inlined_call_operand.vmem [shape: bf16[128,128], index: 6, kind: input, shape index: {}]
  %s7 = inlined_call_operand.vmem [shape: f32[1,128], index: 7, kind: input, shape index: {}]
  %s8 = inlined_call_operand.vmem [shape: f32[64,64], index: 8, kind: input, shape index: {}]
  %s9 = inlined_call_operand.vmem [shape: bf16[64,128], index: 9, kind: input, shape index: {}]
  %s10 = inlined_call_operand.vmem [shape: f32[1,128], index: 10, kind: input, shape index: {}]
  %s11 = inlined_call_operand.vmem [shape: bf16[128,256], index: 11, kind: input, shape index: {}]
  %s12 = inlined_call_operand.vmem [shape: f32[1,256], index: 12, kind: input, shape index: {}]
  %s13 = inlined_call_operand.vmem [shape: f32[256,128], index: 13, kind: output, shape index: {0}]
  %s14 = inlined_call_operand.vmem [shape: f32[256,128], index: 14, kind: output, shape index: {1}]
  %s15 = inlined_call_operand.vmem [shape: f32[256,128], index: 15, kind: output, shape index: {2}]
  %s16 = inlined_call_operand.vmem [shape: f32[256,256], index: 16, kind: output, shape index: {3}]
  %s17 = inlined_call_operand.vmem [shape: f32[256,256], index: 17, kind: output, shape index: {4}]
  %18 = xla_tuple %s13, %s14, %s15, %s16, %s17
  %s19 = sld [smem:[#allocation0]]
  $region117: #{tvae_forward.1} parent=0
    _
  %s21 = ssub.s32 1, %s19
  %s22 = scalar_select 0, %s21, %s19
  loop: start=0, step=1, limit=4
  $region2: #{tvae_forward.1} parent=0 // loop_pre_header
    _
  $region3: #{tvae_forward.1} parent=0 // loop_header
    %s24 = sphi 0, %s28
    %p25 = scmp.ge.s32.totalorder %s24, 4
    %s34 = sphi 0, %s36
    %s37 = sphi 0, %s34
    %s38 = sphi 0, %s37
    %s54 = sphi 0, %s38
    %s60 = sphi 0, %s62
    %s63 = sphi 0, %s60
    %s64 = sphi 0, %s63
    %s80 = sphi 0, %s64
    %s84 = sphi 0, %s84
    %s86 = sphi 0, %s84
    %s87 = sphi 0, %s86
    %s101 = sphi 0, %s87
    %s105 = sphi 0, %s105
    %s107 = sphi 0, %s105
    %s108 = sphi 0, %s107
    %s122 = sphi 0, %s108
    %s126 = sphi 0, %s126
    %s128 = sphi 0, %s126
    %s129 = sphi 0, %s128
    %s143 = sphi 0, %s129
    %s147 = sphi 0, %s147
    %s149 = sphi 0, %s147
    %s150 = sphi 0, %s149
    %s164 = sphi 0, %s150
    %s168 = sphi 0, %s168
    %s170 = sphi 0, %s168
    %s171 = sphi 0, %s170
    %s185 = sphi 0, %s171
    %s189 = sphi 0, %s189
    %s191 = sphi 0, %s189
    %s192 = sphi 0, %s191
    %s206 = sphi 0, %s192
    %s210 = sphi 0, %s210
    %s212 = sphi 0, %s210
    %s213 = sphi 0, %s212
    %s227 = sphi 0, %s213
    %s231 = sphi 0, %s231
    %s233 = sphi 0, %s231
    %s234 = sphi 0, %s233
    %s248 = sphi 0, %s234
    %s252 = sphi 0, %s252
    %s254 = sphi 0, %s252
    %s255 = sphi 0, %s254
    %s269 = sphi 0, %s255
    %s273 = sphi 0, %s273
    %s275 = sphi 0, %s273
    %s276 = sphi 0, %s275
    %s290 = sphi 0, %s276
    %s294 = sphi 0, %s294
    %s296 = sphi 0, %s294
    %s297 = sphi 0, %s296
    %s311 = sphi 0, %s297
    %s317 = sphi 0, %s319
    %s320 = sphi 0, %s317
    %s321 = sphi 0, %s320
    %s337 = sphi 0, %s321
    %s343 = sphi 0, %s345
    %s346 = sphi 0, %s343
    %s347 = sphi 0, %s346
    %s363 = sphi 0, %s347
    %s369 = sphi 0, %s371
    %s372 = sphi 0, %s369
    %s373 = sphi 0, %s372
    %s389 = sphi 0, %s373
    %s395 = sphi 0, %s397
    %s398 = sphi 0, %s395
    %s399 = sphi 0, %s398
    %s415 = sphi 0, %s399
    %s421 = sphi 0, %s423
    %s424 = sphi 0, %s421
    %s425 = sphi 0, %s424
    %s441 = sphi 0, %s425
  $region4: #{tvae_forward.1} parent=0 // loop_header_branch
    %27 = sbr.rel (%p25) target = $region8
  $region5: #{tvae_forward.1} parent=0 // loop_body
    %s29 = ssub.s32 %s24, 1
    %s30 = ssub.s32 %s24, 2
    %s31 = sadd.s32 %s24, 1
    %s32 = ssub.s32 %s24, %s31
    %p33 = scmp.eq.s32.totalorder %s32, 0
    %s35 = sadd.s32 %s34, 1
    %s36 = scalar_select %p33, %s34, %s35
    %p39 = pneg %p33
    %p40 = scmp.eq.s32.totalorder %s24, 1
    %p41 = por %p39, %p40
    %p42 = scmp.ne.s32.totalorder %s34, %s37
    %p43 = scmp.eq.s32.totalorder %s24, 0
    %p44 = por %p42, %p43
    %p45 = scmp.ne.s32.totalorder %s34, %s37
    %p46 = scmp.eq.s32.totalorder %s29, 1
    %p47 = por %p45, %p46
    %p48 = scmp.ne.s32.totalorder %s37, %s38
    %p49 = scmp.eq.s32.totalorder %s29, 0
    %p50 = por %p48, %p49
    %p51 = scmp.ne.s32.totalorder %s37, %s38
    %p52 = scmp.eq.s32.totalorder %s30, 1
    %p53 = por %p51, %p52
    %p55 = scmp.ne.s32.totalorder %s38, %s54
    %p56 = scmp.eq.s32.totalorder %s30, 0
    %p57 = por %p55, %p56
    %s58 = ssub.s32 %s24, %s31
    %p59 = scmp.eq.s32.totalorder %s58, 0
    %s61 = sadd.s32 %s60, 1
    %s62 = scalar_select %p59, %s60, %s61
    %p65 = pneg %p59
    %p66 = scmp.eq.s32.totalorder %s24, 1
    %p67 = por %p65, %p66
    %p68 = scmp.ne.s32.totalorder %s60, %s63
    %p69 = scmp.eq.s32.totalorder %s24, 0
    %p70 = por %p68, %p69
    %p71 = scmp.ne.s32.totalorder %s60, %s63
    %p72 = scmp.eq.s32.totalorder %s29, 1
    %p73 = por %p71, %p72
    %p74 = scmp.ne.s32.totalorder %s63, %s64
    %p75 = scmp.eq.s32.totalorder %s29, 0
    %p76 = por %p74, %p75
    %p77 = scmp.ne.s32.totalorder %s63, %s64
    %p78 = scmp.eq.s32.totalorder %s30, 1
    %p79 = por %p77, %p78
    %p81 = scmp.ne.s32.totalorder %s64, %s80
    %p82 = scmp.eq.s32.totalorder %s30, 0
    %p83 = por %p81, %p82
    %s85 = sadd.s32 %s84, 1
    %p88 = scmp.eq.s32.totalorder %s24, 1
    %p89 = scmp.ne.s32.totalorder %s84, %s86
    %p90 = scmp.eq.s32.totalorder %s24, 0
    %p91 = por %p89, %p90
    %p92 = scmp.ne.s32.totalorder %s84, %s86
    %p93 = scmp.eq.s32.totalorder %s29, 1
    %p94 = por %p92, %p93
    %p95 = scmp.ne.s32.totalorder %s86, %s87
    %p96 = scmp.eq.s32.totalorder %s29, 0
    %p97 = por %p95, %p96
    %p98 = scmp.ne.s32.totalorder %s86, %s87
    %p99 = scmp.eq.s32.totalorder %s30, 1
    %p100 = por %p98, %p99
    %p102 = scmp.ne.s32.totalorder %s87, %s101
    %p103 = scmp.eq.s32.totalorder %s30, 0
    %p104 = por %p102, %p103
    %s106 = sadd.s32 %s105, 1
    %p109 = scmp.eq.s32.totalorder %s24, 1
    %p110 = scmp.ne.s32.totalorder %s105, %s107
    %p111 = scmp.eq.s32.totalorder %s24, 0
    %p112 = por %p110, %p111
    %p113 = scmp.ne.s32.totalorder %s105, %s107
    %p114 = scmp.eq.s32.totalorder %s29, 1
    %p115 = por %p113, %p114
    %p116 = scmp.ne.s32.totalorder %s107, %s108
    %p117 = scmp.eq.s32.totalorder %s29, 0
    %p118 = por %p116, %p117
    %p119 = scmp.ne.s32.totalorder %s107, %s108
    %p120 = scmp.eq.s32.totalorder %s30, 1
    %p121 = por %p119, %p120
    %p123 = scmp.ne.s32.totalorder %s108, %s122
    %p124 = scmp.eq.s32.totalorder %s30, 0
    %p125 = por %p123, %p124
    %s127 = sadd.s32 %s126, 1
    %p130 = scmp.eq.s32.totalorder %s24, 1
    %p131 = scmp.ne.s32.totalorder %s126, %s128
    %p132 = scmp.eq.s32.totalorder %s24, 0
    %p133 = por %p131, %p132
    %p134 = scmp.ne.s32.totalorder %s126, %s128
    %p135 = scmp.eq.s32.totalorder %s29, 1
    %p136 = por %p134, %p135
    %p137 = scmp.ne.s32.totalorder %s128, %s129
    %p138 = scmp.eq.s32.totalorder %s29, 0
    %p139 = por %p137, %p138
    %p140 = scmp.ne.s32.totalorder %s128, %s129
    %p141 = scmp.eq.s32.totalorder %s30, 1
    %p142 = por %p140, %p141
    %p144 = scmp.ne.s32.totalorder %s129, %s143
    %p145 = scmp.eq.s32.totalorder %s30, 0
    %p146 = por %p144, %p145
    %s148 = sadd.s32 %s147, 1
    %p151 = scmp.eq.s32.totalorder %s24, 1
    %p152 = scmp.ne.s32.totalorder %s147, %s149
    %p153 = scmp.eq.s32.totalorder %s24, 0
    %p154 = por %p152, %p153
    %p155 = scmp.ne.s32.totalorder %s147, %s149
    %p156 = scmp.eq.s32.totalorder %s29, 1
    %p157 = por %p155, %p156
    %p158 = scmp.ne.s32.totalorder %s149, %s150
    %p159 = scmp.eq.s32.totalorder %s29, 0
    %p160 = por %p158, %p159
    %p161 = scmp.ne.s32.totalorder %s149, %s150
    %p162 = scmp.eq.s32.totalorder %s30, 1
    %p163 = por %p161, %p162
    %p165 = scmp.ne.s32.totalorder %s150, %s164
    %p166 = scmp.eq.s32.totalorder %s30, 0
    %p167 = por %p165, %p166
    %s169 = sadd.s32 %s168, 1
    %p172 = scmp.eq.s32.totalorder %s24, 1
    %p173 = scmp.ne.s32.totalorder %s168, %s170
    %p174 = scmp.eq.s32.totalorder %s24, 0
    %p175 = por %p173, %p174
    %p176 = scmp.ne.s32.totalorder %s168, %s170
    %p177 = scmp.eq.s32.totalorder %s29, 1
    %p178 = por %p176, %p177
    %p179 = scmp.ne.s32.totalorder %s170, %s171
    %p180 = scmp.eq.s32.totalorder %s29, 0
    %p181 = por %p179, %p180
    %p182 = scmp.ne.s32.totalorder %s170, %s171
    %p183 = scmp.eq.s32.totalorder %s30, 1
    %p184 = por %p182, %p183
    %p186 = scmp.ne.s32.totalorder %s171, %s185
    %p187 = scmp.eq.s32.totalorder %s30, 0
    %p188 = por %p186, %p187
    %s190 = sadd.s32 %s189, 1
    %p193 = scmp.eq.s32.totalorder %s24, 1
    %p194 = scmp.ne.s32.totalorder %s189, %s191
    %p195 = scmp.eq.s32.totalorder %s24, 0
    %p196 = por %p194, %p195
    %p197 = scmp.ne.s32.totalorder %s189, %s191
    %p198 = scmp.eq.s32.totalorder %s29, 1
    %p199 = por %p197, %p198
    %p200 = scmp.ne.s32.totalorder %s191, %s192
    %p201 = scmp.eq.s32.totalorder %s29, 0
    %p202 = por %p200, %p201
    %p203 = scmp.ne.s32.totalorder %s191, %s192
    %p204 = scmp.eq.s32.totalorder %s30, 1
    %p205 = por %p203, %p204
    %p207 = scmp.ne.s32.totalorder %s192, %s206
    %p208 = scmp.eq.s32.totalorder %s30, 0
    %p209 = por %p207, %p208
    %s211 = sadd.s32 %s210, 1
    %p214 = scmp.eq.s32.totalorder %s24, 1
    %p215 = scmp.ne.s32.totalorder %s210, %s212
    %p216 = scmp.eq.s32.totalorder %s24, 0
    %p217 = por %p215, %p216
    %p218 = scmp.ne.s32.totalorder %s210, %s212
    %p219 = scmp.eq.s32.totalorder %s29, 1
    %p220 = por %p218, %p219
    %p221 = scmp.ne.s32.totalorder %s212, %s213
    %p222 = scmp.eq.s32.totalorder %s29, 0
    %p223 = por %p221, %p222
    %p224 = scmp.ne.s32.totalorder %s212, %s213
    %p225 = scmp.eq.s32.totalorder %s30, 1
    %p226 = por %p224, %p225
    %p228 = scmp.ne.s32.totalorder %s213, %s227
    %p229 = scmp.eq.s32.totalorder %s30, 0
    %p230 = por %p228, %p229
    %s232 = sadd.s32 %s231, 1
    %p235 = scmp.eq.s32.totalorder %s24, 1
    %p236 = scmp.ne.s32.totalorder %s231, %s233
    %p237 = scmp.eq.s32.totalorder %s24, 0
    %p238 = por %p236, %p237
    %p239 = scmp.ne.s32.totalorder %s231, %s233
    %p240 = scmp.eq.s32.totalorder %s29, 1
    %p241 = por %p239, %p240
    %p242 = scmp.ne.s32.totalorder %s233, %s234
    %p243 = scmp.eq.s32.totalorder %s29, 0
    %p244 = por %p242, %p243
    %p245 = scmp.ne.s32.totalorder %s233, %s234
    %p246 = scmp.eq.s32.totalorder %s30, 1
    %p247 = por %p245, %p246
    %p249 = scmp.ne.s32.totalorder %s234, %s248
    %p250 = scmp.eq.s32.totalorder %s30, 0
    %p251 = por %p249, %p250
    %s253 = sadd.s32 %s252, 1
    %p256 = scmp.eq.s32.totalorder %s24, 1
    %p257 = scmp.ne.s32.totalorder %s252, %s254
    %p258 = scmp.eq.s32.totalorder %s24, 0
    %p259 = por %p257, %p258
    %p260 = scmp.ne.s32.totalorder %s252, %s254
    %p261 = scmp.eq.s32.totalorder %s29, 1
    %p262 = por %p260, %p261
    %p263 = scmp.ne.s32.totalorder %s254, %s255
    %p264 = scmp.eq.s32.totalorder %s29, 0
    %p265 = por %p263, %p264
    %p266 = scmp.ne.s32.totalorder %s254, %s255
    %p267 = scmp.eq.s32.totalorder %s30, 1
    %p268 = por %p266, %p267
    %p270 = scmp.ne.s32.totalorder %s255, %s269
    %p271 = scmp.eq.s32.totalorder %s30, 0
    %p272 = por %p270, %p271
    %s274 = sadd.s32 %s273, 1
    %p277 = scmp.eq.s32.totalorder %s24, 1
    %p278 = scmp.ne.s32.totalorder %s273, %s275
    %p279 = scmp.eq.s32.totalorder %s24, 0
    %p280 = por %p278, %p279
    %p281 = scmp.ne.s32.totalorder %s273, %s275
    %p282 = scmp.eq.s32.totalorder %s29, 1
    %p283 = por %p281, %p282
    %p284 = scmp.ne.s32.totalorder %s275, %s276
    %p285 = scmp.eq.s32.totalorder %s29, 0
    %p286 = por %p284, %p285
    %p287 = scmp.ne.s32.totalorder %s275, %s276
    %p288 = scmp.eq.s32.totalorder %s30, 1
    %p289 = por %p287, %p288
    %p291 = scmp.ne.s32.totalorder %s276, %s290
    %p292 = scmp.eq.s32.totalorder %s30, 0
    %p293 = por %p291, %p292
    %s295 = sadd.s32 %s294, 1
    %p298 = scmp.eq.s32.totalorder %s24, 1
    %p299 = scmp.ne.s32.totalorder %s294, %s296
    %p300 = scmp.eq.s32.totalorder %s24, 0
    %p301 = por %p299, %p300
    %p302 = scmp.ne.s32.totalorder %s294, %s296
    %p303 = scmp.eq.s32.totalorder %s29, 1
    %p304 = por %p302, %p303
    %p305 = scmp.ne.s32.totalorder %s296, %s297
    %p306 = scmp.eq.s32.totalorder %s29, 0
    %p307 = por %p305, %p306
    %p308 = scmp.ne.s32.totalorder %s296, %s297
    %p309 = scmp.eq.s32.totalorder %s30, 1
    %p310 = por %p308, %p309
    %p312 = scmp.ne.s32.totalorder %s297, %s311
    %p313 = scmp.eq.s32.totalorder %s30, 0
    %p314 = por %p312, %p313
    %s315 = ssub.s32 %s24, %s31
    %p316 = scmp.eq.s32.totalorder %s315, 0
    %s318 = sadd.s32 %s317, 1
    %s319 = scalar_select %p316, %s317, %s318
    %p322 = pneg %p316
    %p323 = scmp.eq.s32.totalorder %s24, 1
    %p324 = por %p322, %p323
    %p325 = scmp.ne.s32.totalorder %s317, %s320
    %p326 = scmp.eq.s32.totalorder %s24, 0
    %p327 = por %p325, %p326
    %p328 = scmp.ne.s32.totalorder %s317, %s320
    %p329 = scmp.eq.s32.totalorder %s29, 1
    %p330 = por %p328, %p329
    %p331 = scmp.ne.s32.totalorder %s320, %s321
    %p332 = scmp.eq.s32.totalorder %s29, 0
    %p333 = por %p331, %p332
    %p334 = scmp.ne.s32.totalorder %s320, %s321
    %p335 = scmp.eq.s32.totalorder %s30, 1
    %p336 = por %p334, %p335
    %p338 = scmp.ne.s32.totalorder %s321, %s337
    %p339 = scmp.eq.s32.totalorder %s30, 0
    %p340 = por %p338, %p339
    %s341 = ssub.s32 %s24, %s31
    %p342 = scmp.eq.s32.totalorder %s341, 0
    %s344 = sadd.s32 %s343, 1
    %s345 = scalar_select %p342, %s343, %s344
    %p348 = pneg %p342
    %p349 = scmp.eq.s32.totalorder %s24, 1
    %p350 = por %p348, %p349
    %p351 = scmp.ne.s32.totalorder %s343, %s346
    %p352 = scmp.eq.s32.totalorder %s24, 0
    %p353 = por %p351, %p352
    %p354 = scmp.ne.s32.totalorder %s343, %s346
    %p355 = scmp.eq.s32.totalorder %s29, 1
    %p356 = por %p354, %p355
    %p357 = scmp.ne.s32.totalorder %s346, %s347
    %p358 = scmp.eq.s32.totalorder %s29, 0
    %p359 = por %p357, %p358
    %p360 = scmp.ne.s32.totalorder %s346, %s347
    %p361 = scmp.eq.s32.totalorder %s30, 1
    %p362 = por %p360, %p361
    %p364 = scmp.ne.s32.totalorder %s347, %s363
    %p365 = scmp.eq.s32.totalorder %s30, 0
    %p366 = por %p364, %p365
    %s367 = ssub.s32 %s24, %s31
    %p368 = scmp.eq.s32.totalorder %s367, 0
    %s370 = sadd.s32 %s369, 1
    %s371 = scalar_select %p368, %s369, %s370
    %p374 = pneg %p368
    %p375 = scmp.eq.s32.totalorder %s24, 1
    %p376 = por %p374, %p375
    %p377 = scmp.ne.s32.totalorder %s369, %s372
    %p378 = scmp.eq.s32.totalorder %s24, 0
    %p379 = por %p377, %p378
    %p380 = scmp.ne.s32.totalorder %s369, %s372
    %p381 = scmp.eq.s32.totalorder %s29, 1
    %p382 = por %p380, %p381
    %p383 = scmp.ne.s32.totalorder %s372, %s373
    %p384 = scmp.eq.s32.totalorder %s29, 0
    %p385 = por %p383, %p384
    %p386 = scmp.ne.s32.totalorder %s372, %s373
    %p387 = scmp.eq.s32.totalorder %s30, 1
    %p388 = por %p386, %p387
    %p390 = scmp.ne.s32.totalorder %s373, %s389
    %p391 = scmp.eq.s32.totalorder %s30, 0
    %p392 = por %p390, %p391
    %s393 = ssub.s32 %s24, %s31
    %p394 = scmp.eq.s32.totalorder %s393, 0
    %s396 = sadd.s32 %s395, 1
    %s397 = scalar_select %p394, %s395, %s396
    %p400 = pneg %p394
    %p401 = scmp.eq.s32.totalorder %s24, 1
    %p402 = por %p400, %p401
    %p403 = scmp.ne.s32.totalorder %s395, %s398
    %p404 = scmp.eq.s32.totalorder %s24, 0
    %p405 = por %p403, %p404
    %p406 = scmp.ne.s32.totalorder %s395, %s398
    %p407 = scmp.eq.s32.totalorder %s29, 1
    %p408 = por %p406, %p407
    %p409 = scmp.ne.s32.totalorder %s398, %s399
    %p410 = scmp.eq.s32.totalorder %s29, 0
    %p411 = por %p409, %p410
    %p412 = scmp.ne.s32.totalorder %s398, %s399
    %p413 = scmp.eq.s32.totalorder %s30, 1
    %p414 = por %p412, %p413
    %p416 = scmp.ne.s32.totalorder %s399, %s415
    %p417 = scmp.eq.s32.totalorder %s30, 0
    %p418 = por %p416, %p417
    %s419 = ssub.s32 %s24, %s31
    %p420 = scmp.eq.s32.totalorder %s419, 0
    %s422 = sadd.s32 %s421, 1
    %s423 = scalar_select %p420, %s421, %s422
    %p426 = pneg %p420
    %p427 = scmp.eq.s32.totalorder %s24, 1
    %p428 = por %p426, %p427
    %p429 = scmp.ne.s32.totalorder %s421, %s424
    %p430 = scmp.eq.s32.totalorder %s24, 0
    %p431 = por %p429, %p430
    %p432 = scmp.ne.s32.totalorder %s421, %s424
    %p433 = scmp.eq.s32.totalorder %s29, 1
    %p434 = por %p432, %p433
    %p435 = scmp.ne.s32.totalorder %s424, %s425
    %p436 = scmp.eq.s32.totalorder %s29, 0
    %p437 = por %p435, %p436
    %p438 = scmp.ne.s32.totalorder %s424, %s425
    %p439 = scmp.eq.s32.totalorder %s30, 1
    %p440 = por %p438, %p439
    %p442 = scmp.ne.s32.totalorder %s425, %s441
    %p443 = scmp.eq.s32.totalorder %s30, 0
    %p444 = por %p442, %p443
    %p445 = scmp.le.s32.totalorder 1, %s24
    %p446 = scmp.lt.s32.totalorder %s24, 3
    %p447 = pnand %p445, %p446
    %p448 = pneg %p447
    // Predicated region
    $region9: #{tvae_forward.1} parent=5 // pred_check
      _
    $region10: #{tvae_forward.1} parent=5 // pred_check_branch
      %450 = sbr.rel (%p447) target = $region12
    $region11: #{tvae_forward.1} parent=5 // pred_region
      %s451 = ssub.s32 %s24, 1
      // Predicated region
      $region13: #{tvae_forward.1} parent=11 // pred_check
        %p452 = pneg %p97
      $region14: #{tvae_forward.1} parent=11 // pred_check_branch
        %454 = sbr.rel (%p452) target = $region16
      $region15: #{tvae_forward.1} parent=11 // pred_region
        _
      $region16: #{tvae_forward.1} parent=11 // pred_fallthru
        _
      // Predicated region
      $region17: #{tvae_forward.1} parent=11 // pred_check
        %p455 = pneg %p118
      $region18: #{tvae_forward.1} parent=11 // pred_check_branch
        %457 = sbr.rel (%p455) target = $region20
      $region19: #{tvae_forward.1} parent=11 // pred_region
        _
      $region20: #{tvae_forward.1} parent=11 // pred_fallthru
        _
      // Predicated region
      $region21: #{tvae_forward.1} parent=11 // pred_check
        %p458 = pneg %p139
      $region22: #{tvae_forward.1} parent=11 // pred_check_branch
        %460 = sbr.rel (%p458) target = $region24
      $region23: #{tvae_forward.1} parent=11 // pred_region
        _
      $region24: #{tvae_forward.1} parent=11 // pred_fallthru
        _
      // Predicated region
      $region25: #{tvae_forward.1} parent=11 // pred_check
        %p461 = pneg %p160
      $region26: #{tvae_forward.1} parent=11 // pred_check_branch
        %463 = sbr.rel (%p461) target = $region28
      $region27: #{tvae_forward.1} parent=11 // pred_region
        _
      $region28: #{tvae_forward.1} parent=11 // pred_fallthru
        _
      // Predicated region
      $region29: #{tvae_forward.1} parent=11 // pred_check
        %p464 = pneg %p181
      $region30: #{tvae_forward.1} parent=11 // pred_check_branch
        %466 = sbr.rel (%p464) target = $region32
      $region31: #{tvae_forward.1} parent=11 // pred_region
        _
      $region32: #{tvae_forward.1} parent=11 // pred_fallthru
        _
      // Predicated region
      $region33: #{tvae_forward.1} parent=11 // pred_check
        %p467 = pneg %p202
      $region34: #{tvae_forward.1} parent=11 // pred_check_branch
        %469 = sbr.rel (%p467) target = $region36
      $region35: #{tvae_forward.1} parent=11 // pred_region
        _
      $region36: #{tvae_forward.1} parent=11 // pred_fallthru
        _
      // Predicated region
      $region37: #{tvae_forward.1} parent=11 // pred_check
        %p470 = pneg %p223
      $region38: #{tvae_forward.1} parent=11 // pred_check_branch
        %472 = sbr.rel (%p470) target = $region40
      $region39: #{tvae_forward.1} parent=11 // pred_region
        _
      $region40: #{tvae_forward.1} parent=11 // pred_fallthru
        _
      // Predicated region
      $region41: #{tvae_forward.1} parent=11 // pred_check
        %p473 = pneg %p244
      $region42: #{tvae_forward.1} parent=11 // pred_check_branch
        %475 = sbr.rel (%p473) target = $region44
      $region43: #{tvae_forward.1} parent=11 // pred_region
        _
      $region44: #{tvae_forward.1} parent=11 // pred_fallthru
        _
      // Predicated region
      $region45: #{tvae_forward.1} parent=11 // pred_check
        %p476 = pneg %p265
      $region46: #{tvae_forward.1} parent=11 // pred_check_branch
        %478 = sbr.rel (%p476) target = $region48
      $region47: #{tvae_forward.1} parent=11 // pred_region
        _
      $region48: #{tvae_forward.1} parent=11 // pred_fallthru
        _
      // Predicated region
      $region49: #{tvae_forward.1} parent=11 // pred_check
        %p479 = pneg %p286
      $region50: #{tvae_forward.1} parent=11 // pred_check_branch
        %481 = sbr.rel (%p479) target = $region52
      $region51: #{tvae_forward.1} parent=11 // pred_region
        _
      $region52: #{tvae_forward.1} parent=11 // pred_fallthru
        _
      // Predicated region
      $region53: #{tvae_forward.1} parent=11 // pred_check
        %p482 = pneg %p307
      $region54: #{tvae_forward.1} parent=11 // pred_check_branch
        %484 = sbr.rel (%p482) target = $region56
      $region55: #{tvae_forward.1} parent=11 // pred_region
        _
      $region56: #{tvae_forward.1} parent=11 // pred_fallthru
        _
    $region12: #{tvae_forward.1} parent=5 // pred_fallthru
      _
    %p485 = scmp.lt.s32.totalorder %s24, 2
    // Predicated region
    $region57: #{tvae_forward.1} parent=5 // pred_check
      %p486 = pneg %p485
    $region58: #{tvae_forward.1} parent=5 // pred_check_branch
      %488 = sbr.rel (%p486) target = $region60
    $region59: #{tvae_forward.1} parent=5 // pred_region
      // Predicated region
      $region61: #{tvae_forward.1} parent=59 // pred_check
        %p489 = pneg %p44
      $region62: #{tvae_forward.1} parent=59 // pred_check_branch
        %491 = sbr.rel (%p489) target = $region64
      $region63: #{tvae_forward.1} parent=59 // pred_region
        %s492 = smul.u32 16, %s24
        %p493 = scmp.lt.s32.totalorder %s492, 31
        %s494 = scalar_select %p493, %s492, 31
        %s495 = smul.addr %s494, 2
        %s496 = smul.addr %s495, 8
        %s497 = scalar_lea.vmem %s0, %s496
        %s498 = smul.u32 16, %s24
      $region64: #{tvae_forward.1} parent=59 // pred_fallthru
        _
      // Predicated region
      $region65: #{tvae_forward.1} parent=59 // pred_check
        %p499 = pneg %p70
      $region66: #{tvae_forward.1} parent=59 // pred_check_branch
        %501 = sbr.rel (%p499) target = $region68
      $region67: #{tvae_forward.1} parent=59 // pred_region
        %s502 = smul.u32 16, %s24
        %p503 = scmp.lt.s32.totalorder %s502, 31
        %s504 = scalar_select %p503, %s502, 31
        %s505 = smul.addr %s504, 8
        %s506 = scalar_lea.vmem %s1, %s505
        %s507 = smul.u32 16, %s24
      $region68: #{tvae_forward.1} parent=59 // pred_fallthru
        _
    $region60: #{tvae_forward.1} parent=5 // pred_fallthru
      _
    %p508 = scmp.le.s32.totalorder 1, %s24
    %p509 = scmp.lt.s32.totalorder %s24, 3
    %p510 = pnand %p508, %p509
    %p511 = pneg %p510
    // Predicated region
    $region69: #{tvae_forward.1} parent=5 // pred_check
      _
    $region70: #{tvae_forward.1} parent=5 // pred_check_branch
      %513 = sbr.rel (%p510) target = $region72
    $region71: #{tvae_forward.1} parent=5 // pred_region
      %s514 = ssub.s32 %s24, 1
      %s515 = smul.u32 16, %s29
      %p516 = scmp.lt.s32.totalorder %s515, 31
      %s517 = scalar_select %p516, %s515, 31
      %s518 = smul.addr %s517, 2
      %s519 = smul.addr %s518, 8
      %s520 = scalar_lea.vmem %s0, %s519
      %p521 = pneg %p50
      %p522 = pneg %p47
      %s523 = smul.u32 16, %s29
      %p524 = scmp.lt.s32.totalorder %s523, 31
      %s525 = scalar_select %p524, %s523, 31
      %s526 = smul.addr %s525, 8
      %s527 = scalar_lea.vmem %s1, %s526
      %p528 = pneg %p76
      %p529 = pneg %p73
      %p530 = pneg %p97
      %p531 = pneg %p94
      %p532 = pneg %p118
      %p533 = pneg %p115
      %p534 = pneg %p139
      %p535 = pneg %p136
      %p536 = pneg %p160
      %p537 = pneg %p157
      %p538 = pneg %p181
      %p539 = pneg %p178
      %p540 = pneg %p202
      %p541 = pneg %p199
      %p542 = pneg %p223
      %p543 = pneg %p220
      %p544 = pneg %p244
      %p545 = pneg %p241
      %p546 = pneg %p265
      %p547 = pneg %p262
      %p548 = pneg %p286
      %p549 = pneg %p283
      %p550 = pneg %p307
      %p551 = pneg %p304
      %p552 = pneg %p333
      %p553 = pneg %p330
      %s554 = smul.u32 16, %s29
      %p555 = scmp.lt.s32.totalorder %s554, 31
      %s556 = scalar_select %p555, %s554, 31
      %s557 = smul.addr %s556, 8
      %s558 = scalar_lea.vmem %s13, %s557
      %p559 = pneg %p359
      %p560 = pneg %p356
      %s561 = smul.u32 16, %s29
      %p562 = scmp.lt.s32.totalorder %s561, 31
      %s563 = scalar_select %p562, %s561, 31
      %s564 = smul.addr %s563, 8
      %s565 = scalar_lea.vmem %s14, %s564
      %p566 = pneg %p385
      %p567 = pneg %p382
      %s568 = smul.u32 16, %s29
      %p569 = scmp.lt.s32.totalorder %s568, 31
      %s570 = scalar_select %p569, %s568, 31
      %s571 = smul.addr %s570, 8
      %s572 = scalar_lea.vmem %s15, %s571
      %p573 = pneg %p411
      %p574 = pneg %p408
      %s575 = smul.u32 16, %s29
      %p576 = scmp.lt.s32.totalorder %s575, 31
      %s577 = scalar_select %p576, %s575, 31
      %s578 = smul.addr %s577, 2
      %s579 = smul.addr %s578, 8
      %s580 = scalar_lea.vmem %s16, %s579
      %p581 = pneg %p437
      %p582 = pneg %p434
      %s583 = smul.u32 16, %s29
      %p584 = scmp.lt.s32.totalorder %s583, 31
      %s585 = scalar_select %p584, %s583, 31
      %s586 = smul.addr %s585, 2
      %s587 = smul.addr %s586, 8
      %s588 = scalar_lea.vmem %s17, %s587
      %s589 = smul.u32 16, %s29
      %p590 = scmp.lt.s32.totalorder %s589, 31
      %s591 = scalar_select %p590, %s589, 31
      %s592 = smul.addr %s591, 2
      %s593 = smul.addr %s592, 8
      %s594 = scalar_lea.vmem %s0, %s593
      %s595 = smul.u32 16, %s29
      %s596 = smul.u32 16, %s29
      %p597 = scmp.lt.s32.totalorder %s596, 31
      %s598 = scalar_select %p597, %s596, 31
      %s599 = smul.addr %s598, 8
      %s600 = scalar_lea.vmem %s1, %s599
      %s601 = smul.u32 16, %s29
      %s602 = smul.u32 16, %s29
      %p603 = scmp.lt.s32.totalorder %s602, 31
      %s604 = scalar_select %p603, %s602, 31
      %s605 = smul.addr %s604, 8
      %s606 = scalar_lea.vmem %s13, %s605
      %s607 = smul.u32 16, %s29
      %s608 = smul.u32 16, %s29
      %p609 = scmp.lt.s32.totalorder %s608, 31
      %s610 = scalar_select %p609, %s608, 31
      %s611 = smul.addr %s610, 8
      %s612 = scalar_lea.vmem %s14, %s611
      %s613 = smul.u32 16, %s29
      %s614 = smul.u32 16, %s29
      %p615 = scmp.lt.s32.totalorder %s614, 31
      %s616 = scalar_select %p615, %s614, 31
      %s617 = smul.addr %s616, 8
      %s618 = scalar_lea.vmem %s15, %s617
      %s619 = smul.u32 16, %s29
      %s620 = smul.u32 16, %s29
      %p621 = scmp.lt.s32.totalorder %s620, 31
      %s622 = scalar_select %p621, %s620, 31
      %s623 = smul.addr %s622, 2
      %s624 = smul.addr %s623, 8
      %s625 = scalar_lea.vmem %s16, %s624
      %s626 = smul.u32 16, %s29
      %s627 = smul.u32 16, %s29
      %p628 = scmp.lt.s32.totalorder %s627, 31
      %s629 = scalar_select %p628, %s627, 31
      %s630 = smul.addr %s629, 2
      %s631 = smul.addr %s630, 8
      %s632 = scalar_lea.vmem %s17, %s631
      %s633 = smul.u32 16, %s29
      %v635 = vld [vmem:[%s594] sm:$0xff]
      %v636 = vld [vmem:[%s594 + $0x8] sm:$0xff]
      %v637 = vld [vmem:[%s594 + $0x10] sm:$0xff]
      %v638 = vld [vmem:[%s594 + $0x18] sm:$0xff]
      %v639 = vld [vmem:[%s594 + $0x20] sm:$0xff]
      %v640 = vld [vmem:[%s594 + $0x28] sm:$0xff]
      %v641 = vld [vmem:[%s594 + $0x30] sm:$0xff]
      %v642 = vld [vmem:[%s594 + $0x38] sm:$0xff]
      %v643 = vld [vmem:[%s594 + $0x40] sm:$0xff]
      %v644 = vld [vmem:[%s594 + $0x48] sm:$0xff]
      %v645 = vld [vmem:[%s594 + $0x50] sm:$0xff]
      %v646 = vld [vmem:[%s594 + $0x58] sm:$0xff]
      %v647 = vld [vmem:[%s594 + $0x60] sm:$0xff]
      %v648 = vld [vmem:[%s594 + $0x68] sm:$0xff]
      %v649 = vld [vmem:[%s594 + $0x70] sm:$0xff]
      %v650 = vld [vmem:[%s594 + $0x78] sm:$0xff]
      %v651 = vld [vmem:[%s594 + $0x80] sm:$0xff]
      %v652 = vld [vmem:[%s594 + $0x88] sm:$0xff]
      %v653 = vld [vmem:[%s594 + $0x90] sm:$0xff]
      %v654 = vld [vmem:[%s594 + $0x98] sm:$0xff]
      %v655 = vld [vmem:[%s594 + $0xa0] sm:$0xff]
      %v656 = vld [vmem:[%s594 + $0xa8] sm:$0xff]
      %v657 = vld [vmem:[%s594 + $0xb0] sm:$0xff]
      %v658 = vld [vmem:[%s594 + $0xb8] sm:$0xff]
      %v659 = vld [vmem:[%s594 + $0xc0] sm:$0xff]
      %v660 = vld [vmem:[%s594 + $0xc8] sm:$0xff]
      %v661 = vld [vmem:[%s594 + $0xd0] sm:$0xff]
      %v662 = vld [vmem:[%s594 + $0xd8] sm:$0xff]
      %v663 = vld [vmem:[%s594 + $0xe0] sm:$0xff]
      %v664 = vld [vmem:[%s594 + $0xe8] sm:$0xff]
      %v665 = vld [vmem:[%s594 + $0xf0] sm:$0xff]
      %v666 = vld [vmem:[%s594 + $0xf8] sm:$0xff]
      %v667 = vpack.c.bf16 %v637, %v635
      %v668 = vpack.c.bf16 %v638, %v636
      %v669 = vpack.c.bf16 %v641, %v639
      %v670 = vpack.c.bf16 %v642, %v640
      %v671 = vpack.c.bf16 %v645, %v643
      %v672 = vpack.c.bf16 %v646, %v644
      %v673 = vpack.c.bf16 %v649, %v647
      %v674 = vpack.c.bf16 %v650, %v648
      %v675 = vpack.c.bf16 %v653, %v651
      %v676 = vpack.c.bf16 %v654, %v652
      %v677 = vpack.c.bf16 %v657, %v655
      %v678 = vpack.c.bf16 %v658, %v656
      %v679 = vpack.c.bf16 %v661, %v659
      %v680 = vpack.c.bf16 %v662, %v660
      %v681 = vpack.c.bf16 %v665, %v663
      %v682 = vpack.c.bf16 %v666, %v664
      %v683 = vld [vmem:[%s2] sm:$0xff]
      %v684 = vld [vmem:[%s2 + $0x8] sm:$0xff]
      %v685 = vld [vmem:[%s2 + $0x10] sm:$0xff]
      %v686 = vld [vmem:[%s2 + $0x18] sm:$0xff]
      %v687 = vld [vmem:[%s2 + $0x20] sm:$0xff]
      %v688 = vld [vmem:[%s2 + $0x28] sm:$0xff]
      %v689 = vld [vmem:[%s2 + $0x30] sm:$0xff]
      %v690 = vld [vmem:[%s2 + $0x38] sm:$0xff]
      %v691 = vld [vmem:[%s2 + $0x40] sm:$0xff]
      %v692 = vld [vmem:[%s2 + $0x48] sm:$0xff]
      %v693 = vld [vmem:[%s2 + $0x50] sm:$0xff]
      %v694 = vld [vmem:[%s2 + $0x58] sm:$0xff]
      %v695 = vld [vmem:[%s2 + $0x60] sm:$0xff]
      %v696 = vld [vmem:[%s2 + $0x68] sm:$0xff]
      %v697 = vld [vmem:[%s2 + $0x70] sm:$0xff]
      %v698 = vld [vmem:[%s2 + $0x78] sm:$0xff]
      %v699 = vld [vmem:[%s2 + $0x80] sm:$0xff]
      %v700 = vld [vmem:[%s2 + $0x88] sm:$0xff]
      %v701 = vld [vmem:[%s2 + $0x90] sm:$0xff]
      %v702 = vld [vmem:[%s2 + $0x98] sm:$0xff]
      %v703 = vld [vmem:[%s2 + $0xa0] sm:$0xff]
      %v704 = vld [vmem:[%s2 + $0xa8] sm:$0xff]
      %v705 = vld [vmem:[%s2 + $0xb0] sm:$0xff]
      %v706 = vld [vmem:[%s2 + $0xb8] sm:$0xff]
      %v707 = vld [vmem:[%s2 + $0xc0] sm:$0xff]
      %v708 = vld [vmem:[%s2 + $0xc8] sm:$0xff]
      %v709 = vld [vmem:[%s2 + $0xd0] sm:$0xff]
      %v710 = vld [vmem:[%s2 + $0xd8] sm:$0xff]
      %v711 = vld [vmem:[%s2 + $0xe0] sm:$0xff]
      %v712 = vld [vmem:[%s2 + $0xe8] sm:$0xff]
      %v713 = vld [vmem:[%s2 + $0xf0] sm:$0xff]
      %v714 = vld [vmem:[%s2 + $0xf8] sm:$0xff]
      %v715 = vld [vmem:[%s3] sm:$0x3]
      %v717 = vperm.slane %v715, 0
      %v718 = vperm.slane %v715, 1
      %v753 = vunpack.c.l.b16 %v683
      %v754 = vunpack.c.h.b16 %v683
      %v755 = vunpack.c.l.b16 %v684
      %v756 = vunpack.c.h.b16 %v684
      %v757 = vunpack.c.l.b16 %v685
      %v758 = vunpack.c.h.b16 %v685
      %v759 = vunpack.c.l.b16 %v686
      %v760 = vunpack.c.h.b16 %v686
      %v761 = vunpack.c.l.b16 %v687
      %v762 = vunpack.c.h.b16 %v687
      %v763 = vunpack.c.l.b16 %v688
      %v764 = vunpack.c.h.b16 %v688
      %v765 = vunpack.c.l.b16 %v689
      %v766 = vunpack.c.h.b16 %v689
      %v767 = vunpack.c.l.b16 %v690
      %v768 = vunpack.c.h.b16 %v690
      %v769 = vunpack.c.l.b16 %v691
      %v770 = vunpack.c.h.b16 %v691
      %v771 = vunpack.c.l.b16 %v692
      %v772 = vunpack.c.h.b16 %v692
      %v773 = vunpack.c.l.b16 %v693
      %v774 = vunpack.c.h.b16 %v693
      %v775 = vunpack.c.l.b16 %v694
      %v776 = vunpack.c.h.b16 %v694
      %v777 = vunpack.c.l.b16 %v695
      %v778 = vunpack.c.h.b16 %v695
      %v779 = vunpack.c.l.b16 %v696
      %v780 = vunpack.c.h.b16 %v696
      %v781 = vunpack.c.l.b16 %v697
      %v782 = vunpack.c.h.b16 %v697
      %v783 = vunpack.c.l.b16 %v698
      %v784 = vunpack.c.h.b16 %v698
      %v785 = vunpack.c.l.b16 %v699
      %v786 = vunpack.c.h.b16 %v699
      %v787 = vunpack.c.l.b16 %v700
      %v788 = vunpack.c.h.b16 %v700
      %v789 = vunpack.c.l.b16 %v701
      %v790 = vunpack.c.h.b16 %v701
      %v791 = vunpack.c.l.b16 %v702
      %v792 = vunpack.c.h.b16 %v702
      %v793 = vunpack.c.l.b16 %v703
      %v794 = vunpack.c.h.b16 %v703
      %v795 = vunpack.c.l.b16 %v704
      %v796 = vunpack.c.h.b16 %v704
      %v797 = vunpack.c.l.b16 %v705
      %v798 = vunpack.c.h.b16 %v705
      %v799 = vunpack.c.l.b16 %v706
      %v800 = vunpack.c.h.b16 %v706
      %v801 = vunpack.c.l.b16 %v707
      %v802 = vunpack.c.h.b16 %v707
      %v803 = vunpack.c.l.b16 %v708
      %v804 = vunpack.c.h.b16 %v708
      %v805 = vunpack.c.l.b16 %v709
      %v806 = vunpack.c.h.b16 %v709
      %v807 = vunpack.c.l.b16 %v710
      %v808 = vunpack.c.h.b16 %v710
      %v809 = vunpack.c.l.b16 %v711
      %v810 = vunpack.c.h.b16 %v711
      %v811 = vunpack.c.l.b16 %v712
      %v812 = vunpack.c.h.b16 %v712
      %v813 = vunpack.c.l.b16 %v713
      %v814 = vunpack.c.h.b16 %v713
      %v815 = vunpack.c.l.b16 %v714
      %v816 = vunpack.c.h.b16 %v714
      %v817 = vpack.c.b16 %v755, %v753
      %v818 = vpack.c.b16 %v756, %v754
      %v819 = vpack.c.b16 %v759, %v757
      %v820 = vpack.c.b16 %v760, %v758
      %v821 = vpack.c.b16 %v763, %v761
      %v822 = vpack.c.b16 %v764, %v762
      %v823 = vpack.c.b16 %v767, %v765
      %v824 = vpack.c.b16 %v768, %v766
      %v825 = vpack.c.b16 %v771, %v769
      %v826 = vpack.c.b16 %v772, %v770
      %v827 = vpack.c.b16 %v775, %v773
      %v828 = vpack.c.b16 %v776, %v774
      %v829 = vpack.c.b16 %v779, %v777
      %v830 = vpack.c.b16 %v780, %v778
      %v831 = vpack.c.b16 %v783, %v781
      %v832 = vpack.c.b16 %v784, %v782
      %v833 = vpack.c.b16 %v787, %v785
      %v834 = vpack.c.b16 %v788, %v786
      %v835 = vpack.c.b16 %v791, %v789
      %v836 = vpack.c.b16 %v792, %v790
      %v837 = vpack.c.b16 %v795, %v793
      %v838 = vpack.c.b16 %v796, %v794
      %v839 = vpack.c.b16 %v799, %v797
      %v840 = vpack.c.b16 %v800, %v798
      %v841 = vpack.c.b16 %v803, %v801
      %v842 = vpack.c.b16 %v804, %v802
      %v843 = vpack.c.b16 %v807, %v805
      %v844 = vpack.c.b16 %v808, %v806
      %v845 = vpack.c.b16 %v811, %v809
      %v846 = vpack.c.b16 %v812, %v810
      %v847 = vpack.c.b16 %v815, %v813
      %v848 = vpack.c.b16 %v816, %v814
      %881 = vmatpush.bf16.msra.mxu0 %v831
      %882 = vmatpush.bf16.msra.mxu0 %v829
      %883 = vmatpush.bf16.msra.mxu0 %v827
      %884 = vmatpush.bf16.msra.mxu0 %v825
      %885 = vmatpush.bf16.msra.mxu0 %v823
      %886 = vmatpush.bf16.msra.mxu0 %v821
      %887 = vmatpush.bf16.msra.mxu0 %v819
      %888 = vmatpush.bf16.msra.mxu0 %v817
      %889 = vmatmul.bf16.gmra.mxu0 %v667
      %v890 = vpop.f32.mrf.mxu0
      %v891 = vadd.f32 %v717, %v890
      %v892 = vpop.f32.mrf.mxu0
      %v893 = vadd.f32 %v717, %v892
      %894 = vmatmul.bf16.gmra.mxu0 %v669
      %v895 = vpop.f32.mrf.mxu0
      %v896 = vadd.f32 %v717, %v895
      %v897 = vpop.f32.mrf.mxu0
      %v898 = vadd.f32 %v717, %v897
      %899 = vmatmul.bf16.gmra.mxu0 %v671
      %v900 = vpop.f32.mrf.mxu0
      %v901 = vadd.f32 %v717, %v900
      %v902 = vpop.f32.mrf.mxu0
      %v903 = vadd.f32 %v717, %v902
      %904 = vmatmul.bf16.gmra.mxu0 %v673
      %v905 = vpop.f32.mrf.mxu0
      %v906 = vadd.f32 %v717, %v905
      %v907 = vpop.f32.mrf.mxu0
      %v908 = vadd.f32 %v717, %v907
      %909 = vmatmul.bf16.gmra.mxu0 %v675
      %v910 = vpop.f32.mrf.mxu0
      %v911 = vadd.f32 %v717, %v910
      %v912 = vpop.f32.mrf.mxu0
      %v913 = vadd.f32 %v717, %v912
      %914 = vmatmul.bf16.gmra.mxu0 %v677
      %v915 = vpop.f32.mrf.mxu0
      %v916 = vadd.f32 %v717, %v915
      %v917 = vpop.f32.mrf.mxu0
      %v918 = vadd.f32 %v717, %v917
      %919 = vmatmul.bf16.gmra.mxu0 %v679
      %v920 = vpop.f32.mrf.mxu0
      %v921 = vadd.f32 %v717, %v920
      %v922 = vpop.f32.mrf.mxu0
      %v923 = vadd.f32 %v717, %v922
      %924 = vmatmul.bf16.gmra.mxu0 %v681
      %v925 = vpop.f32.mrf.mxu0
      %v926 = vadd.f32 %v717, %v925
      %v927 = vpop.f32.mrf.mxu0
      %v928 = vadd.f32 %v717, %v927
      %929 = vdwg.mxu0
      %930 = vmatpush.bf16.msra.mxu0 %v847
      %931 = vmatpush.bf16.msra.mxu0 %v845
      %932 = vmatpush.bf16.msra.mxu0 %v843
      %933 = vmatpush.bf16.msra.mxu0 %v841
      %934 = vmatpush.bf16.msra.mxu0 %v839
      %935 = vmatpush.bf16.msra.mxu0 %v837
      %936 = vmatpush.bf16.msra.mxu0 %v835
      %937 = vmatpush.bf16.msra.mxu0 %v833
      %938 = vmatmul.bf16.gmra.mxu0 %v668
      %v939 = vpop.f32.mrf.mxu0
      %v940 = vadd.f32 %v891, %v939
      %v941 = vpop.f32.mrf.mxu0
      %v942 = vadd.f32 %v893, %v941
      %943 = vmatmul.bf16.gmra.mxu0 %v670
      %v944 = vpop.f32.mrf.mxu0
      %v945 = vadd.f32 %v896, %v944
      %v946 = vpop.f32.mrf.mxu0
      %v947 = vadd.f32 %v898, %v946
      %948 = vmatmul.bf16.gmra.mxu0 %v672
      %v949 = vpop.f32.mrf.mxu0
      %v950 = vadd.f32 %v901, %v949
      %v951 = vpop.f32.mrf.mxu0
      %v952 = vadd.f32 %v903, %v951
      %953 = vmatmul.bf16.gmra.mxu0 %v674
      %v954 = vpop.f32.mrf.mxu0
      %v955 = vadd.f32 %v906, %v954
      %v956 = vpop.f32.mrf.mxu0
      %v957 = vadd.f32 %v908, %v956
      %958 = vmatmul.bf16.gmra.mxu0 %v676
      %v959 = vpop.f32.mrf.mxu0
      %v960 = vadd.f32 %v911, %v959
      %v961 = vpop.f32.mrf.mxu0
      %v962 = vadd.f32 %v913, %v961
      %963 = vmatmul.bf16.gmra.mxu0 %v678
      %v964 = vpop.f32.mrf.mxu0
      %v965 = vadd.f32 %v916, %v964
      %v966 = vpop.f32.mrf.mxu0
      %v967 = vadd.f32 %v918, %v966
      %968 = vmatmul.bf16.gmra.mxu0 %v680
      %v969 = vpop.f32.mrf.mxu0
      %v970 = vadd.f32 %v921, %v969
      %v971 = vpop.f32.mrf.mxu0
      %v972 = vadd.f32 %v923, %v971
      %973 = vmatmul.bf16.gmra.mxu0 %v682
      %v974 = vpop.f32.mrf.mxu0
      %v975 = vadd.f32 %v926, %v974
      %v976 = vpop.f32.mrf.mxu0
      %v977 = vadd.f32 %v928, %v976
      %978 = vdwg.mxu0
      %979 = vmatpush.bf16.msra.mxu0 %v832
      %980 = vmatpush.bf16.msra.mxu0 %v830
      %981 = vmatpush.bf16.msra.mxu0 %v828
      %982 = vmatpush.bf16.msra.mxu0 %v826
      %983 = vmatpush.bf16.msra.mxu0 %v824
      %984 = vmatpush.bf16.msra.mxu0 %v822
      %985 = vmatpush.bf16.msra.mxu0 %v820
      %986 = vmatpush.bf16.msra.mxu0 %v818
      %987 = vmatmul.bf16.gmra.mxu0 %v667
      %v988 = vpop.f32.mrf.mxu0
      %v989 = vadd.f32 %v718, %v988
      %v990 = vpop.f32.mrf.mxu0
      %v991 = vadd.f32 %v718, %v990
      %992 = vmatmul.bf16.gmra.mxu0 %v669
      %v993 = vpop.f32.mrf.mxu0
      %v994 = vadd.f32 %v718, %v993
      %v995 = vpop.f32.mrf.mxu0
      %v996 = vadd.f32 %v718, %v995
      %997 = vmatmul.bf16.gmra.mxu0 %v671
      %v998 = vpop.f32.mrf.mxu0
      %v999 = vadd.f32 %v718, %v998
      %v1000 = vpop.f32.mrf.mxu0
      %v1001 = vadd.f32 %v718, %v1000
      %1002 = vmatmul.bf16.gmra.mxu0 %v673
      %v1003 = vpop.f32.mrf.mxu0
      %v1004 = vadd.f32 %v718, %v1003
      %v1005 = vpop.f32.mrf.mxu0
      %v1006 = vadd.f32 %v718, %v1005
      %1007 = vmatmul.bf16.gmra.mxu0 %v675
      %v1008 = vpop.f32.mrf.mxu0
      %v1009 = vadd.f32 %v718, %v1008
      %v1010 = vpop.f32.mrf.mxu0
      %v1011 = vadd.f32 %v718, %v1010
      %1012 = vmatmul.bf16.gmra.mxu0 %v677
      %v1013 = vpop.f32.mrf.mxu0
      %v1014 = vadd.f32 %v718, %v1013
      %v1015 = vpop.f32.mrf.mxu0
      %v1016 = vadd.f32 %v718, %v1015
      %1017 = vmatmul.bf16.gmra.mxu0 %v679
      %v1018 = vpop.f32.mrf.mxu0
      %v1019 = vadd.f32 %v718, %v1018
      %v1020 = vpop.f32.mrf.mxu0
      %v1021 = vadd.f32 %v718, %v1020
      %1022 = vmatmul.bf16.gmra.mxu0 %v681
      %v1023 = vpop.f32.mrf.mxu0
      %v1024 = vadd.f32 %v718, %v1023
      %v1025 = vpop.f32.mrf.mxu0
      %v1026 = vadd.f32 %v718, %v1025
      %1027 = vdwg.mxu0
      %1028 = vmatpush.bf16.msra.mxu0 %v848
      %1029 = vmatpush.bf16.msra.mxu0 %v846
      %1030 = vmatpush.bf16.msra.mxu0 %v844
      %1031 = vmatpush.bf16.msra.mxu0 %v842
      %1032 = vmatpush.bf16.msra.mxu0 %v840
      %1033 = vmatpush.bf16.msra.mxu0 %v838
      %1034 = vmatpush.bf16.msra.mxu0 %v836
      %1035 = vmatpush.bf16.msra.mxu0 %v834
      %1036 = vmatmul.bf16.gmra.mxu0 %v668
      %v1037 = vpop.f32.mrf.mxu0
      %v1038 = vadd.f32 %v989, %v1037
      %v1039 = vpop.f32.mrf.mxu0
      %v1040 = vadd.f32 %v991, %v1039
      %1041 = vmatmul.bf16.gmra.mxu0 %v670
      %v1042 = vpop.f32.mrf.mxu0
      %v1043 = vadd.f32 %v994, %v1042
      %v1044 = vpop.f32.mrf.mxu0
      %v1045 = vadd.f32 %v996, %v1044
      %1046 = vmatmul.bf16.gmra.mxu0 %v672
      %v1047 = vpop.f32.mrf.mxu0
      %v1048 = vadd.f32 %v999, %v1047
      %v1049 = vpop.f32.mrf.mxu0
      %v1050 = vadd.f32 %v1001, %v1049
      %1051 = vmatmul.bf16.gmra.mxu0 %v674
      %v1052 = vpop.f32.mrf.mxu0
      %v1053 = vadd.f32 %v1004, %v1052
      %v1054 = vpop.f32.mrf.mxu0
      %v1055 = vadd.f32 %v1006, %v1054
      %1056 = vmatmul.bf16.gmra.mxu0 %v676
      %v1057 = vpop.f32.mrf.mxu0
      %v1058 = vadd.f32 %v1009, %v1057
      %v1059 = vpop.f32.mrf.mxu0
      %v1060 = vadd.f32 %v1011, %v1059
      %1061 = vmatmul.bf16.gmra.mxu0 %v678
      %v1062 = vpop.f32.mrf.mxu0
      %v1063 = vadd.f32 %v1014, %v1062
      %v1064 = vpop.f32.mrf.mxu0
      %v1065 = vadd.f32 %v1016, %v1064
      %1066 = vmatmul.bf16.gmra.mxu0 %v680
      %v1067 = vpop.f32.mrf.mxu0
      %v1068 = vadd.f32 %v1019, %v1067
      %v1069 = vpop.f32.mrf.mxu0
      %v1070 = vadd.f32 %v1021, %v1069
      %1071 = vmatmul.bf16.gmra.mxu0 %v682
      %v1072 = vpop.f32.mrf.mxu0
      %v1073 = vadd.f32 %v1024, %v1072
      %v1074 = vpop.f32.mrf.mxu0
      %v1075 = vadd.f32 %v1026, %v1074
      %1076 = vdwg.mxu0
      %v1077 = vmax.f32 %v940, 0.0
      %v1078 = vmax.f32 %v1038, 0.0
      %v1079 = vmax.f32 %v942, 0.0
      %v1080 = vmax.f32 %v1040, 0.0
      %v1081 = vmax.f32 %v945, 0.0
      %v1082 = vmax.f32 %v1043, 0.0
      %v1083 = vmax.f32 %v947, 0.0
      %v1084 = vmax.f32 %v1045, 0.0
      %v1085 = vmax.f32 %v950, 0.0
      %v1086 = vmax.f32 %v1048, 0.0
      %v1087 = vmax.f32 %v952, 0.0
      %v1088 = vmax.f32 %v1050, 0.0
      %v1089 = vmax.f32 %v955, 0.0
      %v1090 = vmax.f32 %v1053, 0.0
      %v1091 = vmax.f32 %v957, 0.0
      %v1092 = vmax.f32 %v1055, 0.0
      %v1093 = vmax.f32 %v960, 0.0
      %v1094 = vmax.f32 %v1058, 0.0
      %v1095 = vmax.f32 %v962, 0.0
      %v1096 = vmax.f32 %v1060, 0.0
      %v1097 = vmax.f32 %v965, 0.0
      %v1098 = vmax.f32 %v1063, 0.0
      %v1099 = vmax.f32 %v967, 0.0
      %v1100 = vmax.f32 %v1065, 0.0
      %v1101 = vmax.f32 %v970, 0.0
      %v1102 = vmax.f32 %v1068, 0.0
      %v1103 = vmax.f32 %v972, 0.0
      %v1104 = vmax.f32 %v1070, 0.0
      %v1105 = vmax.f32 %v975, 0.0
      %v1106 = vmax.f32 %v1073, 0.0
      %v1107 = vmax.f32 %v977, 0.0
      %v1108 = vmax.f32 %v1075, 0.0
      %v1109 = vpack.c.bf16 %v1078, %v1077
      %v1110 = vpack.c.bf16 %v1080, %v1079
      %v1111 = vpack.c.bf16 %v1082, %v1081
      %v1112 = vpack.c.bf16 %v1084, %v1083
      %v1113 = vpack.c.bf16 %v1086, %v1085
      %v1114 = vpack.c.bf16 %v1088, %v1087
      %v1115 = vpack.c.bf16 %v1090, %v1089
      %v1116 = vpack.c.bf16 %v1092, %v1091
      %v1117 = vpack.c.bf16 %v1094, %v1093
      %v1118 = vpack.c.bf16 %v1096, %v1095
      %v1119 = vpack.c.bf16 %v1098, %v1097
      %v1120 = vpack.c.bf16 %v1100, %v1099
      %v1121 = vpack.c.bf16 %v1102, %v1101
      %v1122 = vpack.c.bf16 %v1104, %v1103
      %v1123 = vpack.c.bf16 %v1106, %v1105
      %v1124 = vpack.c.bf16 %v1108, %v1107
      %v1125 = vld [vmem:[%s4] sm:$0xf]
      %v1126 = vld [vmem:[%s4 + $0x4] sm:$0xf]
      %v1127 = vld [vmem:[%s4 + $0x8] sm:$0xf]
      %v1128 = vld [vmem:[%s4 + $0xc] sm:$0xf]
      %v1129 = vld [vmem:[%s4 + $0x10] sm:$0xf]
      %v1130 = vld [vmem:[%s4 + $0x14] sm:$0xf]
      %v1131 = vld [vmem:[%s4 + $0x18] sm:$0xf]
      %v1132 = vld [vmem:[%s4 + $0x1c] sm:$0xf]
      %v1133 = vld [vmem:[%s4 + $0x20] sm:$0xf]
      %v1134 = vld [vmem:[%s4 + $0x24] sm:$0xf]
      %v1135 = vld [vmem:[%s4 + $0x28] sm:$0xf]
      %v1136 = vld [vmem:[%s4 + $0x2c] sm:$0xf]
      %v1137 = vld [vmem:[%s4 + $0x30] sm:$0xf]
      %v1138 = vld [vmem:[%s4 + $0x34] sm:$0xf]
      %v1139 = vld [vmem:[%s4 + $0x38] sm:$0xf]
      %v1140 = vld [vmem:[%s4 + $0x3c] sm:$0xf]
      %v1141 = vld [vmem:[%s5] sm:$0x1]
      %v1143 = vperm.slane %v1141, 0
      %v1161 = vunpack.c.l.b16 %v1109
      %v1162 = vunpack.c.l.b16 %v1110
      %v1163 = vunpack.c.l.b16 %v1111
      %v1164 = vunpack.c.l.b16 %v1112
      %v1165 = vunpack.c.l.b16 %v1113
      %v1166 = vunpack.c.l.b16 %v1114
      %v1167 = vunpack.c.l.b16 %v1115
      %v1168 = vunpack.c.l.b16 %v1116
      %v1169 = vunpack.c.l.b16 %v1117
      %v1170 = vunpack.c.l.b16 %v1118
      %v1171 = vunpack.c.l.b16 %v1119
      %v1172 = vunpack.c.l.b16 %v1120
      %v1173 = vunpack.c.l.b16 %v1121
      %v1174 = vunpack.c.l.b16 %v1122
      %v1175 = vunpack.c.l.b16 %v1123
      %v1176 = vunpack.c.l.b16 %v1124
      %v1177 = vpack.c.b16 %v1162, %v1161
      %v1178 = vpack.c.b16 %v1164, %v1163
      %v1179 = vpack.c.b16 %v1166, %v1165
      %v1180 = vpack.c.b16 %v1168, %v1167
      %v1181 = vpack.c.b16 %v1170, %v1169
      %v1182 = vpack.c.b16 %v1172, %v1171
      %v1183 = vpack.c.b16 %v1174, %v1173
      %v1184 = vpack.c.b16 %v1176, %v1175
      %v1209 = vunpack.c.l.b16 %v1125
      %v1210 = vunpack.c.l.b16 %v1126
      %v1211 = vunpack.c.l.b16 %v1127
      %v1212 = vunpack.c.l.b16 %v1128
      %v1213 = vunpack.c.l.b16 %v1129
      %v1214 = vunpack.c.l.b16 %v1130
      %v1215 = vunpack.c.l.b16 %v1131
      %v1216 = vunpack.c.l.b16 %v1132
      %v1217 = vunpack.c.l.b16 %v1133
      %v1218 = vunpack.c.l.b16 %v1134
      %v1219 = vunpack.c.l.b16 %v1135
      %v1220 = vunpack.c.l.b16 %v1136
      %v1221 = vunpack.c.l.b16 %v1137
      %v1222 = vunpack.c.l.b16 %v1138
      %v1223 = vunpack.c.l.b16 %v1139
      %v1224 = vunpack.c.l.b16 %v1140
      %v1225 = vpack.c.b16 %v1210, %v1209
      %v1226 = vpack.c.b16 %v1212, %v1211
      %v1227 = vpack.c.b16 %v1214, %v1213
      %v1228 = vpack.c.b16 %v1216, %v1215
      %v1229 = vpack.c.b16 %v1218, %v1217
      %v1230 = vpack.c.b16 %v1220, %v1219
      %v1231 = vpack.c.b16 %v1222, %v1221
      %v1232 = vpack.c.b16 %v1224, %v1223
      %1241 = vmatpush.bf16.msra.mxu0 %v1232
      %1242 = vmatpush.bf16.msra.mxu0 %v1231
      %1243 = vmatpush.bf16.msra.mxu0 %v1230
      %1244 = vmatpush.bf16.msra.mxu0 %v1229
      %1245 = vmatpush.bf16.msra.mxu0 %v1228
      %1246 = vmatpush.bf16.msra.mxu0 %v1227
      %1247 = vmatpush.bf16.msra.mxu0 %v1226
      %1248 = vmatpush.bf16.msra.mxu0 %v1225
      %1249 = vmatmul.bf16.gmra.mxu0 %v1177
      %v1250 = vpop.f32.mrf.mxu0
      %v1251 = vadd.f32 %v1143, %v1250
      %v1252 = vpop.f32.mrf.mxu0
      %v1253 = vadd.f32 %v1143, %v1252
      %1254 = vmatmul.bf16.gmra.mxu0 %v1178
      %v1255 = vpop.f32.mrf.mxu0
      %v1256 = vadd.f32 %v1143, %v1255
      %v1257 = vpop.f32.mrf.mxu0
      %v1258 = vadd.f32 %v1143, %v1257
      %1259 = vmatmul.bf16.gmra.mxu0 %v1179
      %v1260 = vpop.f32.mrf.mxu0
      %v1261 = vadd.f32 %v1143, %v1260
      %v1262 = vpop.f32.mrf.mxu0
      %v1263 = vadd.f32 %v1143, %v1262
      %1264 = vmatmul.bf16.gmra.mxu0 %v1180
      %v1265 = vpop.f32.mrf.mxu0
      %v1266 = vadd.f32 %v1143, %v1265
      %v1267 = vpop.f32.mrf.mxu0
      %v1268 = vadd.f32 %v1143, %v1267
      %1269 = vmatmul.bf16.gmra.mxu0 %v1181
      %v1270 = vpop.f32.mrf.mxu0
      %v1271 = vadd.f32 %v1143, %v1270
      %v1272 = vpop.f32.mrf.mxu0
      %v1273 = vadd.f32 %v1143, %v1272
      %1274 = vmatmul.bf16.gmra.mxu0 %v1182
      %v1275 = vpop.f32.mrf.mxu0
      %v1276 = vadd.f32 %v1143, %v1275
      %v1277 = vpop.f32.mrf.mxu0
      %v1278 = vadd.f32 %v1143, %v1277
      %1279 = vmatmul.bf16.gmra.mxu0 %v1183
      %v1280 = vpop.f32.mrf.mxu0
      %v1281 = vadd.f32 %v1143, %v1280
      %v1282 = vpop.f32.mrf.mxu0
      %v1283 = vadd.f32 %v1143, %v1282
      %1284 = vmatmul.bf16.gmra.mxu0 %v1184
      %v1285 = vpop.f32.mrf.mxu0
      %v1286 = vadd.f32 %v1143, %v1285
      %v1287 = vpop.f32.mrf.mxu0
      %v1288 = vadd.f32 %v1143, %v1287
      %1289 = vdwg.mxu0
      %v1290 = vld [vmem:[%s6] sm:$0xf]
      %v1291 = vld [vmem:[%s6 + $0x4] sm:$0xf]
      %v1292 = vld [vmem:[%s6 + $0x8] sm:$0xf]
      %v1293 = vld [vmem:[%s6 + $0xc] sm:$0xf]
      %v1294 = vld [vmem:[%s6 + $0x10] sm:$0xf]
      %v1295 = vld [vmem:[%s6 + $0x14] sm:$0xf]
      %v1296 = vld [vmem:[%s6 + $0x18] sm:$0xf]
      %v1297 = vld [vmem:[%s6 + $0x1c] sm:$0xf]
      %v1298 = vld [vmem:[%s6 + $0x20] sm:$0xf]
      %v1299 = vld [vmem:[%s6 + $0x24] sm:$0xf]
      %v1300 = vld [vmem:[%s6 + $0x28] sm:$0xf]
      %v1301 = vld [vmem:[%s6 + $0x2c] sm:$0xf]
      %v1302 = vld [vmem:[%s6 + $0x30] sm:$0xf]
      %v1303 = vld [vmem:[%s6 + $0x34] sm:$0xf]
      %v1304 = vld [vmem:[%s6 + $0x38] sm:$0xf]
      %v1305 = vld [vmem:[%s6 + $0x3c] sm:$0xf]
      %v1306 = vld [vmem:[%s7] sm:$0x1]
      %v1308 = vperm.slane %v1306, 0
      %v1310 = vunpack.c.h.b16 %v1109
      %v1311 = vunpack.c.h.b16 %v1110
      %v1312 = vunpack.c.h.b16 %v1111
      %v1313 = vunpack.c.h.b16 %v1112
      %v1314 = vunpack.c.h.b16 %v1113
      %v1315 = vunpack.c.h.b16 %v1114
      %v1316 = vunpack.c.h.b16 %v1115
      %v1317 = vunpack.c.h.b16 %v1116
      %v1318 = vunpack.c.h.b16 %v1117
      %v1319 = vunpack.c.h.b16 %v1118
      %v1320 = vunpack.c.h.b16 %v1119
      %v1321 = vunpack.c.h.b16 %v1120
      %v1322 = vunpack.c.h.b16 %v1121
      %v1323 = vunpack.c.h.b16 %v1122
      %v1324 = vunpack.c.h.b16 %v1123
      %v1325 = vunpack.c.h.b16 %v1124
      %v1326 = vpack.c.b16 %v1311, %v1310
      %v1327 = vpack.c.b16 %v1313, %v1312
      %v1328 = vpack.c.b16 %v1315, %v1314
      %v1329 = vpack.c.b16 %v1317, %v1316
      %v1330 = vpack.c.b16 %v1319, %v1318
      %v1331 = vpack.c.b16 %v1321, %v1320
      %v1332 = vpack.c.b16 %v1323, %v1322
      %v1333 = vpack.c.b16 %v1325, %v1324
      %v1358 = vunpack.c.l.b16 %v1290
      %v1359 = vunpack.c.l.b16 %v1291
      %v1360 = vunpack.c.l.b16 %v1292
      %v1361 = vunpack.c.l.b16 %v1293
      %v1362 = vunpack.c.l.b16 %v1294
      %v1363 = vunpack.c.l.b16 %v1295
      %v1364 = vunpack.c.l.b16 %v1296
      %v1365 = vunpack.c.l.b16 %v1297
      %v1366 = vunpack.c.l.b16 %v1298
      %v1367 = vunpack.c.l.b16 %v1299
      %v1368 = vunpack.c.l.b16 %v1300
      %v1369 = vunpack.c.l.b16 %v1301
      %v1370 = vunpack.c.l.b16 %v1302
      %v1371 = vunpack.c.l.b16 %v1303
      %v1372 = vunpack.c.l.b16 %v1304
      %v1373 = vunpack.c.l.b16 %v1305
      %v1374 = vpack.c.b16 %v1359, %v1358
      %v1375 = vpack.c.b16 %v1361, %v1360
      %v1376 = vpack.c.b16 %v1363, %v1362
      %v1377 = vpack.c.b16 %v1365, %v1364
      %v1378 = vpack.c.b16 %v1367, %v1366
      %v1379 = vpack.c.b16 %v1369, %v1368
      %v1380 = vpack.c.b16 %v1371, %v1370
      %v1381 = vpack.c.b16 %v1373, %v1372
      %1390 = vmatpush.bf16.msra.mxu0 %v1381
      %1391 = vmatpush.bf16.msra.mxu0 %v1380
      %1392 = vmatpush.bf16.msra.mxu0 %v1379
      %1393 = vmatpush.bf16.msra.mxu0 %v1378
      %1394 = vmatpush.bf16.msra.mxu0 %v1377
      %1395 = vmatpush.bf16.msra.mxu0 %v1376
      %1396 = vmatpush.bf16.msra.mxu0 %v1375
      %1397 = vmatpush.bf16.msra.mxu0 %v1374
      %1398 = vmatmul.bf16.gmra.mxu0 %v1326
      %v1399 = vpop.f32.mrf.mxu0
      %v1400 = vadd.f32 %v1308, %v1399
      %v1401 = vpop.f32.mrf.mxu0
      %v1402 = vadd.f32 %v1308, %v1401
      %1403 = vmatmul.bf16.gmra.mxu0 %v1327
      %v1404 = vpop.f32.mrf.mxu0
      %v1405 = vadd.f32 %v1308, %v1404
      %v1406 = vpop.f32.mrf.mxu0
      %v1407 = vadd.f32 %v1308, %v1406
      %1408 = vmatmul.bf16.gmra.mxu0 %v1328
      %v1409 = vpop.f32.mrf.mxu0
      %v1410 = vadd.f32 %v1308, %v1409
      %v1411 = vpop.f32.mrf.mxu0
      %v1412 = vadd.f32 %v1308, %v1411
      %1413 = vmatmul.bf16.gmra.mxu0 %v1329
      %v1414 = vpop.f32.mrf.mxu0
      %v1415 = vadd.f32 %v1308, %v1414
      %v1416 = vpop.f32.mrf.mxu0
      %v1417 = vadd.f32 %v1308, %v1416
      %1418 = vmatmul.bf16.gmra.mxu0 %v1330
      %v1419 = vpop.f32.mrf.mxu0
      %v1420 = vadd.f32 %v1308, %v1419
      %v1421 = vpop.f32.mrf.mxu0
      %v1422 = vadd.f32 %v1308, %v1421
      %1423 = vmatmul.bf16.gmra.mxu0 %v1331
      %v1424 = vpop.f32.mrf.mxu0
      %v1425 = vadd.f32 %v1308, %v1424
      %v1426 = vpop.f32.mrf.mxu0
      %v1427 = vadd.f32 %v1308, %v1426
      %1428 = vmatmul.bf16.gmra.mxu0 %v1332
      %v1429 = vpop.f32.mrf.mxu0
      %v1430 = vadd.f32 %v1308, %v1429
      %v1431 = vpop.f32.mrf.mxu0
      %v1432 = vadd.f32 %v1308, %v1431
      %1433 = vmatmul.bf16.gmra.mxu0 %v1333
      %v1434 = vpop.f32.mrf.mxu0
      %v1435 = vadd.f32 %v1308, %v1434
      %v1436 = vpop.f32.mrf.mxu0
      %v1437 = vadd.f32 %v1308, %v1436
      %1438 = vdwg.mxu0
      %1455 = vrot.lane.b32.xlu0 %v1400, 64
      %v1456 = vpop.permute.xlu0 %1455
      %1457 = vrot.lane.b32.xlu0 %v1402, 64
      %v1458 = vpop.permute.xlu0 %1457
      %1459 = vrot.lane.b32.xlu0 %v1405, 64
      %v1460 = vpop.permute.xlu0 %1459
      %1461 = vrot.lane.b32.xlu0 %v1407, 64
      %v1462 = vpop.permute.xlu0 %1461
      %1463 = vrot.lane.b32.xlu0 %v1410, 64
      %v1464 = vpop.permute.xlu0 %1463
      %1465 = vrot.lane.b32.xlu0 %v1412, 64
      %v1466 = vpop.permute.xlu0 %1465
      %1467 = vrot.lane.b32.xlu0 %v1415, 64
      %v1468 = vpop.permute.xlu0 %1467
      %1469 = vrot.lane.b32.xlu0 %v1417, 64
      %v1470 = vpop.permute.xlu0 %1469
      %1471 = vrot.lane.b32.xlu0 %v1420, 64
      %v1472 = vpop.permute.xlu0 %1471
      %1473 = vrot.lane.b32.xlu0 %v1422, 64
      %v1474 = vpop.permute.xlu0 %1473
      %1475 = vrot.lane.b32.xlu0 %v1425, 64
      %v1476 = vpop.permute.xlu0 %1475
      %1477 = vrot.lane.b32.xlu0 %v1427, 64
      %v1478 = vpop.permute.xlu0 %1477
      %1479 = vrot.lane.b32.xlu0 %v1430, 64
      %v1480 = vpop.permute.xlu0 %1479
      %1481 = vrot.lane.b32.xlu0 %v1432, 64
      %v1482 = vpop.permute.xlu0 %1481
      %1483 = vrot.lane.b32.xlu0 %v1435, 64
      %v1484 = vpop.permute.xlu0 %1483
      %1485 = vrot.lane.b32.xlu0 %v1437, 64
      %v1486 = vpop.permute.xlu0 %1485
      %vm1503 = vcmask 523264
      %v1504 = vsel %vm1503, %v1251, %v1456
      %v1505 = vsel %vm1503, %v1253, %v1458
      %v1506 = vsel %vm1503, %v1256, %v1460
      %v1507 = vsel %vm1503, %v1258, %v1462
      %v1508 = vsel %vm1503, %v1261, %v1464
      %v1509 = vsel %vm1503, %v1263, %v1466
      %v1510 = vsel %vm1503, %v1266, %v1468
      %v1511 = vsel %vm1503, %v1268, %v1470
      %v1512 = vsel %vm1503, %v1271, %v1472
      %v1513 = vsel %vm1503, %v1273, %v1474
      %v1514 = vsel %vm1503, %v1276, %v1476
      %v1515 = vsel %vm1503, %v1278, %v1478
      %v1516 = vsel %vm1503, %v1281, %v1480
      %v1517 = vsel %vm1503, %v1283, %v1482
      %v1518 = vsel %vm1503, %v1286, %v1484
      %v1519 = vsel %vm1503, %v1288, %v1486
      %1536 = vrot.lane.b32.xlu0 %v1251, 64
      %v1537 = vpop.permute.xlu0 %1536
      %1538 = vrot.lane.b32.xlu0 %v1253, 64
      %v1539 = vpop.permute.xlu0 %1538
      %1540 = vrot.lane.b32.xlu0 %v1256, 64
      %v1541 = vpop.permute.xlu0 %1540
      %1542 = vrot.lane.b32.xlu0 %v1258, 64
      %v1543 = vpop.permute.xlu0 %1542
      %1544 = vrot.lane.b32.xlu0 %v1261, 64
      %v1545 = vpop.permute.xlu0 %1544
      %1546 = vrot.lane.b32.xlu0 %v1263, 64
      %v1547 = vpop.permute.xlu0 %1546
      %1548 = vrot.lane.b32.xlu0 %v1266, 64
      %v1549 = vpop.permute.xlu0 %1548
      %1550 = vrot.lane.b32.xlu0 %v1268, 64
      %v1551 = vpop.permute.xlu0 %1550
      %1552 = vrot.lane.b32.xlu0 %v1271, 64
      %v1553 = vpop.permute.xlu0 %1552
      %1554 = vrot.lane.b32.xlu0 %v1273, 64
      %v1555 = vpop.permute.xlu0 %1554
      %1556 = vrot.lane.b32.xlu0 %v1276, 64
      %v1557 = vpop.permute.xlu0 %1556
      %1558 = vrot.lane.b32.xlu0 %v1278, 64
      %v1559 = vpop.permute.xlu0 %1558
      %1560 = vrot.lane.b32.xlu0 %v1281, 64
      %v1561 = vpop.permute.xlu0 %1560
      %1562 = vrot.lane.b32.xlu0 %v1283, 64
      %v1563 = vpop.permute.xlu0 %1562
      %1564 = vrot.lane.b32.xlu0 %v1286, 64
      %v1565 = vpop.permute.xlu0 %1564
      %1566 = vrot.lane.b32.xlu0 %v1288, 64
      %v1567 = vpop.permute.xlu0 %1566
      %v1584 = vsel %vm1503, %v1537, %v1400
      %v1585 = vsel %vm1503, %v1539, %v1402
      %v1586 = vsel %vm1503, %v1541, %v1405
      %v1587 = vsel %vm1503, %v1543, %v1407
      %v1588 = vsel %vm1503, %v1545, %v1410
      %v1589 = vsel %vm1503, %v1547, %v1412
      %v1590 = vsel %vm1503, %v1549, %v1415
      %v1591 = vsel %vm1503, %v1551, %v1417
      %v1592 = vsel %vm1503, %v1553, %v1420
      %v1593 = vsel %vm1503, %v1555, %v1422
      %v1594 = vsel %vm1503, %v1557, %v1425
      %v1595 = vsel %vm1503, %v1559, %v1427
      %v1596 = vsel %vm1503, %v1561, %v1430
      %v1597 = vsel %vm1503, %v1563, %v1432
      %v1598 = vsel %vm1503, %v1565, %v1435
      %v1599 = vsel %vm1503, %v1567, %v1437
      %v1600 = vmul.f32 %v1584, 0.5
      %v1601 = vmul.f32 %v1585, 0.5
      %v1602 = vmul.f32 %v1586, 0.5
      %v1603 = vmul.f32 %v1587, 0.5
      %v1604 = vmul.f32 %v1588, 0.5
      %v1605 = vmul.f32 %v1589, 0.5
      %v1606 = vmul.f32 %v1590, 0.5
      %v1607 = vmul.f32 %v1591, 0.5
      %v1608 = vmul.f32 %v1592, 0.5
      %v1609 = vmul.f32 %v1593, 0.5
      %v1610 = vmul.f32 %v1594, 0.5
      %v1611 = vmul.f32 %v1595, 0.5
      %v1612 = vmul.f32 %v1596, 0.5
      %v1613 = vmul.f32 %v1597, 0.5
      %v1614 = vmul.f32 %v1598, 0.5
      %v1615 = vmul.f32 %v1599, 0.5
      %v1616 = vmul.f32 %v1600, 1.442695
      %v1617 = vpow.pop %v1616
      %v1618 = vmul.f32 %v1601, 1.442695
      %v1619 = vpow.pop %v1618
      %v1620 = vmul.f32 %v1602, 1.442695
      %v1621 = vpow.pop %v1620
      %v1622 = vmul.f32 %v1603, 1.442695
      %v1623 = vpow.pop %v1622
      %v1624 = vmul.f32 %v1604, 1.442695
      %v1625 = vpow.pop %v1624
      %v1626 = vmul.f32 %v1605, 1.442695
      %v1627 = vpow.pop %v1626
      %v1628 = vmul.f32 %v1606, 1.442695
      %v1629 = vpow.pop %v1628
      %v1630 = vmul.f32 %v1607, 1.442695
      %v1631 = vpow.pop %v1630
      %v1632 = vmul.f32 %v1608, 1.442695
      %v1633 = vpow.pop %v1632
      %v1634 = vmul.f32 %v1609, 1.442695
      %v1635 = vpow.pop %v1634
      %v1636 = vmul.f32 %v1610, 1.442695
      %v1637 = vpow.pop %v1636
      %v1638 = vmul.f32 %v1611, 1.442695
      %v1639 = vpow.pop %v1638
      %v1640 = vmul.f32 %v1612, 1.442695
      %v1641 = vpow.pop %v1640
      %v1642 = vmul.f32 %v1613, 1.442695
      %v1643 = vpow.pop %v1642
      %v1644 = vmul.f32 %v1614, 1.442695
      %v1645 = vpow.pop %v1644
      %v1646 = vmul.f32 %v1615, 1.442695
      %v1647 = vpow.pop %v1646
      %v1648 = vld [vmem:[%s600] sm:$0xff]
      %v1649 = vld [vmem:[%s600 + $0x8] sm:$0xff]
      %v1650 = vld [vmem:[%s600 + $0x10] sm:$0xff]
      %v1651 = vld [vmem:[%s600 + $0x18] sm:$0xff]
      %v1652 = vld [vmem:[%s600 + $0x20] sm:$0xff]
      %v1653 = vld [vmem:[%s600 + $0x28] sm:$0xff]
      %v1654 = vld [vmem:[%s600 + $0x30] sm:$0xff]
      %v1655 = vld [vmem:[%s600 + $0x38] sm:$0xff]
      %v1656 = vld [vmem:[%s600 + $0x40] sm:$0xff]
      %v1657 = vld [vmem:[%s600 + $0x48] sm:$0xff]
      %v1658 = vld [vmem:[%s600 + $0x50] sm:$0xff]
      %v1659 = vld [vmem:[%s600 + $0x58] sm:$0xff]
      %v1660 = vld [vmem:[%s600 + $0x60] sm:$0xff]
      %v1661 = vld [vmem:[%s600 + $0x68] sm:$0xff]
      %v1662 = vld [vmem:[%s600 + $0x70] sm:$0xff]
      %v1663 = vld [vmem:[%s600 + $0x78] sm:$0xff]
      %v1664 = vmul.f32 %v1617, %v1648
      %v1665 = vmul.f32 %v1619, %v1649
      %v1666 = vmul.f32 %v1621, %v1650
      %v1667 = vmul.f32 %v1623, %v1651
      %v1668 = vmul.f32 %v1625, %v1652
      %v1669 = vmul.f32 %v1627, %v1653
      %v1670 = vmul.f32 %v1629, %v1654
      %v1671 = vmul.f32 %v1631, %v1655
      %v1672 = vmul.f32 %v1633, %v1656
      %v1673 = vmul.f32 %v1635, %v1657
      %v1674 = vmul.f32 %v1637, %v1658
      %v1675 = vmul.f32 %v1639, %v1659
      %v1676 = vmul.f32 %v1641, %v1660
      %v1677 = vmul.f32 %v1643, %v1661
      %v1678 = vmul.f32 %v1645, %v1662
      %v1679 = vmul.f32 %v1647, %v1663
      %v1680 = vadd.f32 %v1504, %v1664
      %v1681 = vadd.f32 %v1505, %v1665
      %v1682 = vadd.f32 %v1506, %v1666
      %v1683 = vadd.f32 %v1507, %v1667
      %v1684 = vadd.f32 %v1508, %v1668
      %v1685 = vadd.f32 %v1509, %v1669
      %v1686 = vadd.f32 %v1510, %v1670
      %v1687 = vadd.f32 %v1511, %v1671
      %v1688 = vadd.f32 %v1512, %v1672
      %v1689 = vadd.f32 %v1513, %v1673
      %v1690 = vadd.f32 %v1514, %v1674
      %v1691 = vadd.f32 %v1515, %v1675
      %v1692 = vadd.f32 %v1516, %v1676
      %v1693 = vadd.f32 %v1517, %v1677
      %v1694 = vadd.f32 %v1518, %v1678
      %v1695 = vadd.f32 %v1519, %v1679
      %v1696 = vmul.f32 %v1504, %v1504
      %v1697 = vmul.f32 %v1505, %v1505
      %v1698 = vmul.f32 %v1506, %v1506
      %v1699 = vmul.f32 %v1507, %v1507
      %v1700 = vmul.f32 %v1508, %v1508
      %v1701 = vmul.f32 %v1509, %v1509
      %v1702 = vmul.f32 %v1510, %v1510
      %v1703 = vmul.f32 %v1511, %v1511
      %v1704 = vmul.f32 %v1512, %v1512
      %v1705 = vmul.f32 %v1513, %v1513
      %v1706 = vmul.f32 %v1514, %v1514
      %v1707 = vmul.f32 %v1515, %v1515
      %v1708 = vmul.f32 %v1516, %v1516
      %v1709 = vmul.f32 %v1517, %v1517
      %v1710 = vmul.f32 %v1518, %v1518
      %v1711 = vmul.f32 %v1519, %v1519
      %v1712 = vmul.f32 %v1617, %v1617
      %v1713 = vmul.f32 %v1619, %v1619
      %v1714 = vmul.f32 %v1621, %v1621
      %v1715 = vmul.f32 %v1623, %v1623
      %v1716 = vmul.f32 %v1625, %v1625
      %v1717 = vmul.f32 %v1627, %v1627
      %v1718 = vmul.f32 %v1629, %v1629
      %v1719 = vmul.f32 %v1631, %v1631
      %v1720 = vmul.f32 %v1633, %v1633
      %v1721 = vmul.f32 %v1635, %v1635
      %v1722 = vmul.f32 %v1637, %v1637
      %v1723 = vmul.f32 %v1639, %v1639
      %v1724 = vmul.f32 %v1641, %v1641
      %v1725 = vmul.f32 %v1643, %v1643
      %v1726 = vmul.f32 %v1645, %v1645
      %v1727 = vmul.f32 %v1647, %v1647
      %v1728 = vadd.f32 %v1696, %v1712
      %v1729 = vadd.f32 %v1697, %v1713
      %v1730 = vadd.f32 %v1698, %v1714
      %v1731 = vadd.f32 %v1699, %v1715
      %v1732 = vadd.f32 %v1700, %v1716
      %v1733 = vadd.f32 %v1701, %v1717
      %v1734 = vadd.f32 %v1702, %v1718
      %v1735 = vadd.f32 %v1703, %v1719
      %v1736 = vadd.f32 %v1704, %v1720
      %v1737 = vadd.f32 %v1705, %v1721
      %v1738 = vadd.f32 %v1706, %v1722
      %v1739 = vadd.f32 %v1707, %v1723
      %v1740 = vadd.f32 %v1708, %v1724
      %v1741 = vadd.f32 %v1709, %v1725
      %v1742 = vadd.f32 %v1710, %v1726
      %v1743 = vadd.f32 %v1711, %v1727
      %v1744 = vsub.f32 %v1728, 1.0
      %v1745 = vsub.f32 %v1729, 1.0
      %v1746 = vsub.f32 %v1730, 1.0
      %v1747 = vsub.f32 %v1731, 1.0
      %v1748 = vsub.f32 %v1732, 1.0
      %v1749 = vsub.f32 %v1733, 1.0
      %v1750 = vsub.f32 %v1734, 1.0
      %v1751 = vsub.f32 %v1735, 1.0
      %v1752 = vsub.f32 %v1736, 1.0
      %v1753 = vsub.f32 %v1737, 1.0
      %v1754 = vsub.f32 %v1738, 1.0
      %v1755 = vsub.f32 %v1739, 1.0
      %v1756 = vsub.f32 %v1740, 1.0
      %v1757 = vsub.f32 %v1741, 1.0
      %v1758 = vsub.f32 %v1742, 1.0
      %v1759 = vsub.f32 %v1743, 1.0
      %v1760 = vmul.f32 %v1744, 0.5
      %v1761 = vmul.f32 %v1745, 0.5
      %v1762 = vmul.f32 %v1746, 0.5
      %v1763 = vmul.f32 %v1747, 0.5
      %v1764 = vmul.f32 %v1748, 0.5
      %v1765 = vmul.f32 %v1749, 0.5
      %v1766 = vmul.f32 %v1750, 0.5
      %v1767 = vmul.f32 %v1751, 0.5
      %v1768 = vmul.f32 %v1752, 0.5
      %v1769 = vmul.f32 %v1753, 0.5
      %v1770 = vmul.f32 %v1754, 0.5
      %v1771 = vmul.f32 %v1755, 0.5
      %v1772 = vmul.f32 %v1756, 0.5
      %v1773 = vmul.f32 %v1757, 0.5
      %v1774 = vmul.f32 %v1758, 0.5
      %v1775 = vmul.f32 %v1759, 0.5
      %v1776 = vsub.f32 %v1760, %v1600
      %v1777 = vsub.f32 %v1761, %v1601
      %v1778 = vsub.f32 %v1762, %v1602
      %v1779 = vsub.f32 %v1763, %v1603
      %v1780 = vsub.f32 %v1764, %v1604
      %v1781 = vsub.f32 %v1765, %v1605
      %v1782 = vsub.f32 %v1766, %v1606
      %v1783 = vsub.f32 %v1767, %v1607
      %v1784 = vsub.f32 %v1768, %v1608
      %v1785 = vsub.f32 %v1769, %v1609
      %v1786 = vsub.f32 %v1770, %v1610
      %v1787 = vsub.f32 %v1771, %v1611
      %v1788 = vsub.f32 %v1772, %v1612
      %v1789 = vsub.f32 %v1773, %v1613
      %v1790 = vsub.f32 %v1774, %v1614
      %v1791 = vsub.f32 %v1775, %v1615
      %v1792 = vmul.f32 %v1680, %v1680
      %v1793 = vmul.f32 %v1681, %v1681
      %v1794 = vmul.f32 %v1682, %v1682
      %v1795 = vmul.f32 %v1683, %v1683
      %v1796 = vmul.f32 %v1684, %v1684
      %v1797 = vmul.f32 %v1685, %v1685
      %v1798 = vmul.f32 %v1686, %v1686
      %v1799 = vmul.f32 %v1687, %v1687
      %v1800 = vmul.f32 %v1688, %v1688
      %v1801 = vmul.f32 %v1689, %v1689
      %v1802 = vmul.f32 %v1690, %v1690
      %v1803 = vmul.f32 %v1691, %v1691
      %v1804 = vmul.f32 %v1692, %v1692
      %v1805 = vmul.f32 %v1693, %v1693
      %v1806 = vmul.f32 %v1694, %v1694
      %v1807 = vmul.f32 %v1695, %v1695
      %v1808 = vld [vmem:[%s8] sm:$0xff]
      %v1809 = vld [vmem:[%s8 + $0x8] sm:$0xff]
      %v1810 = vld [vmem:[%s8 + $0x10] sm:$0xff]
      %v1811 = vld [vmem:[%s8 + $0x18] sm:$0xff]
      %v1812 = vld [vmem:[%s8 + $0x20] sm:$0xff]
      %v1813 = vld [vmem:[%s8 + $0x28] sm:$0xff]
      %v1814 = vld [vmem:[%s8 + $0x30] sm:$0xff]
      %v1815 = vld [vmem:[%s8 + $0x38] sm:$0xff]
      %1832 = vrot.lane.b32.xlu0 %v1792, 64
      %v1833 = vpop.permute.xlu0 %1832
      %1834 = vrot.lane.b32.xlu0 %v1793, 64
      %v1835 = vpop.permute.xlu0 %1834
      %1836 = vrot.lane.b32.xlu0 %v1794, 64
      %v1837 = vpop.permute.xlu0 %1836
      %1838 = vrot.lane.b32.xlu0 %v1795, 64
      %v1839 = vpop.permute.xlu0 %1838
      %1840 = vrot.lane.b32.xlu0 %v1796, 64
      %v1841 = vpop.permute.xlu0 %1840
      %1842 = vrot.lane.b32.xlu0 %v1797, 64
      %v1843 = vpop.permute.xlu0 %1842
      %1844 = vrot.lane.b32.xlu0 %v1798, 64
      %v1845 = vpop.permute.xlu0 %1844
      %1846 = vrot.lane.b32.xlu0 %v1799, 64
      %v1847 = vpop.permute.xlu0 %1846
      %1848 = vrot.lane.b32.xlu0 %v1800, 64
      %v1849 = vpop.permute.xlu0 %1848
      %1850 = vrot.lane.b32.xlu0 %v1801, 64
      %v1851 = vpop.permute.xlu0 %1850
      %1852 = vrot.lane.b32.xlu0 %v1802, 64
      %v1853 = vpop.permute.xlu0 %1852
      %1854 = vrot.lane.b32.xlu0 %v1803, 64
      %v1855 = vpop.permute.xlu0 %1854
      %1856 = vrot.lane.b32.xlu0 %v1804, 64
      %v1857 = vpop.permute.xlu0 %1856
      %1858 = vrot.lane.b32.xlu0 %v1805, 64
      %v1859 = vpop.permute.xlu0 %1858
      %1860 = vrot.lane.b32.xlu0 %v1806, 64
      %v1861 = vpop.permute.xlu0 %1860
      %1862 = vrot.lane.b32.xlu0 %v1807, 64
      %v1863 = vpop.permute.xlu0 %1862
      %v1864 = vsel %vm1503, %v1833, 0
      %v1866 = vsel %vm1503, %v1835, 0
      %v1868 = vsel %vm1503, %v1837, 0
      %v1870 = vsel %vm1503, %v1839, 0
      %v1872 = vsel %vm1503, %v1841, 0
      %v1874 = vsel %vm1503, %v1843, 0
      %v1876 = vsel %vm1503, %v1845, 0
      %v1878 = vsel %vm1503, %v1847, 0
      %v1880 = vsel %vm1503, %v1849, 0
      %v1882 = vsel %vm1503, %v1851, 0
      %v1884 = vsel %vm1503, %v1853, 0
      %v1886 = vsel %vm1503, %v1855, 0
      %v1888 = vsel %vm1503, %v1857, 0
      %v1890 = vsel %vm1503, %v1859, 0
      %v1892 = vsel %vm1503, %v1861, 0
      %v1894 = vsel %vm1503, %v1863, 0
      %1896 = vmatpush.msra.mxu0 0.0
      %1897 = vmatpush.msra.mxu0 0.0
      %1898 = vmatpush.msra.mxu0 0.0
      %1899 = vmatpush.msra.mxu0 0.0
      %1900 = vmatpush.msra.mxu0 0.0
      %1901 = vmatpush.msra.mxu0 0.0
      %1902 = vmatpush.msra.mxu0 0.0
      %1903 = vmatpush.msra.mxu0 0.0
      %1904 = vmatpush.msra.mxu0 %v1815
      %1905 = vmatpush.msra.mxu0 %v1814
      %1906 = vmatpush.msra.mxu0 %v1813
      %1907 = vmatpush.msra.mxu0 %v1812
      %1908 = vmatpush.msra.mxu0 %v1811
      %1909 = vmatpush.msra.mxu0 %v1810
      %1910 = vmatpush.msra.mxu0 %v1809
      %1911 = vmatpush.msra.mxu0 %v1808
      %1912 = vmatmul.f32.gmra.mxu0 %v1864
      %v1913 = vpop.f32.mrf.mxu0
      %v1914 = vadd.f32 0.0, %v1913
      %1915 = vmatmul.f32.gmra.mxu0 %v1866
      %v1916 = vpop.f32.mrf.mxu0
      %v1917 = vadd.f32 0.0, %v1916
      %1918 = vmatmul.f32.gmra.mxu0 %v1868
      %v1919 = vpop.f32.mrf.mxu0
      %v1920 = vadd.f32 0.0, %v1919
      %1921 = vmatmul.f32.gmra.mxu0 %v1870
      %v1922 = vpop.f32.mrf.mxu0
      %v1923 = vadd.f32 0.0, %v1922
      %1924 = vmatmul.f32.gmra.mxu0 %v1872
      %v1925 = vpop.f32.mrf.mxu0
      %v1926 = vadd.f32 0.0, %v1925
      %1927 = vmatmul.f32.gmra.mxu0 %v1874
      %v1928 = vpop.f32.mrf.mxu0
      %v1929 = vadd.f32 0.0, %v1928
      %1930 = vmatmul.f32.gmra.mxu0 %v1876
      %v1931 = vpop.f32.mrf.mxu0
      %v1932 = vadd.f32 0.0, %v1931
      %1933 = vmatmul.f32.gmra.mxu0 %v1878
      %v1934 = vpop.f32.mrf.mxu0
      %v1935 = vadd.f32 0.0, %v1934
      %1936 = vmatmul.f32.gmra.mxu0 %v1880
      %v1937 = vpop.f32.mrf.mxu0
      %v1938 = vadd.f32 0.0, %v1937
      %1939 = vmatmul.f32.gmra.mxu0 %v1882
      %v1940 = vpop.f32.mrf.mxu0
      %v1941 = vadd.f32 0.0, %v1940
      %1942 = vmatmul.f32.gmra.mxu0 %v1884
      %v1943 = vpop.f32.mrf.mxu0
      %v1944 = vadd.f32 0.0, %v1943
      %1945 = vmatmul.f32.gmra.mxu0 %v1886
      %v1946 = vpop.f32.mrf.mxu0
      %v1947 = vadd.f32 0.0, %v1946
      %1948 = vmatmul.f32.gmra.mxu0 %v1888
      %v1949 = vpop.f32.mrf.mxu0
      %v1950 = vadd.f32 0.0, %v1949
      %1951 = vmatmul.f32.gmra.mxu0 %v1890
      %v1952 = vpop.f32.mrf.mxu0
      %v1953 = vadd.f32 0.0, %v1952
      %1954 = vmatmul.f32.gmra.mxu0 %v1892
      %v1955 = vpop.f32.mrf.mxu0
      %v1956 = vadd.f32 0.0, %v1955
      %1957 = vmatmul.f32.gmra.mxu0 %v1894
      %v1958 = vpop.f32.mrf.mxu0
      %v1959 = vadd.f32 0.0, %v1958
      %1960 = vdwg.mxu0
      %v1961 = vadd.f32 %v1914, 1e-06
      %v1962 = vadd.f32 %v1917, 1e-06
      %v1963 = vadd.f32 %v1920, 1e-06
      %v1964 = vadd.f32 %v1923, 1e-06
      %v1965 = vadd.f32 %v1926, 1e-06
      %v1966 = vadd.f32 %v1929, 1e-06
      %v1967 = vadd.f32 %v1932, 1e-06
      %v1968 = vadd.f32 %v1935, 1e-06
      %v1969 = vadd.f32 %v1938, 1e-06
      %v1970 = vadd.f32 %v1941, 1e-06
      %v1971 = vadd.f32 %v1944, 1e-06
      %v1972 = vadd.f32 %v1947, 1e-06
      %v1973 = vadd.f32 %v1950, 1e-06
      %v1974 = vadd.f32 %v1953, 1e-06
      %v1975 = vadd.f32 %v1956, 1e-06
      %v1976 = vadd.f32 %v1959, 1e-06
      %v1977 = vrsqrt.pop %v1961
      %v1978 = vmul.f32 %v1977, %v1961
      %v1979 = vmul.f32 %v1978, %v1977
      %v1980 = vmul.f32 0.5, %v1979
      %v1981 = vsub.f32 1.5, %v1980
      %v1982 = vmul.f32 %v1977, %v1981
      %vm1983 = vweird.f32 %v1961
      %vm1984 = vweird.f32 %v1977
      %vm1985 = vmor %vm1983, %vm1984
      %v1986 = vsel %vm1985, %v1977, %v1982
      %v1987 = vrsqrt.pop %v1962
      %v1988 = vmul.f32 %v1987, %v1962
      %v1989 = vmul.f32 %v1988, %v1987
      %v1990 = vmul.f32 0.5, %v1989
      %v1991 = vsub.f32 1.5, %v1990
      %v1992 = vmul.f32 %v1987, %v1991
      %vm1993 = vweird.f32 %v1962
      %vm1994 = vweird.f32 %v1987
      %vm1995 = vmor %vm1993, %vm1994
      %v1996 = vsel %vm1995, %v1987, %v1992
      %v1997 = vrsqrt.pop %v1963
      %v1998 = vmul.f32 %v1997, %v1963
      %v1999 = vmul.f32 %v1998, %v1997
      %v2000 = vmul.f32 0.5, %v1999
      %v2001 = vsub.f32 1.5, %v2000
      %v2002 = vmul.f32 %v1997, %v2001
      %vm2003 = vweird.f32 %v1963
      %vm2004 = vweird.f32 %v1997
      %vm2005 = vmor %vm2003, %vm2004
      %v2006 = vsel %vm2005, %v1997, %v2002
      %v2007 = vrsqrt.pop %v1964
      %v2008 = vmul.f32 %v2007, %v1964
      %v2009 = vmul.f32 %v2008, %v2007
      %v2010 = vmul.f32 0.5, %v2009
      %v2011 = vsub.f32 1.5, %v2010
      %v2012 = vmul.f32 %v2007, %v2011
      %vm2013 = vweird.f32 %v1964
      %vm2014 = vweird.f32 %v2007
      %vm2015 = vmor %vm2013, %vm2014
      %v2016 = vsel %vm2015, %v2007, %v2012
      %v2017 = vrsqrt.pop %v1965
      %v2018 = vmul.f32 %v2017, %v1965
      %v2019 = vmul.f32 %v2018, %v2017
      %v2020 = vmul.f32 0.5, %v2019
      %v2021 = vsub.f32 1.5, %v2020
      %v2022 = vmul.f32 %v2017, %v2021
      %vm2023 = vweird.f32 %v1965
      %vm2024 = vweird.f32 %v2017
      %vm2025 = vmor %vm2023, %vm2024
      %v2026 = vsel %vm2025, %v2017, %v2022
      %v2027 = vrsqrt.pop %v1966
      %v2028 = vmul.f32 %v2027, %v1966
      %v2029 = vmul.f32 %v2028, %v2027
      %v2030 = vmul.f32 0.5, %v2029
      %v2031 = vsub.f32 1.5, %v2030
      %v2032 = vmul.f32 %v2027, %v2031
      %vm2033 = vweird.f32 %v1966
      %vm2034 = vweird.f32 %v2027
      %vm2035 = vmor %vm2033, %vm2034
      %v2036 = vsel %vm2035, %v2027, %v2032
      %v2037 = vrsqrt.pop %v1967
      %v2038 = vmul.f32 %v2037, %v1967
      %v2039 = vmul.f32 %v2038, %v2037
      %v2040 = vmul.f32 0.5, %v2039
      %v2041 = vsub.f32 1.5, %v2040
      %v2042 = vmul.f32 %v2037, %v2041
      %vm2043 = vweird.f32 %v1967
      %vm2044 = vweird.f32 %v2037
      %vm2045 = vmor %vm2043, %vm2044
      %v2046 = vsel %vm2045, %v2037, %v2042
      %v2047 = vrsqrt.pop %v1968
      %v2048 = vmul.f32 %v2047, %v1968
      %v2049 = vmul.f32 %v2048, %v2047
      %v2050 = vmul.f32 0.5, %v2049
      %v2051 = vsub.f32 1.5, %v2050
      %v2052 = vmul.f32 %v2047, %v2051
      %vm2053 = vweird.f32 %v1968
      %vm2054 = vweird.f32 %v2047
      %vm2055 = vmor %vm2053, %vm2054
      %v2056 = vsel %vm2055, %v2047, %v2052
      %v2057 = vrsqrt.pop %v1969
      %v2058 = vmul.f32 %v2057, %v1969
      %v2059 = vmul.f32 %v2058, %v2057
      %v2060 = vmul.f32 0.5, %v2059
      %v2061 = vsub.f32 1.5, %v2060
      %v2062 = vmul.f32 %v2057, %v2061
      %vm2063 = vweird.f32 %v1969
      %vm2064 = vweird.f32 %v2057
      %vm2065 = vmor %vm2063, %vm2064
      %v2066 = vsel %vm2065, %v2057, %v2062
      %v2067 = vrsqrt.pop %v1970
      %v2068 = vmul.f32 %v2067, %v1970
      %v2069 = vmul.f32 %v2068, %v2067
      %v2070 = vmul.f32 0.5, %v2069
      %v2071 = vsub.f32 1.5, %v2070
      %v2072 = vmul.f32 %v2067, %v2071
      %vm2073 = vweird.f32 %v1970
      %vm2074 = vweird.f32 %v2067
      %vm2075 = vmor %vm2073, %vm2074
      %v2076 = vsel %vm2075, %v2067, %v2072
      %v2077 = vrsqrt.pop %v1971
      %v2078 = vmul.f32 %v2077, %v1971
      %v2079 = vmul.f32 %v2078, %v2077
      %v2080 = vmul.f32 0.5, %v2079
      %v2081 = vsub.f32 1.5, %v2080
      %v2082 = vmul.f32 %v2077, %v2081
      %vm2083 = vweird.f32 %v1971
      %vm2084 = vweird.f32 %v2077
      %vm2085 = vmor %vm2083, %vm2084
      %v2086 = vsel %vm2085, %v2077, %v2082
      %v2087 = vrsqrt.pop %v1972
      %v2088 = vmul.f32 %v2087, %v1972
      %v2089 = vmul.f32 %v2088, %v2087
      %v2090 = vmul.f32 0.5, %v2089
      %v2091 = vsub.f32 1.5, %v2090
      %v2092 = vmul.f32 %v2087, %v2091
      %vm2093 = vweird.f32 %v1972
      %vm2094 = vweird.f32 %v2087
      %vm2095 = vmor %vm2093, %vm2094
      %v2096 = vsel %vm2095, %v2087, %v2092
      %v2097 = vrsqrt.pop %v1973
      %v2098 = vmul.f32 %v2097, %v1973
      %v2099 = vmul.f32 %v2098, %v2097
      %v2100 = vmul.f32 0.5, %v2099
      %v2101 = vsub.f32 1.5, %v2100
      %v2102 = vmul.f32 %v2097, %v2101
      %vm2103 = vweird.f32 %v1973
      %vm2104 = vweird.f32 %v2097
      %vm2105 = vmor %vm2103, %vm2104
      %v2106 = vsel %vm2105, %v2097, %v2102
      %v2107 = vrsqrt.pop %v1974
      %v2108 = vmul.f32 %v2107, %v1974
      %v2109 = vmul.f32 %v2108, %v2107
      %v2110 = vmul.f32 0.5, %v2109
      %v2111 = vsub.f32 1.5, %v2110
      %v2112 = vmul.f32 %v2107, %v2111
      %vm2113 = vweird.f32 %v1974
      %vm2114 = vweird.f32 %v2107
      %vm2115 = vmor %vm2113, %vm2114
      %v2116 = vsel %vm2115, %v2107, %v2112
      %v2117 = vrsqrt.pop %v1975
      %v2118 = vmul.f32 %v2117, %v1975
      %v2119 = vmul.f32 %v2118, %v2117
      %v2120 = vmul.f32 0.5, %v2119
      %v2121 = vsub.f32 1.5, %v2120
      %v2122 = vmul.f32 %v2117, %v2121
      %vm2123 = vweird.f32 %v1975
      %vm2124 = vweird.f32 %v2117
      %vm2125 = vmor %vm2123, %vm2124
      %v2126 = vsel %vm2125, %v2117, %v2122
      %v2127 = vrsqrt.pop %v1976
      %v2128 = vmul.f32 %v2127, %v1976
      %v2129 = vmul.f32 %v2128, %v2127
      %v2130 = vmul.f32 0.5, %v2129
      %v2131 = vsub.f32 1.5, %v2130
      %v2132 = vmul.f32 %v2127, %v2131
      %vm2133 = vweird.f32 %v1976
      %vm2134 = vweird.f32 %v2127
      %vm2135 = vmor %vm2133, %vm2134
      %v2136 = vsel %vm2135, %v2127, %v2132
      %v2137 = vmul.f32 %v1680, %v1986
      %v2138 = vmul.f32 %v1681, %v1996
      %v2139 = vmul.f32 %v1682, %v2006
      %v2140 = vmul.f32 %v1683, %v2016
      %v2141 = vmul.f32 %v1684, %v2026
      %v2142 = vmul.f32 %v1685, %v2036
      %v2143 = vmul.f32 %v1686, %v2046
      %v2144 = vmul.f32 %v1687, %v2056
      %v2145 = vmul.f32 %v1688, %v2066
      %v2146 = vmul.f32 %v1689, %v2076
      %v2147 = vmul.f32 %v1690, %v2086
      %v2148 = vmul.f32 %v1691, %v2096
      %v2149 = vmul.f32 %v1692, %v2106
      %v2150 = vmul.f32 %v1693, %v2116
      %v2151 = vmul.f32 %v1694, %v2126
      %v2152 = vmul.f32 %v1695, %v2136
      %v2153 = vpack.c.bf16 %v2138, %v2137
      %v2154 = vpack.c.bf16 %v2140, %v2139
      %v2155 = vpack.c.bf16 %v2142, %v2141
      %v2156 = vpack.c.bf16 %v2144, %v2143
      %v2157 = vpack.c.bf16 %v2146, %v2145
      %v2158 = vpack.c.bf16 %v2148, %v2147
      %v2159 = vpack.c.bf16 %v2150, %v2149
      %v2160 = vpack.c.bf16 %v2152, %v2151
      %v2161 = vld [vmem:[%s9] sm:$0xf]
      %v2162 = vld [vmem:[%s9 + $0x4] sm:$0xf]
      %v2163 = vld [vmem:[%s9 + $0x8] sm:$0xf]
      %v2164 = vld [vmem:[%s9 + $0xc] sm:$0xf]
      %v2165 = vld [vmem:[%s9 + $0x10] sm:$0xf]
      %v2166 = vld [vmem:[%s9 + $0x14] sm:$0xf]
      %v2167 = vld [vmem:[%s9 + $0x18] sm:$0xf]
      %v2168 = vld [vmem:[%s9 + $0x1c] sm:$0xf]
      %v2169 = vld [vmem:[%s10] sm:$0x1]
      %v2171 = vperm.slane %v2169, 0
      %v2181 = vunpack.c.l.b16 %v2161
      %v2182 = vunpack.c.l.b16 %v2162
      %v2183 = vunpack.c.l.b16 %v2163
      %v2184 = vunpack.c.l.b16 %v2164
      %v2185 = vunpack.c.l.b16 %v2165
      %v2186 = vunpack.c.l.b16 %v2166
      %v2187 = vunpack.c.l.b16 %v2167
      %v2188 = vunpack.c.l.b16 %v2168
      %v2189 = vpack.c.b16 %v2182, %v2181
      %v2190 = vpack.c.b16 %v2184, %v2183
      %v2191 = vpack.c.b16 %v2186, %v2185
      %v2192 = vpack.c.b16 %v2188, %v2187
      %v2198 = vsel %vm1503, %v2153, 0
      %v2201 = vsel %vm1503, %v2154, 0
      %v2204 = vsel %vm1503, %v2155, 0
      %v2207 = vsel %vm1503, %v2156, 0
      %v2210 = vsel %vm1503, %v2157, 0
      %v2213 = vsel %vm1503, %v2158, 0
      %v2216 = vsel %vm1503, %v2159, 0
      %v2219 = vsel %vm1503, %v2160, 0
      %2221 = vmatpush.bf16.msra.mxu0 0
      %2222 = vmatpush.bf16.msra.mxu0 0
      %2223 = vmatpush.bf16.msra.mxu0 0
      %2224 = vmatpush.bf16.msra.mxu0 0
      %2225 = vmatpush.bf16.msra.mxu0 %v2192
      %2226 = vmatpush.bf16.msra.mxu0 %v2191
      %2227 = vmatpush.bf16.msra.mxu0 %v2190
      %2228 = vmatpush.bf16.msra.mxu0 %v2189
      %2229 = vmatmul.bf16.gmra.mxu0 %v2198
      %v2230 = vpop.f32.mrf.mxu0
      %v2231 = vadd.f32 %v2171, %v2230
      %v2232 = vpop.f32.mrf.mxu0
      %v2233 = vadd.f32 %v2171, %v2232
      %2234 = vmatmul.bf16.gmra.mxu0 %v2201
      %v2235 = vpop.f32.mrf.mxu0
      %v2236 = vadd.f32 %v2171, %v2235
      %v2237 = vpop.f32.mrf.mxu0
      %v2238 = vadd.f32 %v2171, %v2237
      %2239 = vmatmul.bf16.gmra.mxu0 %v2204
      %v2240 = vpop.f32.mrf.mxu0
      %v2241 = vadd.f32 %v2171, %v2240
      %v2242 = vpop.f32.mrf.mxu0
      %v2243 = vadd.f32 %v2171, %v2242
      %2244 = vmatmul.bf16.gmra.mxu0 %v2207
      %v2245 = vpop.f32.mrf.mxu0
      %v2246 = vadd.f32 %v2171, %v2245
      %v2247 = vpop.f32.mrf.mxu0
      %v2248 = vadd.f32 %v2171, %v2247
      %2249 = vmatmul.bf16.gmra.mxu0 %v2210
      %v2250 = vpop.f32.mrf.mxu0
      %v2251 = vadd.f32 %v2171, %v2250
      %v2252 = vpop.f32.mrf.mxu0
      %v2253 = vadd.f32 %v2171, %v2252
      %2254 = vmatmul.bf16.gmra.mxu0 %v2213
      %v2255 = vpop.f32.mrf.mxu0
      %v2256 = vadd.f32 %v2171, %v2255
      %v2257 = vpop.f32.mrf.mxu0
      %v2258 = vadd.f32 %v2171, %v2257
      %2259 = vmatmul.bf16.gmra.mxu0 %v2216
      %v2260 = vpop.f32.mrf.mxu0
      %v2261 = vadd.f32 %v2171, %v2260
      %v2262 = vpop.f32.mrf.mxu0
      %v2263 = vadd.f32 %v2171, %v2262
      %2264 = vmatmul.bf16.gmra.mxu0 %v2219
      %v2265 = vpop.f32.mrf.mxu0
      %v2266 = vadd.f32 %v2171, %v2265
      %v2267 = vpop.f32.mrf.mxu0
      %v2268 = vadd.f32 %v2171, %v2267
      %2269 = vdwg.mxu0
      %v2270 = vmax.f32 %v2231, 0.0
      %v2271 = vmax.f32 %v2233, 0.0
      %v2272 = vmax.f32 %v2236, 0.0
      %v2273 = vmax.f32 %v2238, 0.0
      %v2274 = vmax.f32 %v2241, 0.0
      %v2275 = vmax.f32 %v2243, 0.0
      %v2276 = vmax.f32 %v2246, 0.0
      %v2277 = vmax.f32 %v2248, 0.0
      %v2278 = vmax.f32 %v2251, 0.0
      %v2279 = vmax.f32 %v2253, 0.0
      %v2280 = vmax.f32 %v2256, 0.0
      %v2281 = vmax.f32 %v2258, 0.0
      %v2282 = vmax.f32 %v2261, 0.0
      %v2283 = vmax.f32 %v2263, 0.0
      %v2284 = vmax.f32 %v2266, 0.0
      %v2285 = vmax.f32 %v2268, 0.0
      %v2286 = vpack.c.bf16 %v2271, %v2270
      %v2287 = vpack.c.bf16 %v2273, %v2272
      %v2288 = vpack.c.bf16 %v2275, %v2274
      %v2289 = vpack.c.bf16 %v2277, %v2276
      %v2290 = vpack.c.bf16 %v2279, %v2278
      %v2291 = vpack.c.bf16 %v2281, %v2280
      %v2292 = vpack.c.bf16 %v2283, %v2282
      %v2293 = vpack.c.bf16 %v2285, %v2284
      %v2294 = vld [vmem:[%s11] sm:$0xff]
      %v2295 = vld [vmem:[%s11 + $0x8] sm:$0xff]
      %v2296 = vld [vmem:[%s11 + $0x10] sm:$0xff]
      %v2297 = vld [vmem:[%s11 + $0x18] sm:$0xff]
      %v2298 = vld [vmem:[%s11 + $0x20] sm:$0xff]
      %v2299 = vld [vmem:[%s11 + $0x28] sm:$0xff]
      %v2300 = vld [vmem:[%s11 + $0x30] sm:$0xff]
      %v2301 = vld [vmem:[%s11 + $0x38] sm:$0xff]
      %v2302 = vld [vmem:[%s11 + $0x40] sm:$0xff]
      %v2303 = vld [vmem:[%s11 + $0x48] sm:$0xff]
      %v2304 = vld [vmem:[%s11 + $0x50] sm:$0xff]
      %v2305 = vld [vmem:[%s11 + $0x58] sm:$0xff]
      %v2306 = vld [vmem:[%s11 + $0x60] sm:$0xff]
      %v2307 = vld [vmem:[%s11 + $0x68] sm:$0xff]
      %v2308 = vld [vmem:[%s11 + $0x70] sm:$0xff]
      %v2309 = vld [vmem:[%s11 + $0x78] sm:$0xff]
      %v2310 = vld [vmem:[%s12] sm:$0x3]
      %v2312 = vperm.slane %v2310, 0
      %v2313 = vperm.slane %v2310, 1
      %v2332 = vunpack.c.l.b16 %v2294
      %v2333 = vunpack.c.h.b16 %v2294
      %v2334 = vunpack.c.l.b16 %v2295
      %v2335 = vunpack.c.h.b16 %v2295
      %v2336 = vunpack.c.l.b16 %v2296
      %v2337 = vunpack.c.h.b16 %v2296
      %v2338 = vunpack.c.l.b16 %v2297
      %v2339 = vunpack.c.h.b16 %v2297
      %v2340 = vunpack.c.l.b16 %v2298
      %v2341 = vunpack.c.h.b16 %v2298
      %v2342 = vunpack.c.l.b16 %v2299
      %v2343 = vunpack.c.h.b16 %v2299
      %v2344 = vunpack.c.l.b16 %v2300
      %v2345 = vunpack.c.h.b16 %v2300
      %v2346 = vunpack.c.l.b16 %v2301
      %v2347 = vunpack.c.h.b16 %v2301
      %v2348 = vunpack.c.l.b16 %v2302
      %v2349 = vunpack.c.h.b16 %v2302
      %v2350 = vunpack.c.l.b16 %v2303
      %v2351 = vunpack.c.h.b16 %v2303
      %v2352 = vunpack.c.l.b16 %v2304
      %v2353 = vunpack.c.h.b16 %v2304
      %v2354 = vunpack.c.l.b16 %v2305
      %v2355 = vunpack.c.h.b16 %v2305
      %v2356 = vunpack.c.l.b16 %v2306
      %v2357 = vunpack.c.h.b16 %v2306
      %v2358 = vunpack.c.l.b16 %v2307
      %v2359 = vunpack.c.h.b16 %v2307
      %v2360 = vunpack.c.l.b16 %v2308
      %v2361 = vunpack.c.h.b16 %v2308
      %v2362 = vunpack.c.l.b16 %v2309
      %v2363 = vunpack.c.h.b16 %v2309
      %v2364 = vpack.c.b16 %v2334, %v2332
      %v2365 = vpack.c.b16 %v2335, %v2333
      %v2366 = vpack.c.b16 %v2338, %v2336
      %v2367 = vpack.c.b16 %v2339, %v2337
      %v2368 = vpack.c.b16 %v2342, %v2340
      %v2369 = vpack.c.b16 %v2343, %v2341
      %v2370 = vpack.c.b16 %v2346, %v2344
      %v2371 = vpack.c.b16 %v2347, %v2345
      %v2372 = vpack.c.b16 %v2350, %v2348
      %v2373 = vpack.c.b16 %v2351, %v2349
      %v2374 = vpack.c.b16 %v2354, %v2352
      %v2375 = vpack.c.b16 %v2355, %v2353
      %v2376 = vpack.c.b16 %v2358, %v2356
      %v2377 = vpack.c.b16 %v2359, %v2357
      %v2378 = vpack.c.b16 %v2362, %v2360
      %v2379 = vpack.c.b16 %v2363, %v2361
      %2396 = vmatpush.bf16.msra.mxu0 %v2378
      %2397 = vmatpush.bf16.msra.mxu0 %v2376
      %2398 = vmatpush.bf16.msra.mxu0 %v2374
      %2399 = vmatpush.bf16.msra.mxu0 %v2372
      %2400 = vmatpush.bf16.msra.mxu0 %v2370
      %2401 = vmatpush.bf16.msra.mxu0 %v2368
      %2402 = vmatpush.bf16.msra.mxu0 %v2366
      %2403 = vmatpush.bf16.msra.mxu0 %v2364
      %2404 = vmatmul.bf16.gmra.mxu0 %v2286
      %v2405 = vpop.f32.mrf.mxu0
      %v2406 = vadd.f32 %v2312, %v2405
      %v2407 = vpop.f32.mrf.mxu0
      %v2408 = vadd.f32 %v2312, %v2407
      %2409 = vmatmul.bf16.gmra.mxu0 %v2287
      %v2410 = vpop.f32.mrf.mxu0
      %v2411 = vadd.f32 %v2312, %v2410
      %v2412 = vpop.f32.mrf.mxu0
      %v2413 = vadd.f32 %v2312, %v2412
      %2414 = vmatmul.bf16.gmra.mxu0 %v2288
      %v2415 = vpop.f32.mrf.mxu0
      %v2416 = vadd.f32 %v2312, %v2415
      %v2417 = vpop.f32.mrf.mxu0
      %v2418 = vadd.f32 %v2312, %v2417
      %2419 = vmatmul.bf16.gmra.mxu0 %v2289
      %v2420 = vpop.f32.mrf.mxu0
      %v2421 = vadd.f32 %v2312, %v2420
      %v2422 = vpop.f32.mrf.mxu0
      %v2423 = vadd.f32 %v2312, %v2422
      %2424 = vmatmul.bf16.gmra.mxu0 %v2290
      %v2425 = vpop.f32.mrf.mxu0
      %v2426 = vadd.f32 %v2312, %v2425
      %v2427 = vpop.f32.mrf.mxu0
      %v2428 = vadd.f32 %v2312, %v2427
      %2429 = vmatmul.bf16.gmra.mxu0 %v2291
      %v2430 = vpop.f32.mrf.mxu0
      %v2431 = vadd.f32 %v2312, %v2430
      %v2432 = vpop.f32.mrf.mxu0
      %v2433 = vadd.f32 %v2312, %v2432
      %2434 = vmatmul.bf16.gmra.mxu0 %v2292
      %v2435 = vpop.f32.mrf.mxu0
      %v2436 = vadd.f32 %v2312, %v2435
      %v2437 = vpop.f32.mrf.mxu0
      %v2438 = vadd.f32 %v2312, %v2437
      %2439 = vmatmul.bf16.gmra.mxu0 %v2293
      %v2440 = vpop.f32.mrf.mxu0
      %v2441 = vadd.f32 %v2312, %v2440
      %v2442 = vpop.f32.mrf.mxu0
      %v2443 = vadd.f32 %v2312, %v2442
      %2444 = vdwg.mxu0
      %2445 = vmatpush.bf16.msra.mxu0 %v2379
      %2446 = vmatpush.bf16.msra.mxu0 %v2377
      %2447 = vmatpush.bf16.msra.mxu0 %v2375
      %2448 = vmatpush.bf16.msra.mxu0 %v2373
      %2449 = vmatpush.bf16.msra.mxu0 %v2371
      %2450 = vmatpush.bf16.msra.mxu0 %v2369
      %2451 = vmatpush.bf16.msra.mxu0 %v2367
      %2452 = vmatpush.bf16.msra.mxu0 %v2365
      %2453 = vmatmul.bf16.gmra.mxu0 %v2286
      %v2454 = vpop.f32.mrf.mxu0
      %v2455 = vadd.f32 %v2313, %v2454
      %v2456 = vpop.f32.mrf.mxu0
      %v2457 = vadd.f32 %v2313, %v2456
      %2458 = vmatmul.bf16.gmra.mxu0 %v2287
      %v2459 = vpop.f32.mrf.mxu0
      %v2460 = vadd.f32 %v2313, %v2459
      %v2461 = vpop.f32.mrf.mxu0
      %v2462 = vadd.f32 %v2313, %v2461
      %2463 = vmatmul.bf16.gmra.mxu0 %v2288
      %v2464 = vpop.f32.mrf.mxu0
      %v2465 = vadd.f32 %v2313, %v2464
      %v2466 = vpop.f32.mrf.mxu0
      %v2467 = vadd.f32 %v2313, %v2466
      %2468 = vmatmul.bf16.gmra.mxu0 %v2289
      %v2469 = vpop.f32.mrf.mxu0
      %v2470 = vadd.f32 %v2313, %v2469
      %v2471 = vpop.f32.mrf.mxu0
      %v2472 = vadd.f32 %v2313, %v2471
      %2473 = vmatmul.bf16.gmra.mxu0 %v2290
      %v2474 = vpop.f32.mrf.mxu0
      %v2475 = vadd.f32 %v2313, %v2474
      %v2476 = vpop.f32.mrf.mxu0
      %v2477 = vadd.f32 %v2313, %v2476
      %2478 = vmatmul.bf16.gmra.mxu0 %v2291
      %v2479 = vpop.f32.mrf.mxu0
      %v2480 = vadd.f32 %v2313, %v2479
      %v2481 = vpop.f32.mrf.mxu0
      %v2482 = vadd.f32 %v2313, %v2481
      %2483 = vmatmul.bf16.gmra.mxu0 %v2292
      %v2484 = vpop.f32.mrf.mxu0
      %v2485 = vadd.f32 %v2313, %v2484
      %v2486 = vpop.f32.mrf.mxu0
      %v2487 = vadd.f32 %v2313, %v2486
      %2488 = vmatmul.bf16.gmra.mxu0 %v2293
      %v2489 = vpop.f32.mrf.mxu0
      %v2490 = vadd.f32 %v2313, %v2489
      %v2491 = vpop.f32.mrf.mxu0
      %v2492 = vadd.f32 %v2313, %v2491
      %2493 = vdwg.mxu0
      %v2494 = vand.u32 2147483647, %v2406
      %v2495 = vand.u32 2147483647, %v2455
      %v2496 = vand.u32 2147483647, %v2408
      %v2497 = vand.u32 2147483647, %v2457
      %v2498 = vand.u32 2147483647, %v2411
      %v2499 = vand.u32 2147483647, %v2460
      %v2500 = vand.u32 2147483647, %v2413
      %v2501 = vand.u32 2147483647, %v2462
      %v2502 = vand.u32 2147483647, %v2416
      %v2503 = vand.u32 2147483647, %v2465
      %v2504 = vand.u32 2147483647, %v2418
      %v2505 = vand.u32 2147483647, %v2467
      %v2506 = vand.u32 2147483647, %v2421
      %v2507 = vand.u32 2147483647, %v2470
      %v2508 = vand.u32 2147483647, %v2423
      %v2509 = vand.u32 2147483647, %v2472
      %v2510 = vand.u32 2147483647, %v2426
      %v2511 = vand.u32 2147483647, %v2475
      %v2512 = vand.u32 2147483647, %v2428
      %v2513 = vand.u32 2147483647, %v2477
      %v2514 = vand.u32 2147483647, %v2431
      %v2515 = vand.u32 2147483647, %v2480
      %v2516 = vand.u32 2147483647, %v2433
      %v2517 = vand.u32 2147483647, %v2482
      %v2518 = vand.u32 2147483647, %v2436
      %v2519 = vand.u32 2147483647, %v2485
      %v2520 = vand.u32 2147483647, %v2438
      %v2521 = vand.u32 2147483647, %v2487
      %v2522 = vand.u32 2147483647, %v2441
      %v2523 = vand.u32 2147483647, %v2490
      %v2524 = vand.u32 2147483647, %v2443
      %v2525 = vand.u32 2147483647, %v2492
      %v2526 = vsub.f32 0.0, %v2494
      %v2527 = vsub.f32 0.0, %v2495
      %v2528 = vsub.f32 0.0, %v2496
      %v2529 = vsub.f32 0.0, %v2497
      %v2530 = vsub.f32 0.0, %v2498
      %v2531 = vsub.f32 0.0, %v2499
      %v2532 = vsub.f32 0.0, %v2500
      %v2533 = vsub.f32 0.0, %v2501
      %v2534 = vsub.f32 0.0, %v2502
      %v2535 = vsub.f32 0.0, %v2503
      %v2536 = vsub.f32 0.0, %v2504
      %v2537 = vsub.f32 0.0, %v2505
      %v2538 = vsub.f32 0.0, %v2506
      %v2539 = vsub.f32 0.0, %v2507
      %v2540 = vsub.f32 0.0, %v2508
      %v2541 = vsub.f32 0.0, %v2509
      %v2542 = vsub.f32 0.0, %v2510
      %v2543 = vsub.f32 0.0, %v2511
      %v2544 = vsub.f32 0.0, %v2512
      %v2545 = vsub.f32 0.0, %v2513
      %v2546 = vsub.f32 0.0, %v2514
      %v2547 = vsub.f32 0.0, %v2515
      %v2548 = vsub.f32 0.0, %v2516
      %v2549 = vsub.f32 0.0, %v2517
      %v2550 = vsub.f32 0.0, %v2518
      %v2551 = vsub.f32 0.0, %v2519
      %v2552 = vsub.f32 0.0, %v2520
      %v2553 = vsub.f32 0.0, %v2521
      %v2554 = vsub.f32 0.0, %v2522
      %v2555 = vsub.f32 0.0, %v2523
      %v2556 = vsub.f32 0.0, %v2524
      %v2557 = vsub.f32 0.0, %v2525
      %v2558 = vmul.f32 %v2526, 1.442695
      %v2559 = vpow.pop %v2558
      %v2560 = vmul.f32 %v2527, 1.442695
      %v2561 = vpow.pop %v2560
      %v2562 = vmul.f32 %v2528, 1.442695
      %v2563 = vpow.pop %v2562
      %v2564 = vmul.f32 %v2529, 1.442695
      %v2565 = vpow.pop %v2564
      %v2566 = vmul.f32 %v2530, 1.442695
      %v2567 = vpow.pop %v2566
      %v2568 = vmul.f32 %v2531, 1.442695
      %v2569 = vpow.pop %v2568
      %v2570 = vmul.f32 %v2532, 1.442695
      %v2571 = vpow.pop %v2570
      %v2572 = vmul.f32 %v2533, 1.442695
      %v2573 = vpow.pop %v2572
      %v2574 = vmul.f32 %v2534, 1.442695
      %v2575 = vpow.pop %v2574
      %v2576 = vmul.f32 %v2535, 1.442695
      %v2577 = vpow.pop %v2576
      %v2578 = vmul.f32 %v2536, 1.442695
      %v2579 = vpow.pop %v2578
      %v2580 = vmul.f32 %v2537, 1.442695
      %v2581 = vpow.pop %v2580
      %v2582 = vmul.f32 %v2538, 1.442695
      %v2583 = vpow.pop %v2582
      %v2584 = vmul.f32 %v2539, 1.442695
      %v2585 = vpow.pop %v2584
      %v2586 = vmul.f32 %v2540, 1.442695
      %v2587 = vpow.pop %v2586
      %v2588 = vmul.f32 %v2541, 1.442695
      %v2589 = vpow.pop %v2588
      %v2590 = vmul.f32 %v2542, 1.442695
      %v2591 = vpow.pop %v2590
      %v2592 = vmul.f32 %v2543, 1.442695
      %v2593 = vpow.pop %v2592
      %v2594 = vmul.f32 %v2544, 1.442695
      %v2595 = vpow.pop %v2594
      %v2596 = vmul.f32 %v2545, 1.442695
      %v2597 = vpow.pop %v2596
      %v2598 = vmul.f32 %v2546, 1.442695
      %v2599 = vpow.pop %v2598
      %v2600 = vmul.f32 %v2547, 1.442695
      %v2601 = vpow.pop %v2600
      %v2602 = vmul.f32 %v2548, 1.442695
      %v2603 = vpow.pop %v2602
      %v2604 = vmul.f32 %v2549, 1.442695
      %v2605 = vpow.pop %v2604
      %v2606 = vmul.f32 %v2550, 1.442695
      %v2607 = vpow.pop %v2606
      %v2608 = vmul.f32 %v2551, 1.442695
      %v2609 = vpow.pop %v2608
      %v2610 = vmul.f32 %v2552, 1.442695
      %v2611 = vpow.pop %v2610
      %v2612 = vmul.f32 %v2553, 1.442695
      %v2613 = vpow.pop %v2612
      %v2614 = vmul.f32 %v2554, 1.442695
      %v2615 = vpow.pop %v2614
      %v2616 = vmul.f32 %v2555, 1.442695
      %v2617 = vpow.pop %v2616
      %v2618 = vmul.f32 %v2556, 1.442695
      %v2619 = vpow.pop %v2618
      %v2620 = vmul.f32 %v2557, 1.442695
      %v2621 = vpow.pop %v2620
      %v2622 = vmax.f32 %v2406, 0.0
      %v2623 = vmax.f32 %v2455, 0.0
      %v2624 = vmax.f32 %v2408, 0.0
      %v2625 = vmax.f32 %v2457, 0.0
      %v2626 = vmax.f32 %v2411, 0.0
      %v2627 = vmax.f32 %v2460, 0.0
      %v2628 = vmax.f32 %v2413, 0.0
      %v2629 = vmax.f32 %v2462, 0.0
      %v2630 = vmax.f32 %v2416, 0.0
      %v2631 = vmax.f32 %v2465, 0.0
      %v2632 = vmax.f32 %v2418, 0.0
      %v2633 = vmax.f32 %v2467, 0.0
      %v2634 = vmax.f32 %v2421, 0.0
      %v2635 = vmax.f32 %v2470, 0.0
      %v2636 = vmax.f32 %v2423, 0.0
      %v2637 = vmax.f32 %v2472, 0.0
      %v2638 = vmax.f32 %v2426, 0.0
      %v2639 = vmax.f32 %v2475, 0.0
      %v2640 = vmax.f32 %v2428, 0.0
      %v2641 = vmax.f32 %v2477, 0.0
      %v2642 = vmax.f32 %v2431, 0.0
      %v2643 = vmax.f32 %v2480, 0.0
      %v2644 = vmax.f32 %v2433, 0.0
      %v2645 = vmax.f32 %v2482, 0.0
      %v2646 = vmax.f32 %v2436, 0.0
      %v2647 = vmax.f32 %v2485, 0.0
      %v2648 = vmax.f32 %v2438, 0.0
      %v2649 = vmax.f32 %v2487, 0.0
      %v2650 = vmax.f32 %v2441, 0.0
      %v2651 = vmax.f32 %v2490, 0.0
      %v2652 = vmax.f32 %v2443, 0.0
      %v2653 = vmax.f32 %v2492, 0.0
      %v2654 = vadd.f32 %v2559, 1.0
      %v2655 = vlog2.pop %v2654
      %v2656 = vmul.f32 %v2655, 0.6931472
      %v2657 = vmul.f32 -0.5, %v2559
      %v2658 = vadd.f32 %v2657, 1.0
      %v2659 = vmul.f32 %v2658, %v2559
      %v2660 = vand.u32 2147483647, %v2559
      %vm2661 = vcmp.lt.f32.partialorder %v2660, 0.0004427343
      %v2662 = vsel %vm2661, %v2659, %v2656
      %v2663 = vadd.f32 %v2561, 1.0
      %v2664 = vlog2.pop %v2663
      %v2665 = vmul.f32 %v2664, 0.6931472
      %v2666 = vmul.f32 -0.5, %v2561
      %v2667 = vadd.f32 %v2666, 1.0
      %v2668 = vmul.f32 %v2667, %v2561
      %v2669 = vand.u32 2147483647, %v2561
      %vm2670 = vcmp.lt.f32.partialorder %v2669, 0.0004427343
      %v2671 = vsel %vm2670, %v2668, %v2665
      %v2672 = vadd.f32 %v2563, 1.0
      %v2673 = vlog2.pop %v2672
      %v2674 = vmul.f32 %v2673, 0.6931472
      %v2675 = vmul.f32 -0.5, %v2563
      %v2676 = vadd.f32 %v2675, 1.0
      %v2677 = vmul.f32 %v2676, %v2563
      %v2678 = vand.u32 2147483647, %v2563
      %vm2679 = vcmp.lt.f32.partialorder %v2678, 0.0004427343
      %v2680 = vsel %vm2679, %v2677, %v2674
      %v2681 = vadd.f32 %v2565, 1.0
      %v2682 = vlog2.pop %v2681
      %v2683 = vmul.f32 %v2682, 0.6931472
      %v2684 = vmul.f32 -0.5, %v2565
      %v2685 = vadd.f32 %v2684, 1.0
      %v2686 = vmul.f32 %v2685, %v2565
      %v2687 = vand.u32 2147483647, %v2565
      %vm2688 = vcmp.lt.f32.partialorder %v2687, 0.0004427343
      %v2689 = vsel %vm2688, %v2686, %v2683
      %v2690 = vadd.f32 %v2567, 1.0
      %v2691 = vlog2.pop %v2690
      %v2692 = vmul.f32 %v2691, 0.6931472
      %v2693 = vmul.f32 -0.5, %v2567
      %v2694 = vadd.f32 %v2693, 1.0
      %v2695 = vmul.f32 %v2694, %v2567
      %v2696 = vand.u32 2147483647, %v2567
      %vm2697 = vcmp.lt.f32.partialorder %v2696, 0.0004427343
      %v2698 = vsel %vm2697, %v2695, %v2692
      %v2699 = vadd.f32 %v2569, 1.0
      %v2700 = vlog2.pop %v2699
      %v2701 = vmul.f32 %v2700, 0.6931472
      %v2702 = vmul.f32 -0.5, %v2569
      %v2703 = vadd.f32 %v2702, 1.0
      %v2704 = vmul.f32 %v2703, %v2569
      %v2705 = vand.u32 2147483647, %v2569
      %vm2706 = vcmp.lt.f32.partialorder %v2705, 0.0004427343
      %v2707 = vsel %vm2706, %v2704, %v2701
      %v2708 = vadd.f32 %v2571, 1.0
      %v2709 = vlog2.pop %v2708
      %v2710 = vmul.f32 %v2709, 0.6931472
      %v2711 = vmul.f32 -0.5, %v2571
      %v2712 = vadd.f32 %v2711, 1.0
      %v2713 = vmul.f32 %v2712, %v2571
      %v2714 = vand.u32 2147483647, %v2571
      %vm2715 = vcmp.lt.f32.partialorder %v2714, 0.0004427343
      %v2716 = vsel %vm2715, %v2713, %v2710
      %v2717 = vadd.f32 %v2573, 1.0
      %v2718 = vlog2.pop %v2717
      %v2719 = vmul.f32 %v2718, 0.6931472
      %v2720 = vmul.f32 -0.5, %v2573
      %v2721 = vadd.f32 %v2720, 1.0
      %v2722 = vmul.f32 %v2721, %v2573
      %v2723 = vand.u32 2147483647, %v2573
      %vm2724 = vcmp.lt.f32.partialorder %v2723, 0.0004427343
      %v2725 = vsel %vm2724, %v2722, %v2719
      %v2726 = vadd.f32 %v2575, 1.0
      %v2727 = vlog2.pop %v2726
      %v2728 = vmul.f32 %v2727, 0.6931472
      %v2729 = vmul.f32 -0.5, %v2575
      %v2730 = vadd.f32 %v2729, 1.0
      %v2731 = vmul.f32 %v2730, %v2575
      %v2732 = vand.u32 2147483647, %v2575
      %vm2733 = vcmp.lt.f32.partialorder %v2732, 0.0004427343
      %v2734 = vsel %vm2733, %v2731, %v2728
      %v2735 = vadd.f32 %v2577, 1.0
      %v2736 = vlog2.pop %v2735
      %v2737 = vmul.f32 %v2736, 0.6931472
      %v2738 = vmul.f32 -0.5, %v2577
      %v2739 = vadd.f32 %v2738, 1.0
      %v2740 = vmul.f32 %v2739, %v2577
      %v2741 = vand.u32 2147483647, %v2577
      %vm2742 = vcmp.lt.f32.partialorder %v2741, 0.0004427343
      %v2743 = vsel %vm2742, %v2740, %v2737
      %v2744 = vadd.f32 %v2579, 1.0
      %v2745 = vlog2.pop %v2744
      %v2746 = vmul.f32 %v2745, 0.6931472
      %v2747 = vmul.f32 -0.5, %v2579
      %v2748 = vadd.f32 %v2747, 1.0
      %v2749 = vmul.f32 %v2748, %v2579
      %v2750 = vand.u32 2147483647, %v2579
      %vm2751 = vcmp.lt.f32.partialorder %v2750, 0.0004427343
      %v2752 = vsel %vm2751, %v2749, %v2746
      %v2753 = vadd.f32 %v2581, 1.0
      %v2754 = vlog2.pop %v2753
      %v2755 = vmul.f32 %v2754, 0.6931472
      %v2756 = vmul.f32 -0.5, %v2581
      %v2757 = vadd.f32 %v2756, 1.0
      %v2758 = vmul.f32 %v2757, %v2581
      %v2759 = vand.u32 2147483647, %v2581
      %vm2760 = vcmp.lt.f32.partialorder %v2759, 0.0004427343
      %v2761 = vsel %vm2760, %v2758, %v2755
      %v2762 = vadd.f32 %v2583, 1.0
      %v2763 = vlog2.pop %v2762
      %v2764 = vmul.f32 %v2763, 0.6931472
      %v2765 = vmul.f32 -0.5, %v2583
      %v2766 = vadd.f32 %v2765, 1.0
      %v2767 = vmul.f32 %v2766, %v2583
      %v2768 = vand.u32 2147483647, %v2583
      %vm2769 = vcmp.lt.f32.partialorder %v2768, 0.0004427343
      %v2770 = vsel %vm2769, %v2767, %v2764
      %v2771 = vadd.f32 %v2585, 1.0
      %v2772 = vlog2.pop %v2771
      %v2773 = vmul.f32 %v2772, 0.6931472
      %v2774 = vmul.f32 -0.5, %v2585
      %v2775 = vadd.f32 %v2774, 1.0
      %v2776 = vmul.f32 %v2775, %v2585
      %v2777 = vand.u32 2147483647, %v2585
      %vm2778 = vcmp.lt.f32.partialorder %v2777, 0.0004427343
      %v2779 = vsel %vm2778, %v2776, %v2773
      %v2780 = vadd.f32 %v2587, 1.0
      %v2781 = vlog2.pop %v2780
      %v2782 = vmul.f32 %v2781, 0.6931472
      %v2783 = vmul.f32 -0.5, %v2587
      %v2784 = vadd.f32 %v2783, 1.0
      %v2785 = vmul.f32 %v2784, %v2587
      %v2786 = vand.u32 2147483647, %v2587
      %vm2787 = vcmp.lt.f32.partialorder %v2786, 0.0004427343
      %v2788 = vsel %vm2787, %v2785, %v2782
      %v2789 = vadd.f32 %v2589, 1.0
      %v2790 = vlog2.pop %v2789
      %v2791 = vmul.f32 %v2790, 0.6931472
      %v2792 = vmul.f32 -0.5, %v2589
      %v2793 = vadd.f32 %v2792, 1.0
      %v2794 = vmul.f32 %v2793, %v2589
      %v2795 = vand.u32 2147483647, %v2589
      %vm2796 = vcmp.lt.f32.partialorder %v2795, 0.0004427343
      %v2797 = vsel %vm2796, %v2794, %v2791
      %v2798 = vadd.f32 %v2591, 1.0
      %v2799 = vlog2.pop %v2798
      %v2800 = vmul.f32 %v2799, 0.6931472
      %v2801 = vmul.f32 -0.5, %v2591
      %v2802 = vadd.f32 %v2801, 1.0
      %v2803 = vmul.f32 %v2802, %v2591
      %v2804 = vand.u32 2147483647, %v2591
      %vm2805 = vcmp.lt.f32.partialorder %v2804, 0.0004427343
      %v2806 = vsel %vm2805, %v2803, %v2800
      %v2807 = vadd.f32 %v2593, 1.0
      %v2808 = vlog2.pop %v2807
      %v2809 = vmul.f32 %v2808, 0.6931472
      %v2810 = vmul.f32 -0.5, %v2593
      %v2811 = vadd.f32 %v2810, 1.0
      %v2812 = vmul.f32 %v2811, %v2593
      %v2813 = vand.u32 2147483647, %v2593
      %vm2814 = vcmp.lt.f32.partialorder %v2813, 0.0004427343
      %v2815 = vsel %vm2814, %v2812, %v2809
      %v2816 = vadd.f32 %v2595, 1.0
      %v2817 = vlog2.pop %v2816
      %v2818 = vmul.f32 %v2817, 0.6931472
      %v2819 = vmul.f32 -0.5, %v2595
      %v2820 = vadd.f32 %v2819, 1.0
      %v2821 = vmul.f32 %v2820, %v2595
      %v2822 = vand.u32 2147483647, %v2595
      %vm2823 = vcmp.lt.f32.partialorder %v2822, 0.0004427343
      %v2824 = vsel %vm2823, %v2821, %v2818
      %v2825 = vadd.f32 %v2597, 1.0
      %v2826 = vlog2.pop %v2825
      %v2827 = vmul.f32 %v2826, 0.6931472
      %v2828 = vmul.f32 -0.5, %v2597
      %v2829 = vadd.f32 %v2828, 1.0
      %v2830 = vmul.f32 %v2829, %v2597
      %v2831 = vand.u32 2147483647, %v2597
      %vm2832 = vcmp.lt.f32.partialorder %v2831, 0.0004427343
      %v2833 = vsel %vm2832, %v2830, %v2827
      %v2834 = vadd.f32 %v2599, 1.0
      %v2835 = vlog2.pop %v2834
      %v2836 = vmul.f32 %v2835, 0.6931472
      %v2837 = vmul.f32 -0.5, %v2599
      %v2838 = vadd.f32 %v2837, 1.0
      %v2839 = vmul.f32 %v2838, %v2599
      %v2840 = vand.u32 2147483647, %v2599
      %vm2841 = vcmp.lt.f32.partialorder %v2840, 0.0004427343
      %v2842 = vsel %vm2841, %v2839, %v2836
      %v2843 = vadd.f32 %v2601, 1.0
      %v2844 = vlog2.pop %v2843
      %v2845 = vmul.f32 %v2844, 0.6931472
      %v2846 = vmul.f32 -0.5, %v2601
      %v2847 = vadd.f32 %v2846, 1.0
      %v2848 = vmul.f32 %v2847, %v2601
      %v2849 = vand.u32 2147483647, %v2601
      %vm2850 = vcmp.lt.f32.partialorder %v2849, 0.0004427343
      %v2851 = vsel %vm2850, %v2848, %v2845
      %v2852 = vadd.f32 %v2603, 1.0
      %v2853 = vlog2.pop %v2852
      %v2854 = vmul.f32 %v2853, 0.6931472
      %v2855 = vmul.f32 -0.5, %v2603
      %v2856 = vadd.f32 %v2855, 1.0
      %v2857 = vmul.f32 %v2856, %v2603
      %v2858 = vand.u32 2147483647, %v2603
      %vm2859 = vcmp.lt.f32.partialorder %v2858, 0.0004427343
      %v2860 = vsel %vm2859, %v2857, %v2854
      %v2861 = vadd.f32 %v2605, 1.0
      %v2862 = vlog2.pop %v2861
      %v2863 = vmul.f32 %v2862, 0.6931472
      %v2864 = vmul.f32 -0.5, %v2605
      %v2865 = vadd.f32 %v2864, 1.0
      %v2866 = vmul.f32 %v2865, %v2605
      %v2867 = vand.u32 2147483647, %v2605
      %vm2868 = vcmp.lt.f32.partialorder %v2867, 0.0004427343
      %v2869 = vsel %vm2868, %v2866, %v2863
      %v2870 = vadd.f32 %v2607, 1.0
      %v2871 = vlog2.pop %v2870
      %v2872 = vmul.f32 %v2871, 0.6931472
      %v2873 = vmul.f32 -0.5, %v2607
      %v2874 = vadd.f32 %v2873, 1.0
      %v2875 = vmul.f32 %v2874, %v2607
      %v2876 = vand.u32 2147483647, %v2607
      %vm2877 = vcmp.lt.f32.partialorder %v2876, 0.0004427343
      %v2878 = vsel %vm2877, %v2875, %v2872
      %v2879 = vadd.f32 %v2609, 1.0
      %v2880 = vlog2.pop %v2879
      %v2881 = vmul.f32 %v2880, 0.6931472
      %v2882 = vmul.f32 -0.5, %v2609
      %v2883 = vadd.f32 %v2882, 1.0
      %v2884 = vmul.f32 %v2883, %v2609
      %v2885 = vand.u32 2147483647, %v2609
      %vm2886 = vcmp.lt.f32.partialorder %v2885, 0.0004427343
      %v2887 = vsel %vm2886, %v2884, %v2881
      %v2888 = vadd.f32 %v2611, 1.0
      %v2889 = vlog2.pop %v2888
      %v2890 = vmul.f32 %v2889, 0.6931472
      %v2891 = vmul.f32 -0.5, %v2611
      %v2892 = vadd.f32 %v2891, 1.0
      %v2893 = vmul.f32 %v2892, %v2611
      %v2894 = vand.u32 2147483647, %v2611
      %vm2895 = vcmp.lt.f32.partialorder %v2894, 0.0004427343
      %v2896 = vsel %vm2895, %v2893, %v2890
      %v2897 = vadd.f32 %v2613, 1.0
      %v2898 = vlog2.pop %v2897
      %v2899 = vmul.f32 %v2898, 0.6931472
      %v2900 = vmul.f32 -0.5, %v2613
      %v2901 = vadd.f32 %v2900, 1.0
      %v2902 = vmul.f32 %v2901, %v2613
      %v2903 = vand.u32 2147483647, %v2613
      %vm2904 = vcmp.lt.f32.partialorder %v2903, 0.0004427343
      %v2905 = vsel %vm2904, %v2902, %v2899
      %v2906 = vadd.f32 %v2615, 1.0
      %v2907 = vlog2.pop %v2906
      %v2908 = vmul.f32 %v2907, 0.6931472
      %v2909 = vmul.f32 -0.5, %v2615
      %v2910 = vadd.f32 %v2909, 1.0
      %v2911 = vmul.f32 %v2910, %v2615
      %v2912 = vand.u32 2147483647, %v2615
      %vm2913 = vcmp.lt.f32.partialorder %v2912, 0.0004427343
      %v2914 = vsel %vm2913, %v2911, %v2908
      %v2915 = vadd.f32 %v2617, 1.0
      %v2916 = vlog2.pop %v2915
      %v2917 = vmul.f32 %v2916, 0.6931472
      %v2918 = vmul.f32 -0.5, %v2617
      %v2919 = vadd.f32 %v2918, 1.0
      %v2920 = vmul.f32 %v2919, %v2617
      %v2921 = vand.u32 2147483647, %v2617
      %vm2922 = vcmp.lt.f32.partialorder %v2921, 0.0004427343
      %v2923 = vsel %vm2922, %v2920, %v2917
      %v2924 = vadd.f32 %v2619, 1.0
      %v2925 = vlog2.pop %v2924
      %v2926 = vmul.f32 %v2925, 0.6931472
      %v2927 = vmul.f32 -0.5, %v2619
      %v2928 = vadd.f32 %v2927, 1.0
      %v2929 = vmul.f32 %v2928, %v2619
      %v2930 = vand.u32 2147483647, %v2619
      %vm2931 = vcmp.lt.f32.partialorder %v2930, 0.0004427343
      %v2932 = vsel %vm2931, %v2929, %v2926
      %v2933 = vadd.f32 %v2621, 1.0
      %v2934 = vlog2.pop %v2933
      %v2935 = vmul.f32 %v2934, 0.6931472
      %v2936 = vmul.f32 -0.5, %v2621
      %v2937 = vadd.f32 %v2936, 1.0
      %v2938 = vmul.f32 %v2937, %v2621
      %v2939 = vand.u32 2147483647, %v2621
      %vm2940 = vcmp.lt.f32.partialorder %v2939, 0.0004427343
      %v2941 = vsel %vm2940, %v2938, %v2935
      %v2942 = vadd.f32 %v2622, %v2662
      %v2943 = vadd.f32 %v2623, %v2671
      %v2944 = vadd.f32 %v2624, %v2680
      %v2945 = vadd.f32 %v2625, %v2689
      %v2946 = vadd.f32 %v2626, %v2698
      %v2947 = vadd.f32 %v2627, %v2707
      %v2948 = vadd.f32 %v2628, %v2716
      %v2949 = vadd.f32 %v2629, %v2725
      %v2950 = vadd.f32 %v2630, %v2734
      %v2951 = vadd.f32 %v2631, %v2743
      %v2952 = vadd.f32 %v2632, %v2752
      %v2953 = vadd.f32 %v2633, %v2761
      %v2954 = vadd.f32 %v2634, %v2770
      %v2955 = vadd.f32 %v2635, %v2779
      %v2956 = vadd.f32 %v2636, %v2788
      %v2957 = vadd.f32 %v2637, %v2797
      %v2958 = vadd.f32 %v2638, %v2806
      %v2959 = vadd.f32 %v2639, %v2815
      %v2960 = vadd.f32 %v2640, %v2824
      %v2961 = vadd.f32 %v2641, %v2833
      %v2962 = vadd.f32 %v2642, %v2842
      %v2963 = vadd.f32 %v2643, %v2851
      %v2964 = vadd.f32 %v2644, %v2860
      %v2965 = vadd.f32 %v2645, %v2869
      %v2966 = vadd.f32 %v2646, %v2878
      %v2967 = vadd.f32 %v2647, %v2887
      %v2968 = vadd.f32 %v2648, %v2896
      %v2969 = vadd.f32 %v2649, %v2905
      %v2970 = vadd.f32 %v2650, %v2914
      %v2971 = vadd.f32 %v2651, %v2923
      %v2972 = vadd.f32 %v2652, %v2932
      %v2973 = vadd.f32 %v2653, %v2941
      %v2974 = vmul.f32 %v635, %v2406
      %v2975 = vmul.f32 %v636, %v2455
      %v2976 = vmul.f32 %v637, %v2408
      %v2977 = vmul.f32 %v638, %v2457
      %v2978 = vmul.f32 %v639, %v2411
      %v2979 = vmul.f32 %v640, %v2460
      %v2980 = vmul.f32 %v641, %v2413
      %v2981 = vmul.f32 %v642, %v2462
      %v2982 = vmul.f32 %v643, %v2416
      %v2983 = vmul.f32 %v644, %v2465
      %v2984 = vmul.f32 %v645, %v2418
      %v2985 = vmul.f32 %v646, %v2467
      %v2986 = vmul.f32 %v647, %v2421
      %v2987 = vmul.f32 %v648, %v2470
      %v2988 = vmul.f32 %v649, %v2423
      %v2989 = vmul.f32 %v650, %v2472
      %v2990 = vmul.f32 %v651, %v2426
      %v2991 = vmul.f32 %v652, %v2475
      %v2992 = vmul.f32 %v653, %v2428
      %v2993 = vmul.f32 %v654, %v2477
      %v2994 = vmul.f32 %v655, %v2431
      %v2995 = vmul.f32 %v656, %v2480
      %v2996 = vmul.f32 %v657, %v2433
      %v2997 = vmul.f32 %v658, %v2482
      %v2998 = vmul.f32 %v659, %v2436
      %v2999 = vmul.f32 %v660, %v2485
      %v3000 = vmul.f32 %v661, %v2438
      %v3001 = vmul.f32 %v662, %v2487
      %v3002 = vmul.f32 %v663, %v2441
      %v3003 = vmul.f32 %v664, %v2490
      %v3004 = vmul.f32 %v665, %v2443
      %v3005 = vmul.f32 %v666, %v2492
      %v3006 = vsub.f32 %v2942, %v2974
      %v3007 = vsub.f32 %v2943, %v2975
      %v3008 = vsub.f32 %v2944, %v2976
      %v3009 = vsub.f32 %v2945, %v2977
      %v3010 = vsub.f32 %v2946, %v2978
      %v3011 = vsub.f32 %v2947, %v2979
      %v3012 = vsub.f32 %v2948, %v2980
      %v3013 = vsub.f32 %v2949, %v2981
      %v3014 = vsub.f32 %v2950, %v2982
      %v3015 = vsub.f32 %v2951, %v2983
      %v3016 = vsub.f32 %v2952, %v2984
      %v3017 = vsub.f32 %v2953, %v2985
      %v3018 = vsub.f32 %v2954, %v2986
      %v3019 = vsub.f32 %v2955, %v2987
      %v3020 = vsub.f32 %v2956, %v2988
      %v3021 = vsub.f32 %v2957, %v2989
      %v3022 = vsub.f32 %v2958, %v2990
      %v3023 = vsub.f32 %v2959, %v2991
      %v3024 = vsub.f32 %v2960, %v2992
      %v3025 = vsub.f32 %v2961, %v2993
      %v3026 = vsub.f32 %v2962, %v2994
      %v3027 = vsub.f32 %v2963, %v2995
      %v3028 = vsub.f32 %v2964, %v2996
      %v3029 = vsub.f32 %v2965, %v2997
      %v3030 = vsub.f32 %v2966, %v2998
      %v3031 = vsub.f32 %v2967, %v2999
      %v3032 = vsub.f32 %v2968, %v3000
      %v3033 = vsub.f32 %v2969, %v3001
      %v3034 = vsub.f32 %v2970, %v3002
      %v3035 = vsub.f32 %v2971, %v3003
      %v3036 = vsub.f32 %v2972, %v3004
      %v3037 = vsub.f32 %v2973, %v3005
      %vm3038 = vcmp.ge.f32.partialorder %v2406, 0.0
      %vm3039 = vcmp.ge.f32.partialorder %v2455, 0.0
      %vm3040 = vcmp.ge.f32.partialorder %v2408, 0.0
      %vm3041 = vcmp.ge.f32.partialorder %v2457, 0.0
      %vm3042 = vcmp.ge.f32.partialorder %v2411, 0.0
      %vm3043 = vcmp.ge.f32.partialorder %v2460, 0.0
      %vm3044 = vcmp.ge.f32.partialorder %v2413, 0.0
      %vm3045 = vcmp.ge.f32.partialorder %v2462, 0.0
      %vm3046 = vcmp.ge.f32.partialorder %v2416, 0.0
      %vm3047 = vcmp.ge.f32.partialorder %v2465, 0.0
      %vm3048 = vcmp.ge.f32.partialorder %v2418, 0.0
      %vm3049 = vcmp.ge.f32.partialorder %v2467, 0.0
      %vm3050 = vcmp.ge.f32.partialorder %v2421, 0.0
      %vm3051 = vcmp.ge.f32.partialorder %v2470, 0.0
      %vm3052 = vcmp.ge.f32.partialorder %v2423, 0.0
      %vm3053 = vcmp.ge.f32.partialorder %v2472, 0.0
      %vm3054 = vcmp.ge.f32.partialorder %v2426, 0.0
      %vm3055 = vcmp.ge.f32.partialorder %v2475, 0.0
      %vm3056 = vcmp.ge.f32.partialorder %v2428, 0.0
      %vm3057 = vcmp.ge.f32.partialorder %v2477, 0.0
      %vm3058 = vcmp.ge.f32.partialorder %v2431, 0.0
      %vm3059 = vcmp.ge.f32.partialorder %v2480, 0.0
      %vm3060 = vcmp.ge.f32.partialorder %v2433, 0.0
      %vm3061 = vcmp.ge.f32.partialorder %v2482, 0.0
      %vm3062 = vcmp.ge.f32.partialorder %v2436, 0.0
      %vm3063 = vcmp.ge.f32.partialorder %v2485, 0.0
      %vm3064 = vcmp.ge.f32.partialorder %v2438, 0.0
      %vm3065 = vcmp.ge.f32.partialorder %v2487, 0.0
      %vm3066 = vcmp.ge.f32.partialorder %v2441, 0.0
      %vm3067 = vcmp.ge.f32.partialorder %v2490, 0.0
      %vm3068 = vcmp.ge.f32.partialorder %v2443, 0.0
      %vm3069 = vcmp.ge.f32.partialorder %v2492, 0.0
      %v3070 = vsel %vm3038, 1.0, %v2559
      %v3071 = vsel %vm3039, 1.0, %v2561
      %v3072 = vsel %vm3040, 1.0, %v2563
      %v3073 = vsel %vm3041, 1.0, %v2565
      %v3074 = vsel %vm3042, 1.0, %v2567
      %v3075 = vsel %vm3043, 1.0, %v2569
      %v3076 = vsel %vm3044, 1.0, %v2571
      %v3077 = vsel %vm3045, 1.0, %v2573
      %v3078 = vsel %vm3046, 1.0, %v2575
      %v3079 = vsel %vm3047, 1.0, %v2577
      %v3080 = vsel %vm3048, 1.0, %v2579
      %v3081 = vsel %vm3049, 1.0, %v2581
      %v3082 = vsel %vm3050, 1.0, %v2583
      %v3083 = vsel %vm3051, 1.0, %v2585
      %v3084 = vsel %vm3052, 1.0, %v2587
      %v3085 = vsel %vm3053, 1.0, %v2589
      %v3086 = vsel %vm3054, 1.0, %v2591
      %v3087 = vsel %vm3055, 1.0, %v2593
      %v3088 = vsel %vm3056, 1.0, %v2595
      %v3089 = vsel %vm3057, 1.0, %v2597
      %v3090 = vsel %vm3058, 1.0, %v2599
      %v3091 = vsel %vm3059, 1.0, %v2601
      %v3092 = vsel %vm3060, 1.0, %v2603
      %v3093 = vsel %vm3061, 1.0, %v2605
      %v3094 = vsel %vm3062, 1.0, %v2607
      %v3095 = vsel %vm3063, 1.0, %v2609
      %v3096 = vsel %vm3064, 1.0, %v2611
      %v3097 = vsel %vm3065, 1.0, %v2613
      %v3098 = vsel %vm3066, 1.0, %v2615
      %v3099 = vsel %vm3067, 1.0, %v2617
      %v3100 = vsel %vm3068, 1.0, %v2619
      %v3101 = vsel %vm3069, 1.0, %v2621
      %v3102 = vadd.f32 %v2559, 1.0
      %v3103 = vadd.f32 %v2561, 1.0
      %v3104 = vadd.f32 %v2563, 1.0
      %v3105 = vadd.f32 %v2565, 1.0
      %v3106 = vadd.f32 %v2567, 1.0
      %v3107 = vadd.f32 %v2569, 1.0
      %v3108 = vadd.f32 %v2571, 1.0
      %v3109 = vadd.f32 %v2573, 1.0
      %v3110 = vadd.f32 %v2575, 1.0
      %v3111 = vadd.f32 %v2577, 1.0
      %v3112 = vadd.f32 %v2579, 1.0
      %v3113 = vadd.f32 %v2581, 1.0
      %v3114 = vadd.f32 %v2583, 1.0
      %v3115 = vadd.f32 %v2585, 1.0
      %v3116 = vadd.f32 %v2587, 1.0
      %v3117 = vadd.f32 %v2589, 1.0
      %v3118 = vadd.f32 %v2591, 1.0
      %v3119 = vadd.f32 %v2593, 1.0
      %v3120 = vadd.f32 %v2595, 1.0
      %v3121 = vadd.f32 %v2597, 1.0
      %v3122 = vadd.f32 %v2599, 1.0
      %v3123 = vadd.f32 %v2601, 1.0
      %v3124 = vadd.f32 %v2603, 1.0
      %v3125 = vadd.f32 %v2605, 1.0
      %v3126 = vadd.f32 %v2607, 1.0
      %v3127 = vadd.f32 %v2609, 1.0
      %v3128 = vadd.f32 %v2611, 1.0
      %v3129 = vadd.f32 %v2613, 1.0
      %v3130 = vadd.f32 %v2615, 1.0
      %v3131 = vadd.f32 %v2617, 1.0
      %v3132 = vadd.f32 %v2619, 1.0
      %v3133 = vadd.f32 %v2621, 1.0
      %v3134 = vrcp.pop %v3102
      %v3135 = vrcp.pop %v3103
      %v3136 = vrcp.pop %v3104
      %v3137 = vrcp.pop %v3105
      %v3138 = vrcp.pop %v3106
      %v3139 = vrcp.pop %v3107
      %v3140 = vrcp.pop %v3108
      %v3141 = vrcp.pop %v3109
      %v3142 = vrcp.pop %v3110
      %v3143 = vrcp.pop %v3111
      %v3144 = vrcp.pop %v3112
      %v3145 = vrcp.pop %v3113
      %v3146 = vrcp.pop %v3114
      %v3147 = vrcp.pop %v3115
      %v3148 = vrcp.pop %v3116
      %v3149 = vrcp.pop %v3117
      %v3150 = vrcp.pop %v3118
      %v3151 = vrcp.pop %v3119
      %v3152 = vrcp.pop %v3120
      %v3153 = vrcp.pop %v3121
      %v3154 = vrcp.pop %v3122
      %v3155 = vrcp.pop %v3123
      %v3156 = vrcp.pop %v3124
      %v3157 = vrcp.pop %v3125
      %v3158 = vrcp.pop %v3126
      %v3159 = vrcp.pop %v3127
      %v3160 = vrcp.pop %v3128
      %v3161 = vrcp.pop %v3129
      %v3162 = vrcp.pop %v3130
      %v3163 = vrcp.pop %v3131
      %v3164 = vrcp.pop %v3132
      %v3165 = vrcp.pop %v3133
      %v3166 = vmul.f32 %v3070, %v3134
      %v3167 = vmul.f32 %v3071, %v3135
      %v3168 = vmul.f32 %v3072, %v3136
      %v3169 = vmul.f32 %v3073, %v3137
      %v3170 = vmul.f32 %v3074, %v3138
      %v3171 = vmul.f32 %v3075, %v3139
      %v3172 = vmul.f32 %v3076, %v3140
      %v3173 = vmul.f32 %v3077, %v3141
      %v3174 = vmul.f32 %v3078, %v3142
      %v3175 = vmul.f32 %v3079, %v3143
      %v3176 = vmul.f32 %v3080, %v3144
      %v3177 = vmul.f32 %v3081, %v3145
      %v3178 = vmul.f32 %v3082, %v3146
      %v3179 = vmul.f32 %v3083, %v3147
      %v3180 = vmul.f32 %v3084, %v3148
      %v3181 = vmul.f32 %v3085, %v3149
      %v3182 = vmul.f32 %v3086, %v3150
      %v3183 = vmul.f32 %v3087, %v3151
      %v3184 = vmul.f32 %v3088, %v3152
      %v3185 = vmul.f32 %v3089, %v3153
      %v3186 = vmul.f32 %v3090, %v3154
      %v3187 = vmul.f32 %v3091, %v3155
      %v3188 = vmul.f32 %v3092, %v3156
      %v3189 = vmul.f32 %v3093, %v3157
      %v3190 = vmul.f32 %v3094, %v3158
      %v3191 = vmul.f32 %v3095, %v3159
      %v3192 = vmul.f32 %v3096, %v3160
      %v3193 = vmul.f32 %v3097, %v3161
      %v3194 = vmul.f32 %v3098, %v3162
      %v3195 = vmul.f32 %v3099, %v3163
      %v3196 = vmul.f32 %v3100, %v3164
      %v3197 = vmul.f32 %v3101, %v3165
      %v3198 = vmin.f32 %v3166, 1.0
      %v3199 = vmin.f32 %v3167, 1.0
      %v3200 = vmin.f32 %v3168, 1.0
      %v3201 = vmin.f32 %v3169, 1.0
      %v3202 = vmin.f32 %v3170, 1.0
      %v3203 = vmin.f32 %v3171, 1.0
      %v3204 = vmin.f32 %v3172, 1.0
      %v3205 = vmin.f32 %v3173, 1.0
      %v3206 = vmin.f32 %v3174, 1.0
      %v3207 = vmin.f32 %v3175, 1.0
      %v3208 = vmin.f32 %v3176, 1.0
      %v3209 = vmin.f32 %v3177, 1.0
      %v3210 = vmin.f32 %v3178, 1.0
      %v3211 = vmin.f32 %v3179, 1.0
      %v3212 = vmin.f32 %v3180, 1.0
      %v3213 = vmin.f32 %v3181, 1.0
      %v3214 = vmin.f32 %v3182, 1.0
      %v3215 = vmin.f32 %v3183, 1.0
      %v3216 = vmin.f32 %v3184, 1.0
      %v3217 = vmin.f32 %v3185, 1.0
      %v3218 = vmin.f32 %v3186, 1.0
      %v3219 = vmin.f32 %v3187, 1.0
      %v3220 = vmin.f32 %v3188, 1.0
      %v3221 = vmin.f32 %v3189, 1.0
      %v3222 = vmin.f32 %v3190, 1.0
      %v3223 = vmin.f32 %v3191, 1.0
      %v3224 = vmin.f32 %v3192, 1.0
      %v3225 = vmin.f32 %v3193, 1.0
      %v3226 = vmin.f32 %v3194, 1.0
      %v3227 = vmin.f32 %v3195, 1.0
      %v3228 = vmin.f32 %v3196, 1.0
      %v3229 = vmin.f32 %v3197, 1.0
      %3230 = vst [vmem:[%s606] sm:$0xff] %v1680
      %3231 = vst [vmem:[%s606 + $0x8] sm:$0xff] %v1681
      %3232 = vst [vmem:[%s606 + $0x10] sm:$0xff] %v1682
      %3233 = vst [vmem:[%s606 + $0x18] sm:$0xff] %v1683
      %3234 = vst [vmem:[%s606 + $0x20] sm:$0xff] %v1684
      %3235 = vst [vmem:[%s606 + $0x28] sm:$0xff] %v1685
      %3236 = vst [vmem:[%s606 + $0x30] sm:$0xff] %v1686
      %3237 = vst [vmem:[%s606 + $0x38] sm:$0xff] %v1687
      %3238 = vst [vmem:[%s606 + $0x40] sm:$0xff] %v1688
      %3239 = vst [vmem:[%s606 + $0x48] sm:$0xff] %v1689
      %3240 = vst [vmem:[%s606 + $0x50] sm:$0xff] %v1690
      %3241 = vst [vmem:[%s606 + $0x58] sm:$0xff] %v1691
      %3242 = vst [vmem:[%s606 + $0x60] sm:$0xff] %v1692
      %3243 = vst [vmem:[%s606 + $0x68] sm:$0xff] %v1693
      %3244 = vst [vmem:[%s606 + $0x70] sm:$0xff] %v1694
      %3245 = vst [vmem:[%s606 + $0x78] sm:$0xff] %v1695
      %3246 = vst [vmem:[%s612] sm:$0xff] %v1776
      %3247 = vst [vmem:[%s612 + $0x8] sm:$0xff] %v1777
      %3248 = vst [vmem:[%s612 + $0x10] sm:$0xff] %v1778
      %3249 = vst [vmem:[%s612 + $0x18] sm:$0xff] %v1779
      %3250 = vst [vmem:[%s612 + $0x20] sm:$0xff] %v1780
      %3251 = vst [vmem:[%s612 + $0x28] sm:$0xff] %v1781
      %3252 = vst [vmem:[%s612 + $0x30] sm:$0xff] %v1782
      %3253 = vst [vmem:[%s612 + $0x38] sm:$0xff] %v1783
      %3254 = vst [vmem:[%s612 + $0x40] sm:$0xff] %v1784
      %3255 = vst [vmem:[%s612 + $0x48] sm:$0xff] %v1785
      %3256 = vst [vmem:[%s612 + $0x50] sm:$0xff] %v1786
      %3257 = vst [vmem:[%s612 + $0x58] sm:$0xff] %v1787
      %3258 = vst [vmem:[%s612 + $0x60] sm:$0xff] %v1788
      %3259 = vst [vmem:[%s612 + $0x68] sm:$0xff] %v1789
      %3260 = vst [vmem:[%s612 + $0x70] sm:$0xff] %v1790
      %3261 = vst [vmem:[%s612 + $0x78] sm:$0xff] %v1791
      %3278 = vrot.lane.b32.xlu0 %v1914, 64
      %v3279 = vpop.permute.xlu0 %3278
      %3280 = vrot.lane.b32.xlu0 %v1917, 64
      %v3281 = vpop.permute.xlu0 %3280
      %3282 = vrot.lane.b32.xlu0 %v1920, 64
      %v3283 = vpop.permute.xlu0 %3282
      %3284 = vrot.lane.b32.xlu0 %v1923, 64
      %v3285 = vpop.permute.xlu0 %3284
      %3286 = vrot.lane.b32.xlu0 %v1926, 64
      %v3287 = vpop.permute.xlu0 %3286
      %3288 = vrot.lane.b32.xlu0 %v1929, 64
      %v3289 = vpop.permute.xlu0 %3288
      %3290 = vrot.lane.b32.xlu0 %v1932, 64
      %v3291 = vpop.permute.xlu0 %3290
      %3292 = vrot.lane.b32.xlu0 %v1935, 64
      %v3293 = vpop.permute.xlu0 %3292
      %3294 = vrot.lane.b32.xlu0 %v1938, 64
      %v3295 = vpop.permute.xlu0 %3294
      %3296 = vrot.lane.b32.xlu0 %v1941, 64
      %v3297 = vpop.permute.xlu0 %3296
      %3298 = vrot.lane.b32.xlu0 %v1944, 64
      %v3299 = vpop.permute.xlu0 %3298
      %3300 = vrot.lane.b32.xlu0 %v1947, 64
      %v3301 = vpop.permute.xlu0 %3300
      %3302 = vrot.lane.b32.xlu0 %v1950, 64
      %v3303 = vpop.permute.xlu0 %3302
      %3304 = vrot.lane.b32.xlu0 %v1953, 64
      %v3305 = vpop.permute.xlu0 %3304
      %3306 = vrot.lane.b32.xlu0 %v1956, 64
      %v3307 = vpop.permute.xlu0 %3306
      %3308 = vrot.lane.b32.xlu0 %v1959, 64
      %v3309 = vpop.permute.xlu0 %3308
      %v3326 = vsel %vm1503, %v2137, %v3279
      %v3327 = vsel %vm1503, %v2138, %v3281
      %v3328 = vsel %vm1503, %v2139, %v3283
      %v3329 = vsel %vm1503, %v2140, %v3285
      %v3330 = vsel %vm1503, %v2141, %v3287
      %v3331 = vsel %vm1503, %v2142, %v3289
      %v3332 = vsel %vm1503, %v2143, %v3291
      %v3333 = vsel %vm1503, %v2144, %v3293
      %v3334 = vsel %vm1503, %v2145, %v3295
      %v3335 = vsel %vm1503, %v2146, %v3297
      %v3336 = vsel %vm1503, %v2147, %v3299
      %v3337 = vsel %vm1503, %v2148, %v3301
      %v3338 = vsel %vm1503, %v2149, %v3303
      %v3339 = vsel %vm1503, %v2150, %v3305
      %v3340 = vsel %vm1503, %v2151, %v3307
      %v3341 = vsel %vm1503, %v2152, %v3309
      %3342 = vst [vmem:[%s618] sm:$0xff] %v3326
      %3343 = vst [vmem:[%s618 + $0x8] sm:$0xff] %v3327
      %3344 = vst [vmem:[%s618 + $0x10] sm:$0xff] %v3328
      %3345 = vst [vmem:[%s618 + $0x18] sm:$0xff] %v3329
      %3346 = vst [vmem:[%s618 + $0x20] sm:$0xff] %v3330
      %3347 = vst [vmem:[%s618 + $0x28] sm:$0xff] %v3331
      %3348 = vst [vmem:[%s618 + $0x30] sm:$0xff] %v3332
      %3349 = vst [vmem:[%s618 + $0x38] sm:$0xff] %v3333
      %3350 = vst [vmem:[%s618 + $0x40] sm:$0xff] %v3334
      %3351 = vst [vmem:[%s618 + $0x48] sm:$0xff] %v3335
      %3352 = vst [vmem:[%s618 + $0x50] sm:$0xff] %v3336
      %3353 = vst [vmem:[%s618 + $0x58] sm:$0xff] %v3337
      %3354 = vst [vmem:[%s618 + $0x60] sm:$0xff] %v3338
      %3355 = vst [vmem:[%s618 + $0x68] sm:$0xff] %v3339
      %3356 = vst [vmem:[%s618 + $0x70] sm:$0xff] %v3340
      %3357 = vst [vmem:[%s618 + $0x78] sm:$0xff] %v3341
      %3358 = vst [vmem:[%s625] sm:$0xff] %v3198
      %3359 = vst [vmem:[%s625 + $0x8] sm:$0xff] %v3199
      %3360 = vst [vmem:[%s625 + $0x10] sm:$0xff] %v3200
      %3361 = vst [vmem:[%s625 + $0x18] sm:$0xff] %v3201
      %3362 = vst [vmem:[%s625 + $0x20] sm:$0xff] %v3202
      %3363 = vst [vmem:[%s625 + $0x28] sm:$0xff] %v3203
      %3364 = vst [vmem:[%s625 + $0x30] sm:$0xff] %v3204
      %3365 = vst [vmem:[%s625 + $0x38] sm:$0xff] %v3205
      %3366 = vst [vmem:[%s625 + $0x40] sm:$0xff] %v3206
      %3367 = vst [vmem:[%s625 + $0x48] sm:$0xff] %v3207
      %3368 = vst [vmem:[%s625 + $0x50] sm:$0xff] %v3208
      %3369 = vst [vmem:[%s625 + $0x58] sm:$0xff] %v3209
      %3370 = vst [vmem:[%s625 + $0x60] sm:$0xff] %v3210
      %3371 = vst [vmem:[%s625 + $0x68] sm:$0xff] %v3211
      %3372 = vst [vmem:[%s625 + $0x70] sm:$0xff] %v3212
      %3373 = vst [vmem:[%s625 + $0x78] sm:$0xff] %v3213
      %3374 = vst [vmem:[%s625 + $0x80] sm:$0xff] %v3214
      %3375 = vst [vmem:[%s625 + $0x88] sm:$0xff] %v3215
      %3376 = vst [vmem:[%s625 + $0x90] sm:$0xff] %v3216
      %3377 = vst [vmem:[%s625 + $0x98] sm:$0xff] %v3217
      %3378 = vst [vmem:[%s625 + $0xa0] sm:$0xff] %v3218
      %3379 = vst [vmem:[%s625 + $0xa8] sm:$0xff] %v3219
      %3380 = vst [vmem:[%s625 + $0xb0] sm:$0xff] %v3220
      %3381 = vst [vmem:[%s625 + $0xb8] sm:$0xff] %v3221
      %3382 = vst [vmem:[%s625 + $0xc0] sm:$0xff] %v3222
      %3383 = vst [vmem:[%s625 + $0xc8] sm:$0xff] %v3223
      %3384 = vst [vmem:[%s625 + $0xd0] sm:$0xff] %v3224
      %3385 = vst [vmem:[%s625 + $0xd8] sm:$0xff] %v3225
      %3386 = vst [vmem:[%s625 + $0xe0] sm:$0xff] %v3226
      %3387 = vst [vmem:[%s625 + $0xe8] sm:$0xff] %v3227
      %3388 = vst [vmem:[%s625 + $0xf0] sm:$0xff] %v3228
      %3389 = vst [vmem:[%s625 + $0xf8] sm:$0xff] %v3229
      %3390 = vst [vmem:[%s632] sm:$0xff] %v3006
      %3391 = vst [vmem:[%s632 + $0x8] sm:$0xff] %v3007
      %3392 = vst [vmem:[%s632 + $0x10] sm:$0xff] %v3008
      %3393 = vst [vmem:[%s632 + $0x18] sm:$0xff] %v3009
      %3394 = vst [vmem:[%s632 + $0x20] sm:$0xff] %v3010
      %3395 = vst [vmem:[%s632 + $0x28] sm:$0xff] %v3011
      %3396 = vst [vmem:[%s632 + $0x30] sm:$0xff] %v3012
      %3397 = vst [vmem:[%s632 + $0x38] sm:$0xff] %v3013
      %3398 = vst [vmem:[%s632 + $0x40] sm:$0xff] %v3014
      %3399 = vst [vmem:[%s632 + $0x48] sm:$0xff] %v3015
      %3400 = vst [vmem:[%s632 + $0x50] sm:$0xff] %v3016
      %3401 = vst [vmem:[%s632 + $0x58] sm:$0xff] %v3017
      %3402 = vst [vmem:[%s632 + $0x60] sm:$0xff] %v3018
      %3403 = vst [vmem:[%s632 + $0x68] sm:$0xff] %v3019
      %3404 = vst [vmem:[%s632 + $0x70] sm:$0xff] %v3020
      %3405 = vst [vmem:[%s632 + $0x78] sm:$0xff] %v3021
      %3406 = vst [vmem:[%s632 + $0x80] sm:$0xff] %v3022
      %3407 = vst [vmem:[%s632 + $0x88] sm:$0xff] %v3023
      %3408 = vst [vmem:[%s632 + $0x90] sm:$0xff] %v3024
      %3409 = vst [vmem:[%s632 + $0x98] sm:$0xff] %v3025
      %3410 = vst [vmem:[%s632 + $0xa0] sm:$0xff] %v3026
      %3411 = vst [vmem:[%s632 + $0xa8] sm:$0xff] %v3027
      %3412 = vst [vmem:[%s632 + $0xb0] sm:$0xff] %v3028
      %3413 = vst [vmem:[%s632 + $0xb8] sm:$0xff] %v3029
      %3414 = vst [vmem:[%s632 + $0xc0] sm:$0xff] %v3030
      %3415 = vst [vmem:[%s632 + $0xc8] sm:$0xff] %v3031
      %3416 = vst [vmem:[%s632 + $0xd0] sm:$0xff] %v3032
      %3417 = vst [vmem:[%s632 + $0xd8] sm:$0xff] %v3033
      %3418 = vst [vmem:[%s632 + $0xe0] sm:$0xff] %v3034
      %3419 = vst [vmem:[%s632 + $0xe8] sm:$0xff] %v3035
      %3420 = vst [vmem:[%s632 + $0xf0] sm:$0xff] %v3036
      %3421 = vst [vmem:[%s632 + $0xf8] sm:$0xff] %v3037
      %s3422 = smul.u32 16, %s29
      %p3423 = scmp.lt.s32.totalorder %s3422, 31
      %s3424 = scalar_select %p3423, %s3422, 31
      %s3425 = smul.addr %s3424, 8
      %s3426 = scalar_lea.vmem %s13, %s3425
      %s3427 = smul.u32 16, %s29
      %p3428 = scmp.lt.s32.totalorder %s3427, 31
      %s3429 = scalar_select %p3428, %s3427, 31
      %s3430 = smul.addr %s3429, 8
      %s3431 = scalar_lea.vmem %s14, %s3430
      %s3432 = smul.u32 16, %s29
      %p3433 = scmp.lt.s32.totalorder %s3432, 31
      %s3434 = scalar_select %p3433, %s3432, 31
      %s3435 = smul.addr %s3434, 8
      %s3436 = scalar_lea.vmem %s15, %s3435
      %s3437 = smul.u32 16, %s29
      %p3438 = scmp.lt.s32.totalorder %s3437, 31
      %s3439 = scalar_select %p3438, %s3437, 31
      %s3440 = smul.addr %s3439, 2
      %s3441 = smul.addr %s3440, 8
      %s3442 = scalar_lea.vmem %s16, %s3441
      %s3443 = smul.u32 16, %s29
      %p3444 = scmp.lt.s32.totalorder %s3443, 31
      %s3445 = scalar_select %p3444, %s3443, 31
      %s3446 = smul.addr %s3445, 2
      %s3447 = smul.addr %s3446, 8
      %s3448 = scalar_lea.vmem %s17, %s3447
      // Predicated region
      $region73: #{tvae_forward.1} parent=71 // pred_check
        %p3449 = pneg %p330
      $region74: #{tvae_forward.1} parent=71 // pred_check_branch
        %3451 = sbr.rel (%p3449) target = $region76
      $region75: #{tvae_forward.1} parent=71 // pred_region
        %s3452 = smul.u32 16, %s29
      $region76: #{tvae_forward.1} parent=71 // pred_fallthru
        _
      // Predicated region
      $region77: #{tvae_forward.1} parent=71 // pred_check
        %p3453 = pneg %p356
      $region78: #{tvae_forward.1} parent=71 // pred_check_branch
        %3455 = sbr.rel (%p3453) target = $region80
      $region79: #{tvae_forward.1} parent=71 // pred_region
        %s3456 = smul.u32 16, %s29
      $region80: #{tvae_forward.1} parent=71 // pred_fallthru
        _
      // Predicated region
      $region81: #{tvae_forward.1} parent=71 // pred_check
        %p3457 = pneg %p382
      $region82: #{tvae_forward.1} parent=71 // pred_check_branch
        %3459 = sbr.rel (%p3457) target = $region84
      $region83: #{tvae_forward.1} parent=71 // pred_region
        %s3460 = smul.u32 16, %s29
      $region84: #{tvae_forward.1} parent=71 // pred_fallthru
        _
      // Predicated region
      $region85: #{tvae_forward.1} parent=71 // pred_check
        %p3461 = pneg %p408
      $region86: #{tvae_forward.1} parent=71 // pred_check_branch
        %3463 = sbr.rel (%p3461) target = $region88
      $region87: #{tvae_forward.1} parent=71 // pred_region
        %s3464 = smul.u32 16, %s29
      $region88: #{tvae_forward.1} parent=71 // pred_fallthru
        _
      // Predicated region
      $region89: #{tvae_forward.1} parent=71 // pred_check
        %p3465 = pneg %p434
      $region90: #{tvae_forward.1} parent=71 // pred_check_branch
        %3467 = sbr.rel (%p3465) target = $region92
      $region91: #{tvae_forward.1} parent=71 // pred_region
        %s3468 = smul.u32 16, %s29
      $region92: #{tvae_forward.1} parent=71 // pred_fallthru
        _
    $region72: #{tvae_forward.1} parent=5 // pred_fallthru
      _
    %p3469 = scmp.le.s32.totalorder 2, %s24
    // Predicated region
    $region93: #{tvae_forward.1} parent=5 // pred_check
      %p3470 = pneg %p3469
    $region94: #{tvae_forward.1} parent=5 // pred_check_branch
      %3472 = sbr.rel (%p3470) target = $region96
    $region95: #{tvae_forward.1} parent=5 // pred_region
      %s3473 = ssub.s32 %s24, 2
      // Predicated region
      $region97: #{tvae_forward.1} parent=95 // pred_check
        %p3474 = pneg %p336
      $region98: #{tvae_forward.1} parent=95 // pred_check_branch
        %3476 = sbr.rel (%p3474) target = $region100
      $region99: #{tvae_forward.1} parent=95 // pred_region
        %s3477 = smul.u32 16, %s30
        %p3478 = scmp.lt.s32.totalorder %s3477, 31
        %s3479 = scalar_select %p3478, %s3477, 31
        %s3480 = smul.addr %s3479, 8
        %s3481 = scalar_lea.vmem %s13, %s3480
      $region100: #{tvae_forward.1} parent=95 // pred_fallthru
        _
      // Predicated region
      $region101: #{tvae_forward.1} parent=95 // pred_check
        %p3482 = pneg %p362
      $region102: #{tvae_forward.1} parent=95 // pred_check_branch
        %3484 = sbr.rel (%p3482) target = $region104
      $region103: #{tvae_forward.1} parent=95 // pred_region
        %s3485 = smul.u32 16, %s30
        %p3486 = scmp.lt.s32.totalorder %s3485, 31
        %s3487 = scalar_select %p3486, %s3485, 31
        %s3488 = smul.addr %s3487, 8
        %s3489 = scalar_lea.vmem %s14, %s3488
      $region104: #{tvae_forward.1} parent=95 // pred_fallthru
        _
      // Predicated region
      $region105: #{tvae_forward.1} parent=95 // pred_check
        %p3490 = pneg %p388
      $region106: #{tvae_forward.1} parent=95 // pred_check_branch
        %3492 = sbr.rel (%p3490) target = $region108
      $region107: #{tvae_forward.1} parent=95 // pred_region
        %s3493 = smul.u32 16, %s30
        %p3494 = scmp.lt.s32.totalorder %s3493, 31
        %s3495 = scalar_select %p3494, %s3493, 31
        %s3496 = smul.addr %s3495, 8
        %s3497 = scalar_lea.vmem %s15, %s3496
      $region108: #{tvae_forward.1} parent=95 // pred_fallthru
        _
      // Predicated region
      $region109: #{tvae_forward.1} parent=95 // pred_check
        %p3498 = pneg %p414
      $region110: #{tvae_forward.1} parent=95 // pred_check_branch
        %3500 = sbr.rel (%p3498) target = $region112
      $region111: #{tvae_forward.1} parent=95 // pred_region
        %s3501 = smul.u32 16, %s30
        %p3502 = scmp.lt.s32.totalorder %s3501, 31
        %s3503 = scalar_select %p3502, %s3501, 31
        %s3504 = smul.addr %s3503, 2
        %s3505 = smul.addr %s3504, 8
        %s3506 = scalar_lea.vmem %s16, %s3505
      $region112: #{tvae_forward.1} parent=95 // pred_fallthru
        _
      // Predicated region
      $region113: #{tvae_forward.1} parent=95 // pred_check
        %p3507 = pneg %p440
      $region114: #{tvae_forward.1} parent=95 // pred_check_branch
        %3509 = sbr.rel (%p3507) target = $region116
      $region115: #{tvae_forward.1} parent=95 // pred_region
        %s3510 = smul.u32 16, %s30
        %p3511 = scmp.lt.s32.totalorder %s3510, 31
        %s3512 = scalar_select %p3511, %s3510, 31
        %s3513 = smul.addr %s3512, 2
        %s3514 = smul.addr %s3513, 8
        %s3515 = scalar_lea.vmem %s17, %s3514
      $region116: #{tvae_forward.1} parent=95 // pred_fallthru
        _
    $region96: #{tvae_forward.1} parent=5 // pred_fallthru
      _
  $region6: #{tvae_forward.1} parent=0 // loop_footer
    %s28 = sadd.s32 1, %s24
  $region7: #{tvae_forward.1} parent=0 // loop_footer_branch
    %23 = sbr.rel target = $region3
  $region8: #{tvae_forward.1} parent=0 // loop_exit
    _

</llo_original>
